<compile_context>
chip_gen: v7x
topology: tpu7x:2x2x1
jax: 0.10.0
libtpu: 0.0.40
codegen_flags: <defaults>
</compile_context>

<pallas_src>
import jax
import jax.numpy as jnp
import numpy as np
from jax.experimental import pallas as pl
from jax.experimental.pallas import tpu as pltpu


def make_attention_kernel(num_heads: int, dim: int, bt: int, n: int, mxu_dtype=None):
    head_dim = dim // num_heads

    def cast(a):
        return a if mxu_dtype is None else a.astype(mxu_dtype)

    def attn_kernel(x_ref, wqkv_ref, wproj_ref, bproj_ref, o_ref):
        # x block: (bt, n, dim).  Flatten tokens across the batch tile so both
        # projection matmuls run with M = bt*n rows on the MXU.
        x2 = x_ref[...].reshape(bt * n, dim)

        # QKV projection (Linear, no bias).  `scale` already folded into the Q
        # columns of wqkv on the host -> no `* scale` VPU multiply here.
        qkv = jnp.dot(cast(x2), wqkv_ref[...],
                      preferred_element_type=jnp.float32)            # (bt*n, 3*dim) f32

        # Column packing follows 'b n (qkv h d)':
        #   col = qkv_idx * dim + head * head_dim + d_idx
        head_outs = []
        for hh in range(num_heads):
            q = qkv[:, hh * head_dim:(hh + 1) * head_dim].reshape(bt, n, head_dim)
            k = qkv[:, dim + hh * head_dim: dim + (hh + 1) * head_dim].reshape(bt, n, head_dim)
            v = qkv[:, 2 * dim + hh * head_dim: 2 * dim + (hh + 1) * head_dim].reshape(bt, n, head_dim)

            # Batched over the bt batch elements in this tile; contraction on
            # head_dim (dot_general), no explicit k.T / transpose relayout.
            dots = jnp.einsum('bnd,bmd->bnm', cast(q), cast(k),
                              preferred_element_type=jnp.float32)    # (bt, n, n) f32
            m = jnp.max(dots, axis=-1, keepdims=True)                # row max (XLU)
            e = jnp.exp(dots - m)                                    # f32 exp (EUP)
            s = jnp.sum(e, axis=-1, keepdims=True)                   # row sum (XLU)
            # P@V with UNnormalized probabilities; normalize afterwards:
            # softmax(x) @ V == (exp(x - m) @ V) * (1 / rowsum).  Fewer VPU
            # divides/multiplies when head_dim < n (typical).
            out_h = jnp.einsum('bnm,bmd->bnd', cast(e), cast(v),
                               preferred_element_type=jnp.float32)   # (bt, n, d)
            out_h = out_h * pl.reciprocal(s, approx=False)
            head_outs.append(out_h.reshape(bt * n, head_dim))

        # Assemble 'b n (h d)' with one concatenate (feeds a lane-dense,
        # full-K output-projection matmul) instead of narrow masked stores.
        out_cat = jnp.concatenate(head_outs, axis=-1)                 # (bt*n, dim)

        # Output projection (Linear with bias); dropout layers are identity at p=0.
        y = jnp.dot(cast(out_cat), wproj_ref[...],
                    preferred_element_type=jnp.float32) + bproj_ref[...]
        o_ref[...] = y.reshape(bt, n, dim).astype(o_ref.dtype)

    return attn_kernel


def _choose_batch_tile(b: int, n: int, dim: int, num_heads: int, *,
                       in_bytes: int = 4, mxu_bytes: int = 4,
                       vmem_budget_bytes: int = 28 * 1024 * 1024,
                       max_rows: int = 4096) -> int:
    """Largest divisor bt of b whose per-step working set fits a conservative
    VMEM budget (playbook: pick the biggest tile that fits)."""
    hd = dim // num_heads

    def est_bytes(bt):
        rows = bt * n
        weights = dim * 3 * dim * mxu_bytes + dim * dim * mxu_bytes + dim * 4
        xo = 2 * (bt * n * dim * in_bytes) * 2          # x + out blocks, double-buffered
        qkv = rows * 3 * dim * 4                        # f32 projection result
        per_head = 3 * rows * hd * mxu_bytes + 3 * bt * n * n * 4   # q/k/v slices + scores/exp
        head_outs = num_heads * rows * hd * 4 + rows * dim * 4      # per-head outs + concat
        return weights + xo + qkv + per_head + head_outs

    best = 1
    for cand in range(1, b + 1):
        if b % cand:
            continue
        if cand * n > max_rows:
            break
        if est_bytes(cand) > vmem_budget_bytes:
            break
        best = cand
    return best


def attention_forward(x, w_qkv, w_proj, b_proj, num_heads, *, mxu_dtype=None):
    """x: (b, n, dim); w_qkv: (3*dim, dim) PyTorch (out,in) layout; w_proj: (dim, dim); b_proj: (dim,)."""
    b, n, dim = x.shape
    head_dim = dim // num_heads
    scale = head_dim ** (-0.5)
    mxu_bytes = 4 if mxu_dtype is None else jnp.dtype(mxu_dtype).itemsize
    bt = _choose_batch_tile(b, n, dim, num_heads,
                            in_bytes=jnp.dtype(x.dtype).itemsize,
                            mxu_bytes=mxu_bytes)

    # One-time host-side weight prep: (in,out) layout + fold `scale` into the Q
    # rows of w_qkv (= Q output columns of the projection).  qkv_bias=False.
    row_scale = jnp.concatenate(
        [jnp.full((dim,), scale, dtype=w_qkv.dtype),
         jnp.ones((2 * dim,), dtype=w_qkv.dtype)])
    wqkv_t = (w_qkv * row_scale[:, None]).T           # (dim, 3*dim)
    wproj_t = w_proj.T                                # (dim, dim)
    bproj_2d = b_proj.reshape(1, dim)                 # bias stays f32 (added post-accum)
    if mxu_dtype is not None:
        wqkv_t = wqkv_t.astype(mxu_dtype)
        wproj_t = wproj_t.astype(mxu_dtype)

    kernel = make_attention_kernel(num_heads, dim, bt, n, mxu_dtype)

    out = pl.pallas_call(
        kernel,
        out_shape=jax.ShapeDtypeStruct((b, n, dim), x.dtype),
        grid_spec=pltpu.PrefetchScalarGridSpec(
            num_scalar_prefetch=0,
            grid=(b // bt,),
            in_specs=[
                pl.BlockSpec((bt, n, dim), lambda i: (i, 0, 0)),
                # Constant index maps: weights are DMA'd once and stay resident
                # across batch-tile steps (no per-step weight re-DMA).
                pl.BlockSpec((dim, 3 * dim), lambda i: (0, 0)),
                pl.BlockSpec((dim, dim), lambda i: (0, 0)),
                pl.BlockSpec((1, dim), lambda i: (0, 0)),
            ],
            out_specs=pl.BlockSpec((bt, n, dim), lambda i: (i, 0, 0)),
        ),
        compiler_params=pltpu.CompilerParams(
            dimension_semantics=("parallel",),
            # Raise scoped VMEM above the conservative defaults (16/32 MiB on
            # v5e/v6e-v7x) while staying safely under v7x's 64 MiB physical.
            vmem_limit_bytes=48 * 1024 * 1024),
    )(x, wqkv_t, wproj_t, bproj_2d)
    return out


def attention_reference(x, w_qkv, w_proj, b_proj, num_heads):
    """Plain-JAX reference mirroring the PyTorch forward exactly (dropout p=0)."""
    b, n, dim = x.shape
    d = dim // num_heads
    scale = d ** (-0.5)
    qkv = x @ w_qkv.T                                     # (b, n, 3*dim)
    qkv = qkv.reshape(b, n, 3, num_heads, d)              # 'b n (qkv h d)'
    qkv = jnp.transpose(qkv, (2, 0, 3, 1, 4))             # -> qkv b h n d
    q, k, v = qkv[0], qkv[1], qkv[2]
    dots = jnp.einsum('bhid,bhjd->bhij', q, k) * scale
    attn = jax.nn.softmax(dots, axis=-1)
    out = jnp.einsum('bhij,bhjd->bhid', attn, v)
    out = jnp.transpose(out, (0, 2, 1, 3)).reshape(b, n, dim)
    return out @ w_proj.T + b_proj


if __name__ == "__main__":
    # small shapes consistent with the module: batch=2, seq=8, hidden(dim)=32, heads=8
    B, N, DIM, HEADS = 2, 8, 32, 8

    key = jax.random.PRNGKey(0)
    kx, kqkv, kproj, kb = jax.random.split(key, 4)

    x = jax.random.normal(kx, (B, N, DIM), dtype=jnp.float32)
    # deterministic synthetic parameters (PyTorch Linear weight layout: (out, in))
    w_qkv = jax.random.normal(kqkv, (3 * DIM, DIM), dtype=jnp.float32) * 0.05
    w_proj = jax.random.normal(kproj, (DIM, DIM), dtype=jnp.float32) * 0.05
    b_proj = jax.random.normal(kb, (DIM,), dtype=jnp.float32) * 0.05
    # qkv_bias=False (module default) -> no qkv bias
    # attn_drop=0.0, proj_drop=0.0 -> dropout layers are identity at p=0

    # f32 MXU path for tight validation; pass mxu_dtype=jnp.bfloat16 on v6e/v7x.
    out = attention_forward(x, w_qkv, w_proj, b_proj, HEADS, mxu_dtype=None)
    out = jax.block_until_ready(out)

    ref = attention_reference(x, w_qkv, w_proj, b_proj, HEADS)
    np.testing.assert_allclose(np.asarray(out), np.asarray(ref), rtol=1e-5, atol=1e-5)

    print("KERNEL_OK")
</pallas_src>

<mosaic_0001>
module attributes {stable_mosaic.version = 11 : i64} {
  func.func @attn_kernel(%arg0: i32, %arg1: memref<2x8x32xf32, #tpu.memory_space<vmem>>, %arg2: memref<32x96xf32, #tpu.memory_space<vmem>>, %arg3: memref<32x32xf32, #tpu.memory_space<vmem>>, %arg4: memref<1x32xf32, #tpu.memory_space<vmem>>, %arg5: memref<2x8x32xf32, #tpu.memory_space<vmem>>) attributes {dimension_semantics = [#tpu.dimension_semantics<parallel>], iteration_bounds = array<i64: 1>, scalar_prefetch = 0 : i64, scratch_operands = 0 : i64, tpu.core_type = #tpu.core_type<tc>, window_params = [{transform_indices = @transform_0, window_bounds = array<i64: 2, 8, 32>}, {pipeline_mode = #tpu.pipeline_mode<synchronous>, transform_indices = @transform_1, window_bounds = array<i64: 32, 96>}, {pipeline_mode = #tpu.pipeline_mode<synchronous>, transform_indices = @transform_2, window_bounds = array<i64: 32, 32>}, {pipeline_mode = #tpu.pipeline_mode<synchronous>, transform_indices = @transform_3, window_bounds = array<i64: 1, 32>}, {transform_indices = @transform_4, window_bounds = array<i64: 2, 8, 32>}]} {
    %c0 = arith.constant 0 : index
    %c0_0 = arith.constant 0 : index
    %c0_1 = arith.constant 0 : index
    %0 = vector.load %arg1[%c0, %c0_0, %c0_1] : memref<2x8x32xf32, #tpu.memory_space<vmem>>, vector<2x8x32xf32>
    %1 = vector.shape_cast %0 : vector<2x8x32xf32> to vector<16x32xf32>
    %c0_2 = arith.constant 0 : index
    %c0_3 = arith.constant 0 : index
    %2 = vector.load %arg2[%c0_2, %c0_3] : memref<32x96xf32, #tpu.memory_space<vmem>>, vector<32x96xf32>
    %cst = arith.constant dense<0.000000e+00> : vector<16x96xf32>
    %3 = tpu.matmul %1, %2, %cst {dimension_numbers = #tpu.dot_dimension_numbers<[1], [0], [0], [1], [0, 0, 1, 1], [], []>} : vector<16x32xf32>, vector<32x96xf32>, vector<16x96xf32> -> vector<16x96xf32>
    %4 = vector.extract_strided_slice %3 {offsets = [0, 0], sizes = [16, 4], strides = [1, 1]} : vector<16x96xf32> to vector<16x4xf32>
    %5 = vector.shape_cast %4 : vector<16x4xf32> to vector<2x8x4xf32>
    %6 = vector.extract_strided_slice %3 {offsets = [0, 32], sizes = [16, 4], strides = [1, 1]} : vector<16x96xf32> to vector<16x4xf32>
    %7 = vector.shape_cast %6 : vector<16x4xf32> to vector<2x8x4xf32>
    %8 = vector.extract_strided_slice %3 {offsets = [0, 64], sizes = [16, 4], strides = [1, 1]} : vector<16x96xf32> to vector<16x4xf32>
    %9 = vector.shape_cast %8 : vector<16x4xf32> to vector<2x8x4xf32>
    "tpu.trace_start"() <{level = 10 : i32, message = "bnd,bmd->bnm"}> : () -> ()
    %cst_4 = arith.constant dense<0.000000e+00> : vector<2x8x8xf32>
    %10 = tpu.matmul %5, %7, %cst_4 {dimension_numbers = #tpu.dot_dimension_numbers<[2], [2], [1], [1], [0, 0, 0, 1, 1, 1], [0], [0]>} : vector<2x8x4xf32>, vector<2x8x4xf32>, vector<2x8x8xf32> -> vector<2x8x8xf32>
    "tpu.trace_stop"() : () -> ()
    %cst_5 = arith.constant dense<0xFF800000> : vector<2x8xf32>
    %11 = vector.multi_reduction <maximumf>, %10, %cst_5 [2] : vector<2x8x8xf32> to vector<2x8xf32>
    %12 = vector.shape_cast %11 : vector<2x8xf32> to vector<2x8x1xf32>
    %13 = vector.broadcast %12 : vector<2x8x1xf32> to vector<2x8x8xf32>
    %14 = arith.subf %10, %13 : vector<2x8x8xf32>
    %15 = math.exp %14 : vector<2x8x8xf32>
    %cst_6 = arith.constant dense<0.000000e+00> : vector<2x8xf32>
    %16 = vector.multi_reduction <add>, %15, %cst_6 [2] : vector<2x8x8xf32> to vector<2x8xf32>
    %17 = vector.shape_cast %16 : vector<2x8xf32> to vector<2x8x1xf32>
    "tpu.trace_start"() <{level = 10 : i32, message = "bnm,bmd->bnd"}> : () -> ()
    %cst_7 = arith.constant dense<0.000000e+00> : vector<2x8x4xf32>
    %18 = tpu.matmul %15, %9, %cst_7 {dimension_numbers = #tpu.dot_dimension_numbers<[2], [1], [1], [2], [0, 0, 0, 1, 1, 2], [0], [0]>} : vector<2x8x8xf32>, vector<2x8x4xf32>, vector<2x8x4xf32> -> vector<2x8x4xf32>
    "tpu.trace_stop"() : () -> ()
    %19 = tpu.reciprocal %17 : vector<2x8x1xf32> -> vector<2x8x1xf32>
    %20 = vector.broadcast %19 : vector<2x8x1xf32> to vector<2x8x4xf32>
    %21 = arith.mulf %18, %20 : vector<2x8x4xf32>
    %22 = vector.shape_cast %21 : vector<2x8x4xf32> to vector<16x4xf32>
    %23 = vector.extract_strided_slice %3 {offsets = [0, 4], sizes = [16, 4], strides = [1, 1]} : vector<16x96xf32> to vector<16x4xf32>
    %24 = vector.shape_cast %23 : vector<16x4xf32> to vector<2x8x4xf32>
    %25 = vector.extract_strided_slice %3 {offsets = [0, 36], sizes = [16, 4], strides = [1, 1]} : vector<16x96xf32> to vector<16x4xf32>
    %26 = vector.shape_cast %25 : vector<16x4xf32> to vector<2x8x4xf32>
    %27 = vector.extract_strided_slice %3 {offsets = [0, 68], sizes = [16, 4], strides = [1, 1]} : vector<16x96xf32> to vector<16x4xf32>
    %28 = vector.shape_cast %27 : vector<16x4xf32> to vector<2x8x4xf32>
    "tpu.trace_start"() <{level = 10 : i32, message = "bnd,bmd->bnm"}> : () -> ()
    %cst_8 = arith.constant dense<0.000000e+00> : vector<2x8x8xf32>
    %29 = tpu.matmul %24, %26, %cst_8 {dimension_numbers = #tpu.dot_dimension_numbers<[2], [2], [1], [1], [0, 0, 0, 1, 1, 1], [0], [0]>} : vector<2x8x4xf32>, vector<2x8x4xf32>, vector<2x8x8xf32> -> vector<2x8x8xf32>
    "tpu.trace_stop"() : () -> ()
    %cst_9 = arith.constant dense<0xFF800000> : vector<2x8xf32>
    %30 = vector.multi_reduction <maximumf>, %29, %cst_9 [2] : vector<2x8x8xf32> to vector<2x8xf32>
    %31 = vector.shape_cast %30 : vector<2x8xf32> to vector<2x8x1xf32>
    %32 = vector.broadcast %31 : vector<2x8x1xf32> to vector<2x8x8xf32>
    %33 = arith.subf %29, %32 : vector<2x8x8xf32>
    %34 = math.exp %33 : vector<2x8x8xf32>
    %cst_10 = arith.constant dense<0.000000e+00> : vector<2x8xf32>
    %35 = vector.multi_reduction <add>, %34, %cst_10 [2] : vector<2x8x8xf32> to vector<2x8xf32>
    %36 = vector.shape_cast %35 : vector<2x8xf32> to vector<2x8x1xf32>
    "tpu.trace_start"() <{level = 10 : i32, message = "bnm,bmd->bnd"}> : () -> ()
    %cst_11 = arith.constant dense<0.000000e+00> : vector<2x8x4xf32>
    %37 = tpu.matmul %34, %28, %cst_11 {dimension_numbers = #tpu.dot_dimension_numbers<[2], [1], [1], [2], [0, 0, 0, 1, 1, 2], [0], [0]>} : vector<2x8x8xf32>, vector<2x8x4xf32>, vector<2x8x4xf32> -> vector<2x8x4xf32>
    "tpu.trace_stop"() : () -> ()
    %38 = tpu.reciprocal %36 : vector<2x8x1xf32> -> vector<2x8x1xf32>
    %39 = vector.broadcast %38 : vector<2x8x1xf32> to vector<2x8x4xf32>
    %40 = arith.mulf %37, %39 : vector<2x8x4xf32>
    %41 = vector.shape_cast %40 : vector<2x8x4xf32> to vector<16x4xf32>
    %42 = vector.extract_strided_slice %3 {offsets = [0, 8], sizes = [16, 4], strides = [1, 1]} : vector<16x96xf32> to vector<16x4xf32>
    %43 = vector.shape_cast %42 : vector<16x4xf32> to vector<2x8x4xf32>
    %44 = vector.extract_strided_slice %3 {offsets = [0, 40], sizes = [16, 4], strides = [1, 1]} : vector<16x96xf32> to vector<16x4xf32>
    %45 = vector.shape_cast %44 : vector<16x4xf32> to vector<2x8x4xf32>
    %46 = vector.extract_strided_slice %3 {offsets = [0, 72], sizes = [16, 4], strides = [1, 1]} : vector<16x96xf32> to vector<16x4xf32>
    %47 = vector.shape_cast %46 : vector<16x4xf32> to vector<2x8x4xf32>
    "tpu.trace_start"() <{level = 10 : i32, message = "bnd,bmd->bnm"}> : () -> ()
    %cst_12 = arith.constant dense<0.000000e+00> : vector<2x8x8xf32>
    %48 = tpu.matmul %43, %45, %cst_12 {dimension_numbers = #tpu.dot_dimension_numbers<[2], [2], [1], [1], [0, 0, 0, 1, 1, 1], [0], [0]>} : vector<2x8x4xf32>, vector<2x8x4xf32>, vector<2x8x8xf32> -> vector<2x8x8xf32>
    "tpu.trace_stop"() : () -> ()
    %cst_13 = arith.constant dense<0xFF800000> : vector<2x8xf32>
    %49 = vector.multi_reduction <maximumf>, %48, %cst_13 [2] : vector<2x8x8xf32> to vector<2x8xf32>
    %50 = vector.shape_cast %49 : vector<2x8xf32> to vector<2x8x1xf32>
    %51 = vector.broadcast %50 : vector<2x8x1xf32> to vector<2x8x8xf32>
    %52 = arith.subf %48, %51 : vector<2x8x8xf32>
    %53 = math.exp %52 : vector<2x8x8xf32>
    %cst_14 = arith.constant dense<0.000000e+00> : vector<2x8xf32>
    %54 = vector.multi_reduction <add>, %53, %cst_14 [2] : vector<2x8x8xf32> to vector<2x8xf32>
    %55 = vector.shape_cast %54 : vector<2x8xf32> to vector<2x8x1xf32>
    "tpu.trace_start"() <{level = 10 : i32, message = "bnm,bmd->bnd"}> : () -> ()
    %cst_15 = arith.constant dense<0.000000e+00> : vector<2x8x4xf32>
    %56 = tpu.matmul %53, %47, %cst_15 {dimension_numbers = #tpu.dot_dimension_numbers<[2], [1], [1], [2], [0, 0, 0, 1, 1, 2], [0], [0]>} : vector<2x8x8xf32>, vector<2x8x4xf32>, vector<2x8x4xf32> -> vector<2x8x4xf32>
    "tpu.trace_stop"() : () -> ()
    %57 = tpu.reciprocal %55 : vector<2x8x1xf32> -> vector<2x8x1xf32>
    %58 = vector.broadcast %57 : vector<2x8x1xf32> to vector<2x8x4xf32>
    %59 = arith.mulf %56, %58 : vector<2x8x4xf32>
    %60 = vector.shape_cast %59 : vector<2x8x4xf32> to vector<16x4xf32>
    %61 = vector.extract_strided_slice %3 {offsets = [0, 12], sizes = [16, 4], strides = [1, 1]} : vector<16x96xf32> to vector<16x4xf32>
    %62 = vector.shape_cast %61 : vector<16x4xf32> to vector<2x8x4xf32>
    %63 = vector.extract_strided_slice %3 {offsets = [0, 44], sizes = [16, 4], strides = [1, 1]} : vector<16x96xf32> to vector<16x4xf32>
    %64 = vector.shape_cast %63 : vector<16x4xf32> to vector<2x8x4xf32>
    %65 = vector.extract_strided_slice %3 {offsets = [0, 76], sizes = [16, 4], strides = [1, 1]} : vector<16x96xf32> to vector<16x4xf32>
    %66 = vector.shape_cast %65 : vector<16x4xf32> to vector<2x8x4xf32>
    "tpu.trace_start"() <{level = 10 : i32, message = "bnd,bmd->bnm"}> : () -> ()
    %cst_16 = arith.constant dense<0.000000e+00> : vector<2x8x8xf32>
    %67 = tpu.matmul %62, %64, %cst_16 {dimension_numbers = #tpu.dot_dimension_numbers<[2], [2], [1], [1], [0, 0, 0, 1, 1, 1], [0], [0]>} : vector<2x8x4xf32>, vector<2x8x4xf32>, vector<2x8x8xf32> -> vector<2x8x8xf32>
    "tpu.trace_stop"() : () -> ()
    %cst_17 = arith.constant dense<0xFF800000> : vector<2x8xf32>
    %68 = vector.multi_reduction <maximumf>, %67, %cst_17 [2] : vector<2x8x8xf32> to vector<2x8xf32>
    %69 = vector.shape_cast %68 : vector<2x8xf32> to vector<2x8x1xf32>
    %70 = vector.broadcast %69 : vector<2x8x1xf32> to vector<2x8x8xf32>
    %71 = arith.subf %67, %70 : vector<2x8x8xf32>
    %72 = math.exp %71 : vector<2x8x8xf32>
    %cst_18 = arith.constant dense<0.000000e+00> : vector<2x8xf32>
    %73 = vector.multi_reduction <add>, %72, %cst_18 [2] : vector<2x8x8xf32> to vector<2x8xf32>
    %74 = vector.shape_cast %73 : vector<2x8xf32> to vector<2x8x1xf32>
    "tpu.trace_start"() <{level = 10 : i32, message = "bnm,bmd->bnd"}> : () -> ()
    %cst_19 = arith.constant dense<0.000000e+00> : vector<2x8x4xf32>
    %75 = tpu.matmul %72, %66, %cst_19 {dimension_numbers = #tpu.dot_dimension_numbers<[2], [1], [1], [2], [0, 0, 0, 1, 1, 2], [0], [0]>} : vector<2x8x8xf32>, vector<2x8x4xf32>, vector<2x8x4xf32> -> vector<2x8x4xf32>
    "tpu.trace_stop"() : () -> ()
    %76 = tpu.reciprocal %74 : vector<2x8x1xf32> -> vector<2x8x1xf32>
    %77 = vector.broadcast %76 : vector<2x8x1xf32> to vector<2x8x4xf32>
    %78 = arith.mulf %75, %77 : vector<2x8x4xf32>
    %79 = vector.shape_cast %78 : vector<2x8x4xf32> to vector<16x4xf32>
    %80 = vector.extract_strided_slice %3 {offsets = [0, 16], sizes = [16, 4], strides = [1, 1]} : vector<16x96xf32> to vector<16x4xf32>
    %81 = vector.shape_cast %80 : vector<16x4xf32> to vector<2x8x4xf32>
    %82 = vector.extract_strided_slice %3 {offsets = [0, 48], sizes = [16, 4], strides = [1, 1]} : vector<16x96xf32> to vector<16x4xf32>
    %83 = vector.shape_cast %82 : vector<16x4xf32> to vector<2x8x4xf32>
    %84 = vector.extract_strided_slice %3 {offsets = [0, 80], sizes = [16, 4], strides = [1, 1]} : vector<16x96xf32> to vector<16x4xf32>
    %85 = vector.shape_cast %84 : vector<16x4xf32> to vector<2x8x4xf32>
    "tpu.trace_start"() <{level = 10 : i32, message = "bnd,bmd->bnm"}> : () -> ()
    %cst_20 = arith.constant dense<0.000000e+00> : vector<2x8x8xf32>
    %86 = tpu.matmul %81, %83, %cst_20 {dimension_numbers = #tpu.dot_dimension_numbers<[2], [2], [1], [1], [0, 0, 0, 1, 1, 1], [0], [0]>} : vector<2x8x4xf32>, vector<2x8x4xf32>, vector<2x8x8xf32> -> vector<2x8x8xf32>
    "tpu.trace_stop"() : () -> ()
    %cst_21 = arith.constant dense<0xFF800000> : vector<2x8xf32>
    %87 = vector.multi_reduction <maximumf>, %86, %cst_21 [2] : vector<2x8x8xf32> to vector<2x8xf32>
    %88 = vector.shape_cast %87 : vector<2x8xf32> to vector<2x8x1xf32>
    %89 = vector.broadcast %88 : vector<2x8x1xf32> to vector<2x8x8xf32>
    %90 = arith.subf %86, %89 : vector<2x8x8xf32>
    %91 = math.exp %90 : vector<2x8x8xf32>
    %cst_22 = arith.constant dense<0.000000e+00> : vector<2x8xf32>
    %92 = vector.multi_reduction <add>, %91, %cst_22 [2] : vector<2x8x8xf32> to vector<2x8xf32>
    %93 = vector.shape_cast %92 : vector<2x8xf32> to vector<2x8x1xf32>
    "tpu.trace_start"() <{level = 10 : i32, message = "bnm,bmd->bnd"}> : () -> ()
    %cst_23 = arith.constant dense<0.000000e+00> : vector<2x8x4xf32>
    %94 = tpu.matmul %91, %85, %cst_23 {dimension_numbers = #tpu.dot_dimension_numbers<[2], [1], [1], [2], [0, 0, 0, 1, 1, 2], [0], [0]>} : vector<2x8x8xf32>, vector<2x8x4xf32>, vector<2x8x4xf32> -> vector<2x8x4xf32>
    "tpu.trace_stop"() : () -> ()
    %95 = tpu.reciprocal %93 : vector<2x8x1xf32> -> vector<2x8x1xf32>
    %96 = vector.broadcast %95 : vector<2x8x1xf32> to vector<2x8x4xf32>
    %97 = arith.mulf %94, %96 : vector<2x8x4xf32>
    %98 = vector.shape_cast %97 : vector<2x8x4xf32> to vector<16x4xf32>
    %99 = vector.extract_strided_slice %3 {offsets = [0, 20], sizes = [16, 4], strides = [1, 1]} : vector<16x96xf32> to vector<16x4xf32>
    %100 = vector.shape_cast %99 : vector<16x4xf32> to vector<2x8x4xf32>
    %101 = vector.extract_strided_slice %3 {offsets = [0, 52], sizes = [16, 4], strides = [1, 1]} : vector<16x96xf32> to vector<16x4xf32>
    %102 = vector.shape_cast %101 : vector<16x4xf32> to vector<2x8x4xf32>
    %103 = vector.extract_strided_slice %3 {offsets = [0, 84], sizes = [16, 4], strides = [1, 1]} : vector<16x96xf32> to vector<16x4xf32>
    %104 = vector.shape_cast %103 : vector<16x4xf32> to vector<2x8x4xf32>
    "tpu.trace_start"() <{level = 10 : i32, message = "bnd,bmd->bnm"}> : () -> ()
    %cst_24 = arith.constant dense<0.000000e+00> : vector<2x8x8xf32>
    %105 = tpu.matmul %100, %102, %cst_24 {dimension_numbers = #tpu.dot_dimension_numbers<[2], [2], [1], [1], [0, 0, 0, 1, 1, 1], [0], [0]>} : vector<2x8x4xf32>, vector<2x8x4xf32>, vector<2x8x8xf32> -> vector<2x8x8xf32>
    "tpu.trace_stop"() : () -> ()
    %cst_25 = arith.constant dense<0xFF800000> : vector<2x8xf32>
    %106 = vector.multi_reduction <maximumf>, %105, %cst_25 [2] : vector<2x8x8xf32> to vector<2x8xf32>
    %107 = vector.shape_cast %106 : vector<2x8xf32> to vector<2x8x1xf32>
    %108 = vector.broadcast %107 : vector<2x8x1xf32> to vector<2x8x8xf32>
    %109 = arith.subf %105, %108 : vector<2x8x8xf32>
    %110 = math.exp %109 : vector<2x8x8xf32>
    %cst_26 = arith.constant dense<0.000000e+00> : vector<2x8xf32>
    %111 = vector.multi_reduction <add>, %110, %cst_26 [2] : vector<2x8x8xf32> to vector<2x8xf32>
    %112 = vector.shape_cast %111 : vector<2x8xf32> to vector<2x8x1xf32>
    "tpu.trace_start"() <{level = 10 : i32, message = "bnm,bmd->bnd"}> : () -> ()
    %cst_27 = arith.constant dense<0.000000e+00> : vector<2x8x4xf32>
    %113 = tpu.matmul %110, %104, %cst_27 {dimension_numbers = #tpu.dot_dimension_numbers<[2], [1], [1], [2], [0, 0, 0, 1, 1, 2], [0], [0]>} : vector<2x8x8xf32>, vector<2x8x4xf32>, vector<2x8x4xf32> -> vector<2x8x4xf32>
    "tpu.trace_stop"() : () -> ()
    %114 = tpu.reciprocal %112 : vector<2x8x1xf32> -> vector<2x8x1xf32>
    %115 = vector.broadcast %114 : vector<2x8x1xf32> to vector<2x8x4xf32>
    %116 = arith.mulf %113, %115 : vector<2x8x4xf32>
    %117 = vector.shape_cast %116 : vector<2x8x4xf32> to vector<16x4xf32>
    %118 = vector.extract_strided_slice %3 {offsets = [0, 24], sizes = [16, 4], strides = [1, 1]} : vector<16x96xf32> to vector<16x4xf32>
    %119 = vector.shape_cast %118 : vector<16x4xf32> to vector<2x8x4xf32>
    %120 = vector.extract_strided_slice %3 {offsets = [0, 56], sizes = [16, 4], strides = [1, 1]} : vector<16x96xf32> to vector<16x4xf32>
    %121 = vector.shape_cast %120 : vector<16x4xf32> to vector<2x8x4xf32>
    %122 = vector.extract_strided_slice %3 {offsets = [0, 88], sizes = [16, 4], strides = [1, 1]} : vector<16x96xf32> to vector<16x4xf32>
    %123 = vector.shape_cast %122 : vector<16x4xf32> to vector<2x8x4xf32>
    "tpu.trace_start"() <{level = 10 : i32, message = "bnd,bmd->bnm"}> : () -> ()
    %cst_28 = arith.constant dense<0.000000e+00> : vector<2x8x8xf32>
    %124 = tpu.matmul %119, %121, %cst_28 {dimension_numbers = #tpu.dot_dimension_numbers<[2], [2], [1], [1], [0, 0, 0, 1, 1, 1], [0], [0]>} : vector<2x8x4xf32>, vector<2x8x4xf32>, vector<2x8x8xf32> -> vector<2x8x8xf32>
    "tpu.trace_stop"() : () -> ()
    %cst_29 = arith.constant dense<0xFF800000> : vector<2x8xf32>
    %125 = vector.multi_reduction <maximumf>, %124, %cst_29 [2] : vector<2x8x8xf32> to vector<2x8xf32>
    %126 = vector.shape_cast %125 : vector<2x8xf32> to vector<2x8x1xf32>
    %127 = vector.broadcast %126 : vector<2x8x1xf32> to vector<2x8x8xf32>
    %128 = arith.subf %124, %127 : vector<2x8x8xf32>
    %129 = math.exp %128 : vector<2x8x8xf32>
    %cst_30 = arith.constant dense<0.000000e+00> : vector<2x8xf32>
    %130 = vector.multi_reduction <add>, %129, %cst_30 [2] : vector<2x8x8xf32> to vector<2x8xf32>
    %131 = vector.shape_cast %130 : vector<2x8xf32> to vector<2x8x1xf32>
    "tpu.trace_start"() <{level = 10 : i32, message = "bnm,bmd->bnd"}> : () -> ()
    %cst_31 = arith.constant dense<0.000000e+00> : vector<2x8x4xf32>
    %132 = tpu.matmul %129, %123, %cst_31 {dimension_numbers = #tpu.dot_dimension_numbers<[2], [1], [1], [2], [0, 0, 0, 1, 1, 2], [0], [0]>} : vector<2x8x8xf32>, vector<2x8x4xf32>, vector<2x8x4xf32> -> vector<2x8x4xf32>
    "tpu.trace_stop"() : () -> ()
    %133 = tpu.reciprocal %131 : vector<2x8x1xf32> -> vector<2x8x1xf32>
    %134 = vector.broadcast %133 : vector<2x8x1xf32> to vector<2x8x4xf32>
    %135 = arith.mulf %132, %134 : vector<2x8x4xf32>
    %136 = vector.shape_cast %135 : vector<2x8x4xf32> to vector<16x4xf32>
    %137 = vector.extract_strided_slice %3 {offsets = [0, 28], sizes = [16, 4], strides = [1, 1]} : vector<16x96xf32> to vector<16x4xf32>
    %138 = vector.shape_cast %137 : vector<16x4xf32> to vector<2x8x4xf32>
    %139 = vector.extract_strided_slice %3 {offsets = [0, 60], sizes = [16, 4], strides = [1, 1]} : vector<16x96xf32> to vector<16x4xf32>
    %140 = vector.shape_cast %139 : vector<16x4xf32> to vector<2x8x4xf32>
    %141 = vector.extract_strided_slice %3 {offsets = [0, 92], sizes = [16, 4], strides = [1, 1]} : vector<16x96xf32> to vector<16x4xf32>
    %142 = vector.shape_cast %141 : vector<16x4xf32> to vector<2x8x4xf32>
    "tpu.trace_start"() <{level = 10 : i32, message = "bnd,bmd->bnm"}> : () -> ()
    %cst_32 = arith.constant dense<0.000000e+00> : vector<2x8x8xf32>
    %143 = tpu.matmul %138, %140, %cst_32 {dimension_numbers = #tpu.dot_dimension_numbers<[2], [2], [1], [1], [0, 0, 0, 1, 1, 1], [0], [0]>} : vector<2x8x4xf32>, vector<2x8x4xf32>, vector<2x8x8xf32> -> vector<2x8x8xf32>
    "tpu.trace_stop"() : () -> ()
    %cst_33 = arith.constant dense<0xFF800000> : vector<2x8xf32>
    %144 = vector.multi_reduction <maximumf>, %143, %cst_33 [2] : vector<2x8x8xf32> to vector<2x8xf32>
    %145 = vector.shape_cast %144 : vector<2x8xf32> to vector<2x8x1xf32>
    %146 = vector.broadcast %145 : vector<2x8x1xf32> to vector<2x8x8xf32>
    %147 = arith.subf %143, %146 : vector<2x8x8xf32>
    %148 = math.exp %147 : vector<2x8x8xf32>
    %cst_34 = arith.constant dense<0.000000e+00> : vector<2x8xf32>
    %149 = vector.multi_reduction <add>, %148, %cst_34 [2] : vector<2x8x8xf32> to vector<2x8xf32>
    %150 = vector.shape_cast %149 : vector<2x8xf32> to vector<2x8x1xf32>
    "tpu.trace_start"() <{level = 10 : i32, message = "bnm,bmd->bnd"}> : () -> ()
    %cst_35 = arith.constant dense<0.000000e+00> : vector<2x8x4xf32>
    %151 = tpu.matmul %148, %142, %cst_35 {dimension_numbers = #tpu.dot_dimension_numbers<[2], [1], [1], [2], [0, 0, 0, 1, 1, 2], [0], [0]>} : vector<2x8x8xf32>, vector<2x8x4xf32>, vector<2x8x4xf32> -> vector<2x8x4xf32>
    "tpu.trace_stop"() : () -> ()
    %152 = tpu.reciprocal %150 : vector<2x8x1xf32> -> vector<2x8x1xf32>
    %153 = vector.broadcast %152 : vector<2x8x1xf32> to vector<2x8x4xf32>
    %154 = arith.mulf %151, %153 : vector<2x8x4xf32>
    %155 = vector.shape_cast %154 : vector<2x8x4xf32> to vector<16x4xf32>
    %156 = tpu.concatenate %22, %41, %60, %79, %98, %117, %136, %155 in 1 : vector<16x4xf32>, vector<16x4xf32>, vector<16x4xf32>, vector<16x4xf32>, vector<16x4xf32>, vector<16x4xf32>, vector<16x4xf32>, vector<16x4xf32> -> vector<16x32xf32>
    %c0_36 = arith.constant 0 : index
    %c0_37 = arith.constant 0 : index
    %157 = vector.load %arg3[%c0_36, %c0_37] : memref<32x32xf32, #tpu.memory_space<vmem>>, vector<32x32xf32>
    %cst_38 = arith.constant dense<0.000000e+00> : vector<16x32xf32>
    %158 = tpu.matmul %156, %157, %cst_38 {dimension_numbers = #tpu.dot_dimension_numbers<[1], [0], [0], [1], [0, 0, 1, 1], [], []>} : vector<16x32xf32>, vector<32x32xf32>, vector<16x32xf32> -> vector<16x32xf32>
    %c0_39 = arith.constant 0 : index
    %c0_40 = arith.constant 0 : index
    %159 = vector.load %arg4[%c0_39, %c0_40] : memref<1x32xf32, #tpu.memory_space<vmem>>, vector<1x32xf32>
    %160 = vector.broadcast %159 : vector<1x32xf32> to vector<16x32xf32>
    %161 = arith.addf %158, %160 : vector<16x32xf32>
    %162 = vector.shape_cast %161 : vector<16x32xf32> to vector<2x8x32xf32>
    %c0_41 = arith.constant 0 : index
    %c0_42 = arith.constant 0 : index
    %c0_43 = arith.constant 0 : index
    %163 = vector.load %arg5[%c0_41, %c0_42, %c0_43] : memref<2x8x32xf32, #tpu.memory_space<vmem>>, vector<2x8x32xf32>
    tpu.vector_store %arg5[%c0_41, %c0_42, %c0_43], %162 {strides = array<i32>} : memref<2x8x32xf32, #tpu.memory_space<vmem>>, vector<2x8x32xf32>,
    return
  }
  func.func @transform_0(%arg0: i32) -> (i32, i32, i32) {
    %c0_i32 = arith.constant 0 : i32
    %c0_i32_0 = arith.constant 0 : i32
    %c0_i32_1 = arith.constant 0 : i32
    return %arg0, %c0_i32, %c0_i32_0 : i32, i32, i32
  }
  func.func @transform_1(%arg0: i32) -> (i32, i32) {
    %c0_i32 = arith.constant 0 : i32
    %c0_i32_0 = arith.constant 0 : i32
    %c0_i32_1 = arith.constant 0 : i32
    return %c0_i32, %c0_i32_0 : i32, i32
  }
  func.func @transform_2(%arg0: i32) -> (i32, i32) {
    %c0_i32 = arith.constant 0 : i32
    %c0_i32_0 = arith.constant 0 : i32
    %c0_i32_1 = arith.constant 0 : i32
    return %c0_i32, %c0_i32_0 : i32, i32
  }
  func.func @transform_3(%arg0: i32) -> (i32, i32) {
    %c0_i32 = arith.constant 0 : i32
    %c0_i32_0 = arith.constant 0 : i32
    %c0_i32_1 = arith.constant 0 : i32
    return %c0_i32, %c0_i32_0 : i32, i32
  }
  func.func @transform_4(%arg0: i32) -> (i32, i32, i32) {
    %c0_i32 = arith.constant 0 : i32
    %c0_i32_0 = arith.constant 0 : i32
    %c0_i32_1 = arith.constant 0 : i32
    return %arg0, %c0_i32, %c0_i32_0 : i32, i32, i32
  }
}

</mosaic_0001>

<llo_original>
// kernel: tpu_custom_call.1
$region0: #{tpu_custom_call.1}
  #allocation0 [shape = 'u32[]', space=smem, size = 0x4, offset = 0x4, fixed_abs, tag = 'smem constant byte address 0x4 - core index']
  #allocation1 [shape = 'u32[144,128]{1,0:T(1,128)}', space=vmem, size = 0x12000, scoped, tag = 'internal scratch']
  %s0 = inlined_call_operand.hbm [shape: f32[2,8,32], index: 0, kind: input, shape index: {}]
  %s1 = inlined_call_operand.hbm [shape: f32[32,96], index: 1, kind: input, shape index: {}]
  %s2 = inlined_call_operand.hbm [shape: f32[32,32], index: 2, kind: input, shape index: {}]
  %s3 = inlined_call_operand.vmem [shape: f32[1,32], index: 3, kind: input, shape index: {}]
  %s4 = inlined_call_operand.hbm [shape: f32[2,8,32], index: 4, kind: output, shape index: {}]
  %s5 = sld [smem:[#allocation0]]
  $region38: #{tpu_custom_call.1} parent=0
    _
  %s7 = ssub.s32 1, %s5
  %s8 = scalar_select 0, %s7, %s5
  $region1: #{tpu_custom_call.1} parent=0
    #allocation2 [shape = 'u8[8192]{0}', space=vmem, size = 0x2000, scoped, tag = 'input window, operand 0, single buffered']
    #allocation3 [shape = 's32[1]{0}', space=sflag, size = 0x4, scoped, tag = 'scoped memory for tpu_custom_call.1']
    #allocation4 [shape = 's32[1]{0}', space=sflag, size = 0x4, scoped, tag = 'scoped memory for tpu_custom_call.1']
    #allocation5 [shape = 'u8[16384]{0}', space=vmem, size = 0x4000, scoped, tag = 'input window, operand 1, single buffered']
    #allocation6 [shape = 's32[1]{0}', space=sflag, size = 0x4, scoped, tag = 'scoped memory for tpu_custom_call.1']
    #allocation7 [shape = 'u8[16384]{0}', space=vmem, size = 0x4000, scoped, tag = 'input window, operand 2, single buffered']
    #allocation8 [shape = 'u8[8192]{0}', space=vmem, size = 0x2000, scoped, tag = 'output window, operand 0, single buffered']
    %9 = vsyncpa [#allocation3], 0
    %10 = vsyncpa [#allocation6], 0
    %11 = vsyncpa [#allocation4], 0
    // Predicated region
    $region2: #{tpu_custom_call.1} parent=1 // pred_check
      _
    $region3: #{tpu_custom_call.1} parent=1 // pred_check_branch
      %13 = sbr.rel (0) target = $region5
    $region4: #{tpu_custom_call.1} parent=1 // pred_region
      %s15 = ssub.s32 256, 256
      %16 = vsyncadd [#allocation3], %s15
      %s17 = sshll.u32 [#allocation2], 4
      %s18 = int_to_ptr.vmem [resolvable:$true] %s17
      %23 = dma.hbm_to_vmem [thread:$0]  %s0, 256, %s18, [#allocation3], 128, 128, 8
    $region5: #{tpu_custom_call.1} parent=1 // pred_fallthru
      _
    // Predicated region
    $region6: #{tpu_custom_call.1} parent=1 // pred_check
      _
    $region7: #{tpu_custom_call.1} parent=1 // pred_check_branch
      %25 = sbr.rel (0) target = $region9
    $region8: #{tpu_custom_call.1} parent=1 // pred_region
      %s27 = ssub.s32 512, 512
      %28 = vsyncadd [#allocation6], %s27
      %s29 = sshll.u32 [#allocation5], 4
      %s30 = int_to_ptr.vmem [resolvable:$true] %s29
      %35 = dma.hbm_to_vmem [thread:$0]  %s1, 512, %s30, [#allocation6], 128, 128, 8
    $region9: #{tpu_custom_call.1} parent=1 // pred_fallthru
      _
    // Predicated region
    $region10: #{tpu_custom_call.1} parent=1 // pred_check
      _
    $region11: #{tpu_custom_call.1} parent=1 // pred_check_branch
      %37 = sbr.rel (0) target = $region13
    $region12: #{tpu_custom_call.1} parent=1 // pred_region
      %s39 = ssub.s32 512, 512
      %40 = vsyncadd [#allocation6], %s39
      %s41 = sshll.u32 [#allocation7], 4
      %s42 = int_to_ptr.vmem [resolvable:$true] %s41
      %47 = dma.hbm_to_vmem [thread:$0]  %s2, 512, %s42, [#allocation6], 128, 128, 8
    $region13: #{tpu_custom_call.1} parent=1 // pred_fallthru
      _
    // Predicated region
    $region14: #{tpu_custom_call.1} parent=1 // pred_check
      _
    $region15: #{tpu_custom_call.1} parent=1 // pred_check_branch
      %49 = sbr.rel (0) target = $region17
    $region16: #{tpu_custom_call.1} parent=1 // pred_region
      _
    $region17: #{tpu_custom_call.1} parent=1 // pred_fallthru
      _
    // Predicated region
    $region18: #{tpu_custom_call.1} parent=1 // pred_check
      _
    $region19: #{tpu_custom_call.1} parent=1 // pred_check_branch
      %51 = sbr.rel (0) target = $region21
    $region20: #{tpu_custom_call.1} parent=1 // pred_region
      %52 = dma.done [#allocation3], 256
    $region21: #{tpu_custom_call.1} parent=1 // pred_fallthru
      _
    // Predicated region
    $region22: #{tpu_custom_call.1} parent=1 // pred_check
      _
    $region23: #{tpu_custom_call.1} parent=1 // pred_check_branch
      %54 = sbr.rel (0) target = $region25
    $region24: #{tpu_custom_call.1} parent=1 // pred_region
      %55 = dma.done [#allocation6], 512
    $region25: #{tpu_custom_call.1} parent=1 // pred_fallthru
      _
    // Predicated region
    $region26: #{tpu_custom_call.1} parent=1 // pred_check
      _
    $region27: #{tpu_custom_call.1} parent=1 // pred_check_branch
      %57 = sbr.rel (0) target = $region29
    $region28: #{tpu_custom_call.1} parent=1 // pred_region
      %58 = dma.done [#allocation6], 512
    $region29: #{tpu_custom_call.1} parent=1 // pred_fallthru
      _
    %v59 = vld [vmem:[#allocation2] sm:$0xff]
    %v60 = vld [vmem:[#allocation2 + $0x8] sm:$0xff]
    %v61 = vld [vmem:[#allocation5] sm:$0xff]
    %v62 = vld [vmem:[#allocation5 + $0x8] sm:$0xff]
    %v63 = vld [vmem:[#allocation5 + $0x10] sm:$0xff]
    %v64 = vld [vmem:[#allocation5 + $0x18] sm:$0xff]
    %vm65 = vcmask 261120
    %v67 = vsel %vm65, %v59, 0
    %v70 = vsel %vm65, %v60, 0
    %72 = vmatprep.subr.mxu0 0.0
    %73 = vmatpush1.msra.mxu0 %v61
    %74 = vmatprep.subr.mxu0 0.0
    %75 = vmatpush1.msra.mxu0 %v62
    %76 = vmatprep.subr.mxu0 0.0
    %77 = vmatpush1.msra.mxu0 %v63
    %78 = vmatprep.subr.mxu0 0.0
    %79 = vmatpush1.msra.mxu0 %v64
    %80 = vmatprep.subr.mxu0 0.0
    %81 = vmatpush1.msra.mxu0 0.0
    %82 = vmatprep.subr.mxu0 0.0
    %83 = vmatpush1.msra.mxu0 0.0
    %84 = vmatprep.subr.mxu0 0.0
    %85 = vmatpush1.msra.mxu0 0.0
    %86 = vmatprep.subr.mxu0 0.0
    %87 = vmatpush1.msra.mxu0 0.0
    %88 = vmatprep.subr.mxu0 0.0
    %89 = vmatpush1.msra.mxu0 0.0
    %90 = vmatprep.subr.mxu0 0.0
    %91 = vmatpush1.msra.mxu0 0.0
    %92 = vmatprep.subr.mxu0 0.0
    %93 = vmatpush1.msra.mxu0 0.0
    %94 = vmatprep.subr.mxu0 0.0
    %95 = vmatpush1.msra.mxu0 0.0
    %96 = vmatprep.subr.mxu0 0.0
    %97 = vmatpush1.msra.mxu0 0.0
    %98 = vmatprep.subr.mxu0 0.0
    %99 = vmatpush1.msra.mxu0 0.0
    %100 = vmatprep.subr.mxu0 0.0
    %101 = vmatpush1.msra.mxu0 0.0
    %102 = vmatprep.subr.mxu0 0.0
    %103 = vmatpush1.msra.mxu0 0.0
    %104 = vmatprep.subr.mxu0 0.0
    %105 = vmatpush1.msra.mxu0 0.0
    %106 = vmatprep.subr.mxu0 0.0
    %107 = vmatpush1.msra.mxu0 0.0
    %108 = vmatprep.subr.mxu0 0.0
    %109 = vmatpush1.msra.mxu0 0.0
    %110 = vmatprep.subr.mxu0 0.0
    %111 = vmatpush1.msra.mxu0 0.0
    %112 = vmatprep.subr.mxu0 0.0
    %113 = vmatpush1.msra.mxu0 0.0
    %114 = vmatprep.subr.mxu0 0.0
    %115 = vmatpush1.msra.mxu0 0.0
    %116 = vmatprep.subr.mxu0 0.0
    %117 = vmatpush1.msra.mxu0 0.0
    %118 = vmatprep.subr.mxu0 0.0
    %119 = vmatpush1.msra.mxu0 0.0
    %120 = vmatprep.subr.mxu0 0.0
    %121 = vmatpush1.msra.mxu0 0.0
    %122 = vmatprep.subr.mxu0 0.0
    %123 = vmatpush1.msra.mxu0 0.0
    %124 = vmatprep.subr.mxu0 0.0
    %125 = vmatpush1.msra.mxu0 0.0
    %126 = vmatprep.subr.mxu0 0.0
    %127 = vmatpush1.msra.mxu0 0.0
    %128 = vmatprep.subr.mxu0 0.0
    %129 = vmatpush1.msra.mxu0 0.0
    %130 = vmatprep.subr.mxu0 0.0
    %131 = vmatpush1.msra.mxu0 0.0
    %132 = vmatprep.subr.mxu0 0.0
    %133 = vmatpush1.msra.mxu0 0.0
    %134 = vmatprep.subr.mxu0 0.0
    %135 = vmatpush1.msra.mxu0 0.0
    %136 = vmatprep.mubr.f32.mxu0 0.0
    %137 = vmatmul.mubr.f32.gmra.mrb[0].mxu0 %v67
    %v138 = vpop.f32.mrb[0].mxu0
    %v139 = vadd.f32 0.0, %v138
    %v140 = vpop.f32.mrb[0].mxu0
    %141 = vmatprep.mubr.f32.mxu0 0.0
    %142 = vmatmul.mubr.f32.gmra.mrb[0].mxu0 %v70
    %v143 = vpop.f32.mrb[0].mxu0
    %v144 = vadd.f32 0.0, %v143
    %v145 = vpop.f32.mrb[0].mxu0
    %146 = vdwg.mxu0
    %148 = vrot.lane.b32.xlu0 %v139, 96
    %v149 = vpop.permute.xlu0 %148
    %vm150 = vcmask 31744
    %v151 = vsel %vm150, %v139, 0
    %v153 = vsel %vm150, %v149, 0
    %155 = vmatprep.subr.mxu0 0.0
    %156 = vmatpush1.xpose.msra.mxu0 %v153
    %157 = vmatprep.subr.mxu0 0.0
    %158 = vmatpush1.xpose.msra.mxu0 0.0
    %159 = vmatprep.subr.mxu0 0.0
    %160 = vmatpush1.xpose.msra.mxu0 0.0
    %161 = vmatprep.subr.mxu0 0.0
    %162 = vmatpush1.xpose.msra.mxu0 0.0
    %163 = vmatprep.subr.mxu0 0.0
    %164 = vmatpush1.xpose.msra.mxu0 0.0
    %165 = vmatprep.subr.mxu0 0.0
    %166 = vmatpush1.xpose.msra.mxu0 0.0
    %167 = vmatprep.subr.mxu0 0.0
    %168 = vmatpush1.xpose.msra.mxu0 0.0
    %169 = vmatprep.subr.mxu0 0.0
    %170 = vmatpush1.xpose.msra.mxu0 0.0
    %171 = vmatprep.subr.mxu0 0.0
    %172 = vmatpush1.xpose.msra.mxu0 0.0
    %173 = vmatprep.subr.mxu0 0.0
    %174 = vmatpush1.xpose.msra.mxu0 0.0
    %175 = vmatprep.subr.mxu0 0.0
    %176 = vmatpush1.xpose.msra.mxu0 0.0
    %177 = vmatprep.subr.mxu0 0.0
    %178 = vmatpush1.xpose.msra.mxu0 0.0
    %179 = vmatprep.subr.mxu0 0.0
    %180 = vmatpush1.xpose.msra.mxu0 0.0
    %181 = vmatprep.subr.mxu0 0.0
    %182 = vmatpush1.xpose.msra.mxu0 0.0
    %183 = vmatprep.subr.mxu0 0.0
    %184 = vmatpush1.xpose.msra.mxu0 0.0
    %185 = vmatprep.subr.mxu0 0.0
    %186 = vmatpush1.xpose.msra.mxu0 0.0
    %187 = vmatprep.subr.mxu0 0.0
    %188 = vmatpush1.xpose.msra.mxu0 0.0
    %189 = vmatprep.subr.mxu0 0.0
    %190 = vmatpush1.xpose.msra.mxu0 0.0
    %191 = vmatprep.subr.mxu0 0.0
    %192 = vmatpush1.xpose.msra.mxu0 0.0
    %193 = vmatprep.subr.mxu0 0.0
    %194 = vmatpush1.xpose.msra.mxu0 0.0
    %195 = vmatprep.subr.mxu0 0.0
    %196 = vmatpush1.xpose.msra.mxu0 0.0
    %197 = vmatprep.subr.mxu0 0.0
    %198 = vmatpush1.xpose.msra.mxu0 0.0
    %199 = vmatprep.subr.mxu0 0.0
    %200 = vmatpush1.xpose.msra.mxu0 0.0
    %201 = vmatprep.subr.mxu0 0.0
    %202 = vmatpush1.xpose.msra.mxu0 0.0
    %203 = vmatprep.subr.mxu0 0.0
    %204 = vmatpush1.xpose.msra.mxu0 0.0
    %205 = vmatprep.subr.mxu0 0.0
    %206 = vmatpush1.xpose.msra.mxu0 0.0
    %207 = vmatprep.subr.mxu0 0.0
    %208 = vmatpush1.xpose.msra.mxu0 0.0
    %209 = vmatprep.subr.mxu0 0.0
    %210 = vmatpush1.xpose.msra.mxu0 0.0
    %211 = vmatprep.subr.mxu0 0.0
    %212 = vmatpush1.xpose.msra.mxu0 0.0
    %213 = vmatprep.subr.mxu0 0.0
    %214 = vmatpush1.xpose.msra.mxu0 0.0
    %215 = vmatprep.subr.mxu0 0.0
    %216 = vmatpush1.xpose.msra.mxu0 0.0
    %217 = vmatprep.subr.mxu0 0.0
    %218 = vmatpush1.xpose.msra.mxu0 0.0
    %219 = vmatprep.mubr.f32.mxu0 0.0
    %220 = vmatmul.mubr.f32.gmra.mrb[0].mxu0 %v151
    %v221 = vpop.f32.mrb[0].mxu0
    %v222 = vadd.f32 0.0, %v221
    %v223 = vpop.f32.mrb[0].mxu0
    %224 = vdwg.mxu0
    %226 = vrot.lane.b32.xlu0 %v144, 96
    %v227 = vpop.permute.xlu0 %226
    %v228 = vsel %vm150, %v144, 0
    %v230 = vsel %vm150, %v227, 0
    %232 = vmatprep.subr.mxu0 0.0
    %233 = vmatpush1.xpose.msra.mxu0 %v230
    %234 = vmatprep.subr.mxu0 0.0
    %235 = vmatpush1.xpose.msra.mxu0 0.0
    %236 = vmatprep.subr.mxu0 0.0
    %237 = vmatpush1.xpose.msra.mxu0 0.0
    %238 = vmatprep.subr.mxu0 0.0
    %239 = vmatpush1.xpose.msra.mxu0 0.0
    %240 = vmatprep.subr.mxu0 0.0
    %241 = vmatpush1.xpose.msra.mxu0 0.0
    %242 = vmatprep.subr.mxu0 0.0
    %243 = vmatpush1.xpose.msra.mxu0 0.0
    %244 = vmatprep.subr.mxu0 0.0
    %245 = vmatpush1.xpose.msra.mxu0 0.0
    %246 = vmatprep.subr.mxu0 0.0
    %247 = vmatpush1.xpose.msra.mxu0 0.0
    %248 = vmatprep.subr.mxu0 0.0
    %249 = vmatpush1.xpose.msra.mxu0 0.0
    %250 = vmatprep.subr.mxu0 0.0
    %251 = vmatpush1.xpose.msra.mxu0 0.0
    %252 = vmatprep.subr.mxu0 0.0
    %253 = vmatpush1.xpose.msra.mxu0 0.0
    %254 = vmatprep.subr.mxu0 0.0
    %255 = vmatpush1.xpose.msra.mxu0 0.0
    %256 = vmatprep.subr.mxu0 0.0
    %257 = vmatpush1.xpose.msra.mxu0 0.0
    %258 = vmatprep.subr.mxu0 0.0
    %259 = vmatpush1.xpose.msra.mxu0 0.0
    %260 = vmatprep.subr.mxu0 0.0
    %261 = vmatpush1.xpose.msra.mxu0 0.0
    %262 = vmatprep.subr.mxu0 0.0
    %263 = vmatpush1.xpose.msra.mxu0 0.0
    %264 = vmatprep.subr.mxu0 0.0
    %265 = vmatpush1.xpose.msra.mxu0 0.0
    %266 = vmatprep.subr.mxu0 0.0
    %267 = vmatpush1.xpose.msra.mxu0 0.0
    %268 = vmatprep.subr.mxu0 0.0
    %269 = vmatpush1.xpose.msra.mxu0 0.0
    %270 = vmatprep.subr.mxu0 0.0
    %271 = vmatpush1.xpose.msra.mxu0 0.0
    %272 = vmatprep.subr.mxu0 0.0
    %273 = vmatpush1.xpose.msra.mxu0 0.0
    %274 = vmatprep.subr.mxu0 0.0
    %275 = vmatpush1.xpose.msra.mxu0 0.0
    %276 = vmatprep.subr.mxu0 0.0
    %277 = vmatpush1.xpose.msra.mxu0 0.0
    %278 = vmatprep.subr.mxu0 0.0
    %279 = vmatpush1.xpose.msra.mxu0 0.0
    %280 = vmatprep.subr.mxu0 0.0
    %281 = vmatpush1.xpose.msra.mxu0 0.0
    %282 = vmatprep.subr.mxu0 0.0
    %283 = vmatpush1.xpose.msra.mxu0 0.0
    %284 = vmatprep.subr.mxu0 0.0
    %285 = vmatpush1.xpose.msra.mxu0 0.0
    %286 = vmatprep.subr.mxu0 0.0
    %287 = vmatpush1.xpose.msra.mxu0 0.0
    %288 = vmatprep.subr.mxu0 0.0
    %289 = vmatpush1.xpose.msra.mxu0 0.0
    %290 = vmatprep.subr.mxu0 0.0
    %291 = vmatpush1.xpose.msra.mxu0 0.0
    %292 = vmatprep.subr.mxu0 0.0
    %293 = vmatpush1.xpose.msra.mxu0 0.0
    %294 = vmatprep.subr.mxu0 0.0
    %295 = vmatpush1.xpose.msra.mxu0 0.0
    %296 = vmatprep.mubr.f32.mxu0 0.0
    %297 = vmatmul.mubr.f32.gmra.mrb[0].mxu0 %v228
    %v298 = vpop.f32.mrb[0].mxu0
    %v299 = vadd.f32 0.0, %v298
    %v300 = vpop.f32.mrb[0].mxu0
    %301 = vdwg.mxu0
    %vm302 = vcmask 64512
    %v303 = vsel %vm302, %v222, -inf
    %304 = vmax.xlane.f32.xlu0 %v303
    %v305 = vpop.xlane.xlu0 %304
    %v306 = vsel %vm302, %v299, -inf
    %307 = vmax.xlane.f32.xlu0 %v306
    %v308 = vpop.xlane.xlu0 %307
    %v309 = vsub.f32 %v222, %v305
    %v310 = vsub.f32 %v299, %v308
    %v311 = vmul.f32 %v309, 1.442695
    %v312 = vpow.pop %v311
    %v313 = vmul.f32 %v310, 1.442695
    %v314 = vpow.pop %v313
    %v315 = vsel %vm302, %v312, 0.0
    %316 = vadd.xlane.f32.xlu0 %v315
    %v317 = vpop.xlane.xlu0 %316
    %v318 = vsel %vm302, %v314, 0.0
    %319 = vadd.xlane.f32.xlu0 %v318
    %v320 = vpop.xlane.xlu0 %319
    %321 = vrot.lane.b32.xlu0 %v139, 64
    %v322 = vpop.permute.xlu0 %321
    %v325 = vsel %vm302, %v312, 0
    %327 = vmatprep.subr.mxu0 0.0
    %328 = vmatpush1.msra.mxu0 %v322
    %329 = vmatprep.subr.mxu0 0.0
    %330 = vmatpush1.msra.mxu0 0.0
    %331 = vmatprep.subr.mxu0 0.0
    %332 = vmatpush1.msra.mxu0 0.0
    %333 = vmatprep.subr.mxu0 0.0
    %334 = vmatpush1.msra.mxu0 0.0
    %335 = vmatprep.subr.mxu0 0.0
    %336 = vmatpush1.msra.mxu0 0.0
    %337 = vmatprep.subr.mxu0 0.0
    %338 = vmatpush1.msra.mxu0 0.0
    %339 = vmatprep.subr.mxu0 0.0
    %340 = vmatpush1.msra.mxu0 0.0
    %341 = vmatprep.subr.mxu0 0.0
    %342 = vmatpush1.msra.mxu0 0.0
    %343 = vmatprep.subr.mxu0 0.0
    %344 = vmatpush1.msra.mxu0 0.0
    %345 = vmatprep.subr.mxu0 0.0
    %346 = vmatpush1.msra.mxu0 0.0
    %347 = vmatprep.subr.mxu0 0.0
    %348 = vmatpush1.msra.mxu0 0.0
    %349 = vmatprep.subr.mxu0 0.0
    %350 = vmatpush1.msra.mxu0 0.0
    %351 = vmatprep.subr.mxu0 0.0
    %352 = vmatpush1.msra.mxu0 0.0
    %353 = vmatprep.subr.mxu0 0.0
    %354 = vmatpush1.msra.mxu0 0.0
    %355 = vmatprep.subr.mxu0 0.0
    %356 = vmatpush1.msra.mxu0 0.0
    %357 = vmatprep.subr.mxu0 0.0
    %358 = vmatpush1.msra.mxu0 0.0
    %359 = vmatprep.subr.mxu0 0.0
    %360 = vmatpush1.msra.mxu0 0.0
    %361 = vmatprep.subr.mxu0 0.0
    %362 = vmatpush1.msra.mxu0 0.0
    %363 = vmatprep.subr.mxu0 0.0
    %364 = vmatpush1.msra.mxu0 0.0
    %365 = vmatprep.subr.mxu0 0.0
    %366 = vmatpush1.msra.mxu0 0.0
    %367 = vmatprep.subr.mxu0 0.0
    %368 = vmatpush1.msra.mxu0 0.0
    %369 = vmatprep.subr.mxu0 0.0
    %370 = vmatpush1.msra.mxu0 0.0
    %371 = vmatprep.subr.mxu0 0.0
    %372 = vmatpush1.msra.mxu0 0.0
    %373 = vmatprep.subr.mxu0 0.0
    %374 = vmatpush1.msra.mxu0 0.0
    %375 = vmatprep.subr.mxu0 0.0
    %376 = vmatpush1.msra.mxu0 0.0
    %377 = vmatprep.subr.mxu0 0.0
    %378 = vmatpush1.msra.mxu0 0.0
    %379 = vmatprep.subr.mxu0 0.0
    %380 = vmatpush1.msra.mxu0 0.0
    %381 = vmatprep.subr.mxu0 0.0
    %382 = vmatpush1.msra.mxu0 0.0
    %383 = vmatprep.subr.mxu0 0.0
    %384 = vmatpush1.msra.mxu0 0.0
    %385 = vmatprep.subr.mxu0 0.0
    %386 = vmatpush1.msra.mxu0 0.0
    %387 = vmatprep.subr.mxu0 0.0
    %388 = vmatpush1.msra.mxu0 0.0
    %389 = vmatprep.subr.mxu0 0.0
    %390 = vmatpush1.msra.mxu0 0.0
    %391 = vmatprep.mubr.f32.mxu0 0.0
    %392 = vmatmul.mubr.f32.gmra.mrb[0].mxu0 %v325
    %v393 = vpop.f32.mrb[0].mxu0
    %v394 = vadd.f32 0.0, %v393
    %v395 = vpop.f32.mrb[0].mxu0
    %396 = vdwg.mxu0
    %397 = vrot.lane.b32.xlu0 %v144, 64
    %v398 = vpop.permute.xlu0 %397
    %v401 = vsel %vm302, %v314, 0
    %403 = vmatprep.subr.mxu0 0.0
    %404 = vmatpush1.msra.mxu0 %v398
    %405 = vmatprep.subr.mxu0 0.0
    %406 = vmatpush1.msra.mxu0 0.0
    %407 = vmatprep.subr.mxu0 0.0
    %408 = vmatpush1.msra.mxu0 0.0
    %409 = vmatprep.subr.mxu0 0.0
    %410 = vmatpush1.msra.mxu0 0.0
    %411 = vmatprep.subr.mxu0 0.0
    %412 = vmatpush1.msra.mxu0 0.0
    %413 = vmatprep.subr.mxu0 0.0
    %414 = vmatpush1.msra.mxu0 0.0
    %415 = vmatprep.subr.mxu0 0.0
    %416 = vmatpush1.msra.mxu0 0.0
    %417 = vmatprep.subr.mxu0 0.0
    %418 = vmatpush1.msra.mxu0 0.0
    %419 = vmatprep.subr.mxu0 0.0
    %420 = vmatpush1.msra.mxu0 0.0
    %421 = vmatprep.subr.mxu0 0.0
    %422 = vmatpush1.msra.mxu0 0.0
    %423 = vmatprep.subr.mxu0 0.0
    %424 = vmatpush1.msra.mxu0 0.0
    %425 = vmatprep.subr.mxu0 0.0
    %426 = vmatpush1.msra.mxu0 0.0
    %427 = vmatprep.subr.mxu0 0.0
    %428 = vmatpush1.msra.mxu0 0.0
    %429 = vmatprep.subr.mxu0 0.0
    %430 = vmatpush1.msra.mxu0 0.0
    %431 = vmatprep.subr.mxu0 0.0
    %432 = vmatpush1.msra.mxu0 0.0
    %433 = vmatprep.subr.mxu0 0.0
    %434 = vmatpush1.msra.mxu0 0.0
    %435 = vmatprep.subr.mxu0 0.0
    %436 = vmatpush1.msra.mxu0 0.0
    %437 = vmatprep.subr.mxu0 0.0
    %438 = vmatpush1.msra.mxu0 0.0
    %439 = vmatprep.subr.mxu0 0.0
    %440 = vmatpush1.msra.mxu0 0.0
    %441 = vmatprep.subr.mxu0 0.0
    %442 = vmatpush1.msra.mxu0 0.0
    %443 = vmatprep.subr.mxu0 0.0
    %444 = vmatpush1.msra.mxu0 0.0
    %445 = vmatprep.subr.mxu0 0.0
    %446 = vmatpush1.msra.mxu0 0.0
    %447 = vmatprep.subr.mxu0 0.0
    %448 = vmatpush1.msra.mxu0 0.0
    %449 = vmatprep.subr.mxu0 0.0
    %450 = vmatpush1.msra.mxu0 0.0
    %451 = vmatprep.subr.mxu0 0.0
    %452 = vmatpush1.msra.mxu0 0.0
    %453 = vmatprep.subr.mxu0 0.0
    %454 = vmatpush1.msra.mxu0 0.0
    %455 = vmatprep.subr.mxu0 0.0
    %456 = vmatpush1.msra.mxu0 0.0
    %457 = vmatprep.subr.mxu0 0.0
    %458 = vmatpush1.msra.mxu0 0.0
    %459 = vmatprep.subr.mxu0 0.0
    %460 = vmatpush1.msra.mxu0 0.0
    %461 = vmatprep.subr.mxu0 0.0
    %462 = vmatpush1.msra.mxu0 0.0
    %463 = vmatprep.subr.mxu0 0.0
    %464 = vmatpush1.msra.mxu0 0.0
    %465 = vmatprep.subr.mxu0 0.0
    %466 = vmatpush1.msra.mxu0 0.0
    %467 = vmatprep.mubr.f32.mxu0 0.0
    %468 = vmatmul.mubr.f32.gmra.mrb[0].mxu0 %v401
    %v469 = vpop.f32.mrb[0].mxu0
    %v470 = vadd.f32 0.0, %v469
    %v471 = vpop.f32.mrb[0].mxu0
    %472 = vdwg.mxu0
    %v473 = vrcp.pop %v317
    %v474 = vrcp.pop %v320
    %v475 = vmul.f32 %v394, %v473
    %v476 = vmul.f32 %v470, %v474
    %477 = vrot.lane.b32.xlu0 %v139, 124
    %v478 = vpop.permute.xlu0 %477
    %479 = vrot.lane.b32.xlu0 %v139, 92
    %v480 = vpop.permute.xlu0 %479
    %v481 = vsel %vm150, %v478, 0
    %v483 = vsel %vm150, %v480, 0
    %485 = vmatprep.subr.mxu0 0.0
    %486 = vmatpush1.xpose.msra.mxu0 %v483
    %487 = vmatprep.subr.mxu0 0.0
    %488 = vmatpush1.xpose.msra.mxu0 0.0
    %489 = vmatprep.subr.mxu0 0.0
    %490 = vmatpush1.xpose.msra.mxu0 0.0
    %491 = vmatprep.subr.mxu0 0.0
    %492 = vmatpush1.xpose.msra.mxu0 0.0
    %493 = vmatprep.subr.mxu0 0.0
    %494 = vmatpush1.xpose.msra.mxu0 0.0
    %495 = vmatprep.subr.mxu0 0.0
    %496 = vmatpush1.xpose.msra.mxu0 0.0
    %497 = vmatprep.subr.mxu0 0.0
    %498 = vmatpush1.xpose.msra.mxu0 0.0
    %499 = vmatprep.subr.mxu0 0.0
    %500 = vmatpush1.xpose.msra.mxu0 0.0
    %501 = vmatprep.subr.mxu0 0.0
    %502 = vmatpush1.xpose.msra.mxu0 0.0
    %503 = vmatprep.subr.mxu0 0.0
    %504 = vmatpush1.xpose.msra.mxu0 0.0
    %505 = vmatprep.subr.mxu0 0.0
    %506 = vmatpush1.xpose.msra.mxu0 0.0
    %507 = vmatprep.subr.mxu0 0.0
    %508 = vmatpush1.xpose.msra.mxu0 0.0
    %509 = vmatprep.subr.mxu0 0.0
    %510 = vmatpush1.xpose.msra.mxu0 0.0
    %511 = vmatprep.subr.mxu0 0.0
    %512 = vmatpush1.xpose.msra.mxu0 0.0
    %513 = vmatprep.subr.mxu0 0.0
    %514 = vmatpush1.xpose.msra.mxu0 0.0
    %515 = vmatprep.subr.mxu0 0.0
    %516 = vmatpush1.xpose.msra.mxu0 0.0
    %517 = vmatprep.subr.mxu0 0.0
    %518 = vmatpush1.xpose.msra.mxu0 0.0
    %519 = vmatprep.subr.mxu0 0.0
    %520 = vmatpush1.xpose.msra.mxu0 0.0
    %521 = vmatprep.subr.mxu0 0.0
    %522 = vmatpush1.xpose.msra.mxu0 0.0
    %523 = vmatprep.subr.mxu0 0.0
    %524 = vmatpush1.xpose.msra.mxu0 0.0
    %525 = vmatprep.subr.mxu0 0.0
    %526 = vmatpush1.xpose.msra.mxu0 0.0
    %527 = vmatprep.subr.mxu0 0.0
    %528 = vmatpush1.xpose.msra.mxu0 0.0
    %529 = vmatprep.subr.mxu0 0.0
    %530 = vmatpush1.xpose.msra.mxu0 0.0
    %531 = vmatprep.subr.mxu0 0.0
    %532 = vmatpush1.xpose.msra.mxu0 0.0
    %533 = vmatprep.subr.mxu0 0.0
    %534 = vmatpush1.xpose.msra.mxu0 0.0
    %535 = vmatprep.subr.mxu0 0.0
    %536 = vmatpush1.xpose.msra.mxu0 0.0
    %537 = vmatprep.subr.mxu0 0.0
    %538 = vmatpush1.xpose.msra.mxu0 0.0
    %539 = vmatprep.subr.mxu0 0.0
    %540 = vmatpush1.xpose.msra.mxu0 0.0
    %541 = vmatprep.subr.mxu0 0.0
    %542 = vmatpush1.xpose.msra.mxu0 0.0
    %543 = vmatprep.subr.mxu0 0.0
    %544 = vmatpush1.xpose.msra.mxu0 0.0
    %545 = vmatprep.subr.mxu0 0.0
    %546 = vmatpush1.xpose.msra.mxu0 0.0
    %547 = vmatprep.subr.mxu0 0.0
    %548 = vmatpush1.xpose.msra.mxu0 0.0
    %549 = vmatprep.mubr.f32.mxu0 0.0
    %550 = vmatmul.mubr.f32.gmra.mrb[0].mxu0 %v481
    %v551 = vpop.f32.mrb[0].mxu0
    %v552 = vadd.f32 0.0, %v551
    %v553 = vpop.f32.mrb[0].mxu0
    %554 = vdwg.mxu0
    %555 = vrot.lane.b32.xlu0 %v144, 124
    %v556 = vpop.permute.xlu0 %555
    %557 = vrot.lane.b32.xlu0 %v144, 92
    %v558 = vpop.permute.xlu0 %557
    %v559 = vsel %vm150, %v556, 0
    %v561 = vsel %vm150, %v558, 0
    %563 = vmatprep.subr.mxu0 0.0
    %564 = vmatpush1.xpose.msra.mxu0 %v561
    %565 = vmatprep.subr.mxu0 0.0
    %566 = vmatpush1.xpose.msra.mxu0 0.0
    %567 = vmatprep.subr.mxu0 0.0
    %568 = vmatpush1.xpose.msra.mxu0 0.0
    %569 = vmatprep.subr.mxu0 0.0
    %570 = vmatpush1.xpose.msra.mxu0 0.0
    %571 = vmatprep.subr.mxu0 0.0
    %572 = vmatpush1.xpose.msra.mxu0 0.0
    %573 = vmatprep.subr.mxu0 0.0
    %574 = vmatpush1.xpose.msra.mxu0 0.0
    %575 = vmatprep.subr.mxu0 0.0
    %576 = vmatpush1.xpose.msra.mxu0 0.0
    %577 = vmatprep.subr.mxu0 0.0
    %578 = vmatpush1.xpose.msra.mxu0 0.0
    %579 = vmatprep.subr.mxu0 0.0
    %580 = vmatpush1.xpose.msra.mxu0 0.0
    %581 = vmatprep.subr.mxu0 0.0
    %582 = vmatpush1.xpose.msra.mxu0 0.0
    %583 = vmatprep.subr.mxu0 0.0
    %584 = vmatpush1.xpose.msra.mxu0 0.0
    %585 = vmatprep.subr.mxu0 0.0
    %586 = vmatpush1.xpose.msra.mxu0 0.0
    %587 = vmatprep.subr.mxu0 0.0
    %588 = vmatpush1.xpose.msra.mxu0 0.0
    %589 = vmatprep.subr.mxu0 0.0
    %590 = vmatpush1.xpose.msra.mxu0 0.0
    %591 = vmatprep.subr.mxu0 0.0
    %592 = vmatpush1.xpose.msra.mxu0 0.0
    %593 = vmatprep.subr.mxu0 0.0
    %594 = vmatpush1.xpose.msra.mxu0 0.0
    %595 = vmatprep.subr.mxu0 0.0
    %596 = vmatpush1.xpose.msra.mxu0 0.0
    %597 = vmatprep.subr.mxu0 0.0
    %598 = vmatpush1.xpose.msra.mxu0 0.0
    %599 = vmatprep.subr.mxu0 0.0
    %600 = vmatpush1.xpose.msra.mxu0 0.0
    %601 = vmatprep.subr.mxu0 0.0
    %602 = vmatpush1.xpose.msra.mxu0 0.0
    %603 = vmatprep.subr.mxu0 0.0
    %604 = vmatpush1.xpose.msra.mxu0 0.0
    %605 = vmatprep.subr.mxu0 0.0
    %606 = vmatpush1.xpose.msra.mxu0 0.0
    %607 = vmatprep.subr.mxu0 0.0
    %608 = vmatpush1.xpose.msra.mxu0 0.0
    %609 = vmatprep.subr.mxu0 0.0
    %610 = vmatpush1.xpose.msra.mxu0 0.0
    %611 = vmatprep.subr.mxu0 0.0
    %612 = vmatpush1.xpose.msra.mxu0 0.0
    %613 = vmatprep.subr.mxu0 0.0
    %614 = vmatpush1.xpose.msra.mxu0 0.0
    %615 = vmatprep.subr.mxu0 0.0
    %616 = vmatpush1.xpose.msra.mxu0 0.0
    %617 = vmatprep.subr.mxu0 0.0
    %618 = vmatpush1.xpose.msra.mxu0 0.0
    %619 = vmatprep.subr.mxu0 0.0
    %620 = vmatpush1.xpose.msra.mxu0 0.0
    %621 = vmatprep.subr.mxu0 0.0
    %622 = vmatpush1.xpose.msra.mxu0 0.0
    %623 = vmatprep.subr.mxu0 0.0
    %624 = vmatpush1.xpose.msra.mxu0 0.0
    %625 = vmatprep.subr.mxu0 0.0
    %626 = vmatpush1.xpose.msra.mxu0 0.0
    %627 = vmatprep.mubr.f32.mxu0 0.0
    %628 = vmatmul.mubr.f32.gmra.mrb[0].mxu0 %v559
    %v629 = vpop.f32.mrb[0].mxu0
    %v630 = vadd.f32 0.0, %v629
    %v631 = vpop.f32.mrb[0].mxu0
    %632 = vdwg.mxu0
    %v633 = vsel %vm302, %v552, -inf
    %634 = vmax.xlane.f32.xlu0 %v633
    %v635 = vpop.xlane.xlu0 %634
    %v636 = vsel %vm302, %v630, -inf
    %637 = vmax.xlane.f32.xlu0 %v636
    %v638 = vpop.xlane.xlu0 %637
    %v639 = vsub.f32 %v552, %v635
    %v640 = vsub.f32 %v630, %v638
    %v641 = vmul.f32 %v639, 1.442695
    %v642 = vpow.pop %v641
    %v643 = vmul.f32 %v640, 1.442695
    %v644 = vpow.pop %v643
    %v645 = vsel %vm302, %v642, 0.0
    %646 = vadd.xlane.f32.xlu0 %v645
    %v647 = vpop.xlane.xlu0 %646
    %v648 = vsel %vm302, %v644, 0.0
    %649 = vadd.xlane.f32.xlu0 %v648
    %v650 = vpop.xlane.xlu0 %649
    %651 = vrot.lane.b32.xlu0 %v139, 60
    %v652 = vpop.permute.xlu0 %651
    %v655 = vsel %vm302, %v642, 0
    %657 = vmatprep.subr.mxu0 0.0
    %658 = vmatpush1.msra.mxu0 %v652
    %659 = vmatprep.subr.mxu0 0.0
    %660 = vmatpush1.msra.mxu0 0.0
    %661 = vmatprep.subr.mxu0 0.0
    %662 = vmatpush1.msra.mxu0 0.0
    %663 = vmatprep.subr.mxu0 0.0
    %664 = vmatpush1.msra.mxu0 0.0
    %665 = vmatprep.subr.mxu0 0.0
    %666 = vmatpush1.msra.mxu0 0.0
    %667 = vmatprep.subr.mxu0 0.0
    %668 = vmatpush1.msra.mxu0 0.0
    %669 = vmatprep.subr.mxu0 0.0
    %670 = vmatpush1.msra.mxu0 0.0
    %671 = vmatprep.subr.mxu0 0.0
    %672 = vmatpush1.msra.mxu0 0.0
    %673 = vmatprep.subr.mxu0 0.0
    %674 = vmatpush1.msra.mxu0 0.0
    %675 = vmatprep.subr.mxu0 0.0
    %676 = vmatpush1.msra.mxu0 0.0
    %677 = vmatprep.subr.mxu0 0.0
    %678 = vmatpush1.msra.mxu0 0.0
    %679 = vmatprep.subr.mxu0 0.0
    %680 = vmatpush1.msra.mxu0 0.0
    %681 = vmatprep.subr.mxu0 0.0
    %682 = vmatpush1.msra.mxu0 0.0
    %683 = vmatprep.subr.mxu0 0.0
    %684 = vmatpush1.msra.mxu0 0.0
    %685 = vmatprep.subr.mxu0 0.0
    %686 = vmatpush1.msra.mxu0 0.0
    %687 = vmatprep.subr.mxu0 0.0
    %688 = vmatpush1.msra.mxu0 0.0
    %689 = vmatprep.subr.mxu0 0.0
    %690 = vmatpush1.msra.mxu0 0.0
    %691 = vmatprep.subr.mxu0 0.0
    %692 = vmatpush1.msra.mxu0 0.0
    %693 = vmatprep.subr.mxu0 0.0
    %694 = vmatpush1.msra.mxu0 0.0
    %695 = vmatprep.subr.mxu0 0.0
    %696 = vmatpush1.msra.mxu0 0.0
    %697 = vmatprep.subr.mxu0 0.0
    %698 = vmatpush1.msra.mxu0 0.0
    %699 = vmatprep.subr.mxu0 0.0
    %700 = vmatpush1.msra.mxu0 0.0
    %701 = vmatprep.subr.mxu0 0.0
    %702 = vmatpush1.msra.mxu0 0.0
    %703 = vmatprep.subr.mxu0 0.0
    %704 = vmatpush1.msra.mxu0 0.0
    %705 = vmatprep.subr.mxu0 0.0
    %706 = vmatpush1.msra.mxu0 0.0
    %707 = vmatprep.subr.mxu0 0.0
    %708 = vmatpush1.msra.mxu0 0.0
    %709 = vmatprep.subr.mxu0 0.0
    %710 = vmatpush1.msra.mxu0 0.0
    %711 = vmatprep.subr.mxu0 0.0
    %712 = vmatpush1.msra.mxu0 0.0
    %713 = vmatprep.subr.mxu0 0.0
    %714 = vmatpush1.msra.mxu0 0.0
    %715 = vmatprep.subr.mxu0 0.0
    %716 = vmatpush1.msra.mxu0 0.0
    %717 = vmatprep.subr.mxu0 0.0
    %718 = vmatpush1.msra.mxu0 0.0
    %719 = vmatprep.subr.mxu0 0.0
    %720 = vmatpush1.msra.mxu0 0.0
    %721 = vmatprep.mubr.f32.mxu0 0.0
    %722 = vmatmul.mubr.f32.gmra.mrb[0].mxu0 %v655
    %v723 = vpop.f32.mrb[0].mxu0
    %v724 = vadd.f32 0.0, %v723
    %v725 = vpop.f32.mrb[0].mxu0
    %726 = vdwg.mxu0
    %727 = vrot.lane.b32.xlu0 %v144, 60
    %v728 = vpop.permute.xlu0 %727
    %v731 = vsel %vm302, %v644, 0
    %733 = vmatprep.subr.mxu0 0.0
    %734 = vmatpush1.msra.mxu0 %v728
    %735 = vmatprep.subr.mxu0 0.0
    %736 = vmatpush1.msra.mxu0 0.0
    %737 = vmatprep.subr.mxu0 0.0
    %738 = vmatpush1.msra.mxu0 0.0
    %739 = vmatprep.subr.mxu0 0.0
    %740 = vmatpush1.msra.mxu0 0.0
    %741 = vmatprep.subr.mxu0 0.0
    %742 = vmatpush1.msra.mxu0 0.0
    %743 = vmatprep.subr.mxu0 0.0
    %744 = vmatpush1.msra.mxu0 0.0
    %745 = vmatprep.subr.mxu0 0.0
    %746 = vmatpush1.msra.mxu0 0.0
    %747 = vmatprep.subr.mxu0 0.0
    %748 = vmatpush1.msra.mxu0 0.0
    %749 = vmatprep.subr.mxu0 0.0
    %750 = vmatpush1.msra.mxu0 0.0
    %751 = vmatprep.subr.mxu0 0.0
    %752 = vmatpush1.msra.mxu0 0.0
    %753 = vmatprep.subr.mxu0 0.0
    %754 = vmatpush1.msra.mxu0 0.0
    %755 = vmatprep.subr.mxu0 0.0
    %756 = vmatpush1.msra.mxu0 0.0
    %757 = vmatprep.subr.mxu0 0.0
    %758 = vmatpush1.msra.mxu0 0.0
    %759 = vmatprep.subr.mxu0 0.0
    %760 = vmatpush1.msra.mxu0 0.0
    %761 = vmatprep.subr.mxu0 0.0
    %762 = vmatpush1.msra.mxu0 0.0
    %763 = vmatprep.subr.mxu0 0.0
    %764 = vmatpush1.msra.mxu0 0.0
    %765 = vmatprep.subr.mxu0 0.0
    %766 = vmatpush1.msra.mxu0 0.0
    %767 = vmatprep.subr.mxu0 0.0
    %768 = vmatpush1.msra.mxu0 0.0
    %769 = vmatprep.subr.mxu0 0.0
    %770 = vmatpush1.msra.mxu0 0.0
    %771 = vmatprep.subr.mxu0 0.0
    %772 = vmatpush1.msra.mxu0 0.0
    %773 = vmatprep.subr.mxu0 0.0
    %774 = vmatpush1.msra.mxu0 0.0
    %775 = vmatprep.subr.mxu0 0.0
    %776 = vmatpush1.msra.mxu0 0.0
    %777 = vmatprep.subr.mxu0 0.0
    %778 = vmatpush1.msra.mxu0 0.0
    %779 = vmatprep.subr.mxu0 0.0
    %780 = vmatpush1.msra.mxu0 0.0
    %781 = vmatprep.subr.mxu0 0.0
    %782 = vmatpush1.msra.mxu0 0.0
    %783 = vmatprep.subr.mxu0 0.0
    %784 = vmatpush1.msra.mxu0 0.0
    %785 = vmatprep.subr.mxu0 0.0
    %786 = vmatpush1.msra.mxu0 0.0
    %787 = vmatprep.subr.mxu0 0.0
    %788 = vmatpush1.msra.mxu0 0.0
    %789 = vmatprep.subr.mxu0 0.0
    %790 = vmatpush1.msra.mxu0 0.0
    %791 = vmatprep.subr.mxu0 0.0
    %792 = vmatpush1.msra.mxu0 0.0
    %793 = vmatprep.subr.mxu0 0.0
    %794 = vmatpush1.msra.mxu0 0.0
    %795 = vmatprep.subr.mxu0 0.0
    %796 = vmatpush1.msra.mxu0 0.0
    %797 = vmatprep.mubr.f32.mxu0 0.0
    %798 = vmatmul.mubr.f32.gmra.mrb[0].mxu0 %v731
    %v799 = vpop.f32.mrb[0].mxu0
    %v800 = vadd.f32 0.0, %v799
    %v801 = vpop.f32.mrb[0].mxu0
    %802 = vdwg.mxu0
    %v803 = vrcp.pop %v647
    %v804 = vrcp.pop %v650
    %v805 = vmul.f32 %v724, %v803
    %v806 = vmul.f32 %v800, %v804
    %807 = vrot.lane.b32.xlu0 %v139, 120
    %v808 = vpop.permute.xlu0 %807
    %809 = vrot.lane.b32.xlu0 %v139, 88
    %v810 = vpop.permute.xlu0 %809
    %v811 = vsel %vm150, %v808, 0
    %v813 = vsel %vm150, %v810, 0
    %815 = vmatprep.subr.mxu0 0.0
    %816 = vmatpush1.xpose.msra.mxu0 %v813
    %817 = vmatprep.subr.mxu0 0.0
    %818 = vmatpush1.xpose.msra.mxu0 0.0
    %819 = vmatprep.subr.mxu0 0.0
    %820 = vmatpush1.xpose.msra.mxu0 0.0
    %821 = vmatprep.subr.mxu0 0.0
    %822 = vmatpush1.xpose.msra.mxu0 0.0
    %823 = vmatprep.subr.mxu0 0.0
    %824 = vmatpush1.xpose.msra.mxu0 0.0
    %825 = vmatprep.subr.mxu0 0.0
    %826 = vmatpush1.xpose.msra.mxu0 0.0
    %827 = vmatprep.subr.mxu0 0.0
    %828 = vmatpush1.xpose.msra.mxu0 0.0
    %829 = vmatprep.subr.mxu0 0.0
    %830 = vmatpush1.xpose.msra.mxu0 0.0
    %831 = vmatprep.subr.mxu0 0.0
    %832 = vmatpush1.xpose.msra.mxu0 0.0
    %833 = vmatprep.subr.mxu0 0.0
    %834 = vmatpush1.xpose.msra.mxu0 0.0
    %835 = vmatprep.subr.mxu0 0.0
    %836 = vmatpush1.xpose.msra.mxu0 0.0
    %837 = vmatprep.subr.mxu0 0.0
    %838 = vmatpush1.xpose.msra.mxu0 0.0
    %839 = vmatprep.subr.mxu0 0.0
    %840 = vmatpush1.xpose.msra.mxu0 0.0
    %841 = vmatprep.subr.mxu0 0.0
    %842 = vmatpush1.xpose.msra.mxu0 0.0
    %843 = vmatprep.subr.mxu0 0.0
    %844 = vmatpush1.xpose.msra.mxu0 0.0
    %845 = vmatprep.subr.mxu0 0.0
    %846 = vmatpush1.xpose.msra.mxu0 0.0
    %847 = vmatprep.subr.mxu0 0.0
    %848 = vmatpush1.xpose.msra.mxu0 0.0
    %849 = vmatprep.subr.mxu0 0.0
    %850 = vmatpush1.xpose.msra.mxu0 0.0
    %851 = vmatprep.subr.mxu0 0.0
    %852 = vmatpush1.xpose.msra.mxu0 0.0
    %853 = vmatprep.subr.mxu0 0.0
    %854 = vmatpush1.xpose.msra.mxu0 0.0
    %855 = vmatprep.subr.mxu0 0.0
    %856 = vmatpush1.xpose.msra.mxu0 0.0
    %857 = vmatprep.subr.mxu0 0.0
    %858 = vmatpush1.xpose.msra.mxu0 0.0
    %859 = vmatprep.subr.mxu0 0.0
    %860 = vmatpush1.xpose.msra.mxu0 0.0
    %861 = vmatprep.subr.mxu0 0.0
    %862 = vmatpush1.xpose.msra.mxu0 0.0
    %863 = vmatprep.subr.mxu0 0.0
    %864 = vmatpush1.xpose.msra.mxu0 0.0
    %865 = vmatprep.subr.mxu0 0.0
    %866 = vmatpush1.xpose.msra.mxu0 0.0
    %867 = vmatprep.subr.mxu0 0.0
    %868 = vmatpush1.xpose.msra.mxu0 0.0
    %869 = vmatprep.subr.mxu0 0.0
    %870 = vmatpush1.xpose.msra.mxu0 0.0
    %871 = vmatprep.subr.mxu0 0.0
    %872 = vmatpush1.xpose.msra.mxu0 0.0
    %873 = vmatprep.subr.mxu0 0.0
    %874 = vmatpush1.xpose.msra.mxu0 0.0
    %875 = vmatprep.subr.mxu0 0.0
    %876 = vmatpush1.xpose.msra.mxu0 0.0
    %877 = vmatprep.subr.mxu0 0.0
    %878 = vmatpush1.xpose.msra.mxu0 0.0
    %879 = vmatprep.mubr.f32.mxu0 0.0
    %880 = vmatmul.mubr.f32.gmra.mrb[0].mxu0 %v811
    %v881 = vpop.f32.mrb[0].mxu0
    %v882 = vadd.f32 0.0, %v881
    %v883 = vpop.f32.mrb[0].mxu0
    %884 = vdwg.mxu0
    %885 = vrot.lane.b32.xlu0 %v144, 120
    %v886 = vpop.permute.xlu0 %885
    %887 = vrot.lane.b32.xlu0 %v144, 88
    %v888 = vpop.permute.xlu0 %887
    %v889 = vsel %vm150, %v886, 0
    %v891 = vsel %vm150, %v888, 0
    %893 = vmatprep.subr.mxu0 0.0
    %894 = vmatpush1.xpose.msra.mxu0 %v891
    %895 = vmatprep.subr.mxu0 0.0
    %896 = vmatpush1.xpose.msra.mxu0 0.0
    %897 = vmatprep.subr.mxu0 0.0
    %898 = vmatpush1.xpose.msra.mxu0 0.0
    %899 = vmatprep.subr.mxu0 0.0
    %900 = vmatpush1.xpose.msra.mxu0 0.0
    %901 = vmatprep.subr.mxu0 0.0
    %902 = vmatpush1.xpose.msra.mxu0 0.0
    %903 = vmatprep.subr.mxu0 0.0
    %904 = vmatpush1.xpose.msra.mxu0 0.0
    %905 = vmatprep.subr.mxu0 0.0
    %906 = vmatpush1.xpose.msra.mxu0 0.0
    %907 = vmatprep.subr.mxu0 0.0
    %908 = vmatpush1.xpose.msra.mxu0 0.0
    %909 = vmatprep.subr.mxu0 0.0
    %910 = vmatpush1.xpose.msra.mxu0 0.0
    %911 = vmatprep.subr.mxu0 0.0
    %912 = vmatpush1.xpose.msra.mxu0 0.0
    %913 = vmatprep.subr.mxu0 0.0
    %914 = vmatpush1.xpose.msra.mxu0 0.0
    %915 = vmatprep.subr.mxu0 0.0
    %916 = vmatpush1.xpose.msra.mxu0 0.0
    %917 = vmatprep.subr.mxu0 0.0
    %918 = vmatpush1.xpose.msra.mxu0 0.0
    %919 = vmatprep.subr.mxu0 0.0
    %920 = vmatpush1.xpose.msra.mxu0 0.0
    %921 = vmatprep.subr.mxu0 0.0
    %922 = vmatpush1.xpose.msra.mxu0 0.0
    %923 = vmatprep.subr.mxu0 0.0
    %924 = vmatpush1.xpose.msra.mxu0 0.0
    %925 = vmatprep.subr.mxu0 0.0
    %926 = vmatpush1.xpose.msra.mxu0 0.0
    %927 = vmatprep.subr.mxu0 0.0
    %928 = vmatpush1.xpose.msra.mxu0 0.0
    %929 = vmatprep.subr.mxu0 0.0
    %930 = vmatpush1.xpose.msra.mxu0 0.0
    %931 = vmatprep.subr.mxu0 0.0
    %932 = vmatpush1.xpose.msra.mxu0 0.0
    %933 = vmatprep.subr.mxu0 0.0
    %934 = vmatpush1.xpose.msra.mxu0 0.0
    %935 = vmatprep.subr.mxu0 0.0
    %936 = vmatpush1.xpose.msra.mxu0 0.0
    %937 = vmatprep.subr.mxu0 0.0
    %938 = vmatpush1.xpose.msra.mxu0 0.0
    %939 = vmatprep.subr.mxu0 0.0
    %940 = vmatpush1.xpose.msra.mxu0 0.0
    %941 = vmatprep.subr.mxu0 0.0
    %942 = vmatpush1.xpose.msra.mxu0 0.0
    %943 = vmatprep.subr.mxu0 0.0
    %944 = vmatpush1.xpose.msra.mxu0 0.0
    %945 = vmatprep.subr.mxu0 0.0
    %946 = vmatpush1.xpose.msra.mxu0 0.0
    %947 = vmatprep.subr.mxu0 0.0
    %948 = vmatpush1.xpose.msra.mxu0 0.0
    %949 = vmatprep.subr.mxu0 0.0
    %950 = vmatpush1.xpose.msra.mxu0 0.0
    %951 = vmatprep.subr.mxu0 0.0
    %952 = vmatpush1.xpose.msra.mxu0 0.0
    %953 = vmatprep.subr.mxu0 0.0
    %954 = vmatpush1.xpose.msra.mxu0 0.0
    %955 = vmatprep.subr.mxu0 0.0
    %956 = vmatpush1.xpose.msra.mxu0 0.0
    %957 = vmatprep.mubr.f32.mxu0 0.0
    %958 = vmatmul.mubr.f32.gmra.mrb[0].mxu0 %v889
    %v959 = vpop.f32.mrb[0].mxu0
    %v960 = vadd.f32 0.0, %v959
    %v961 = vpop.f32.mrb[0].mxu0
    %962 = vdwg.mxu0
    %v963 = vsel %vm302, %v882, -inf
    %964 = vmax.xlane.f32.xlu0 %v963
    %v965 = vpop.xlane.xlu0 %964
    %v966 = vsel %vm302, %v960, -inf
    %967 = vmax.xlane.f32.xlu0 %v966
    %v968 = vpop.xlane.xlu0 %967
    %v969 = vsub.f32 %v882, %v965
    %v970 = vsub.f32 %v960, %v968
    %v971 = vmul.f32 %v969, 1.442695
    %v972 = vpow.pop %v971
    %v973 = vmul.f32 %v970, 1.442695
    %v974 = vpow.pop %v973
    %v975 = vsel %vm302, %v972, 0.0
    %976 = vadd.xlane.f32.xlu0 %v975
    %v977 = vpop.xlane.xlu0 %976
    %v978 = vsel %vm302, %v974, 0.0
    %979 = vadd.xlane.f32.xlu0 %v978
    %v980 = vpop.xlane.xlu0 %979
    %981 = vrot.lane.b32.xlu0 %v139, 56
    %v982 = vpop.permute.xlu0 %981
    %v985 = vsel %vm302, %v972, 0
    %987 = vmatprep.subr.mxu0 0.0
    %988 = vmatpush1.msra.mxu0 %v982
    %989 = vmatprep.subr.mxu0 0.0
    %990 = vmatpush1.msra.mxu0 0.0
    %991 = vmatprep.subr.mxu0 0.0
    %992 = vmatpush1.msra.mxu0 0.0
    %993 = vmatprep.subr.mxu0 0.0
    %994 = vmatpush1.msra.mxu0 0.0
    %995 = vmatprep.subr.mxu0 0.0
    %996 = vmatpush1.msra.mxu0 0.0
    %997 = vmatprep.subr.mxu0 0.0
    %998 = vmatpush1.msra.mxu0 0.0
    %999 = vmatprep.subr.mxu0 0.0
    %1000 = vmatpush1.msra.mxu0 0.0
    %1001 = vmatprep.subr.mxu0 0.0
    %1002 = vmatpush1.msra.mxu0 0.0
    %1003 = vmatprep.subr.mxu0 0.0
    %1004 = vmatpush1.msra.mxu0 0.0
    %1005 = vmatprep.subr.mxu0 0.0
    %1006 = vmatpush1.msra.mxu0 0.0
    %1007 = vmatprep.subr.mxu0 0.0
    %1008 = vmatpush1.msra.mxu0 0.0
    %1009 = vmatprep.subr.mxu0 0.0
    %1010 = vmatpush1.msra.mxu0 0.0
    %1011 = vmatprep.subr.mxu0 0.0
    %1012 = vmatpush1.msra.mxu0 0.0
    %1013 = vmatprep.subr.mxu0 0.0
    %1014 = vmatpush1.msra.mxu0 0.0
    %1015 = vmatprep.subr.mxu0 0.0
    %1016 = vmatpush1.msra.mxu0 0.0
    %1017 = vmatprep.subr.mxu0 0.0
    %1018 = vmatpush1.msra.mxu0 0.0
    %1019 = vmatprep.subr.mxu0 0.0
    %1020 = vmatpush1.msra.mxu0 0.0
    %1021 = vmatprep.subr.mxu0 0.0
    %1022 = vmatpush1.msra.mxu0 0.0
    %1023 = vmatprep.subr.mxu0 0.0
    %1024 = vmatpush1.msra.mxu0 0.0
    %1025 = vmatprep.subr.mxu0 0.0
    %1026 = vmatpush1.msra.mxu0 0.0
    %1027 = vmatprep.subr.mxu0 0.0
    %1028 = vmatpush1.msra.mxu0 0.0
    %1029 = vmatprep.subr.mxu0 0.0
    %1030 = vmatpush1.msra.mxu0 0.0
    %1031 = vmatprep.subr.mxu0 0.0
    %1032 = vmatpush1.msra.mxu0 0.0
    %1033 = vmatprep.subr.mxu0 0.0
    %1034 = vmatpush1.msra.mxu0 0.0
    %1035 = vmatprep.subr.mxu0 0.0
    %1036 = vmatpush1.msra.mxu0 0.0
    %1037 = vmatprep.subr.mxu0 0.0
    %1038 = vmatpush1.msra.mxu0 0.0
    %1039 = vmatprep.subr.mxu0 0.0
    %1040 = vmatpush1.msra.mxu0 0.0
    %1041 = vmatprep.subr.mxu0 0.0
    %1042 = vmatpush1.msra.mxu0 0.0
    %1043 = vmatprep.subr.mxu0 0.0
    %1044 = vmatpush1.msra.mxu0 0.0
    %1045 = vmatprep.subr.mxu0 0.0
    %1046 = vmatpush1.msra.mxu0 0.0
    %1047 = vmatprep.subr.mxu0 0.0
    %1048 = vmatpush1.msra.mxu0 0.0
    %1049 = vmatprep.subr.mxu0 0.0
    %1050 = vmatpush1.msra.mxu0 0.0
    %1051 = vmatprep.mubr.f32.mxu0 0.0
    %1052 = vmatmul.mubr.f32.gmra.mrb[0].mxu0 %v985
    %v1053 = vpop.f32.mrb[0].mxu0
    %v1054 = vadd.f32 0.0, %v1053
    %v1055 = vpop.f32.mrb[0].mxu0
    %1056 = vdwg.mxu0
    %1057 = vrot.lane.b32.xlu0 %v144, 56
    %v1058 = vpop.permute.xlu0 %1057
    %v1061 = vsel %vm302, %v974, 0
    %1063 = vmatprep.subr.mxu0 0.0
    %1064 = vmatpush1.msra.mxu0 %v1058
    %1065 = vmatprep.subr.mxu0 0.0
    %1066 = vmatpush1.msra.mxu0 0.0
    %1067 = vmatprep.subr.mxu0 0.0
    %1068 = vmatpush1.msra.mxu0 0.0
    %1069 = vmatprep.subr.mxu0 0.0
    %1070 = vmatpush1.msra.mxu0 0.0
    %1071 = vmatprep.subr.mxu0 0.0
    %1072 = vmatpush1.msra.mxu0 0.0
    %1073 = vmatprep.subr.mxu0 0.0
    %1074 = vmatpush1.msra.mxu0 0.0
    %1075 = vmatprep.subr.mxu0 0.0
    %1076 = vmatpush1.msra.mxu0 0.0
    %1077 = vmatprep.subr.mxu0 0.0
    %1078 = vmatpush1.msra.mxu0 0.0
    %1079 = vmatprep.subr.mxu0 0.0
    %1080 = vmatpush1.msra.mxu0 0.0
    %1081 = vmatprep.subr.mxu0 0.0
    %1082 = vmatpush1.msra.mxu0 0.0
    %1083 = vmatprep.subr.mxu0 0.0
    %1084 = vmatpush1.msra.mxu0 0.0
    %1085 = vmatprep.subr.mxu0 0.0
    %1086 = vmatpush1.msra.mxu0 0.0
    %1087 = vmatprep.subr.mxu0 0.0
    %1088 = vmatpush1.msra.mxu0 0.0
    %1089 = vmatprep.subr.mxu0 0.0
    %1090 = vmatpush1.msra.mxu0 0.0
    %1091 = vmatprep.subr.mxu0 0.0
    %1092 = vmatpush1.msra.mxu0 0.0
    %1093 = vmatprep.subr.mxu0 0.0
    %1094 = vmatpush1.msra.mxu0 0.0
    %1095 = vmatprep.subr.mxu0 0.0
    %1096 = vmatpush1.msra.mxu0 0.0
    %1097 = vmatprep.subr.mxu0 0.0
    %1098 = vmatpush1.msra.mxu0 0.0
    %1099 = vmatprep.subr.mxu0 0.0
    %1100 = vmatpush1.msra.mxu0 0.0
    %1101 = vmatprep.subr.mxu0 0.0
    %1102 = vmatpush1.msra.mxu0 0.0
    %1103 = vmatprep.subr.mxu0 0.0
    %1104 = vmatpush1.msra.mxu0 0.0
    %1105 = vmatprep.subr.mxu0 0.0
    %1106 = vmatpush1.msra.mxu0 0.0
    %1107 = vmatprep.subr.mxu0 0.0
    %1108 = vmatpush1.msra.mxu0 0.0
    %1109 = vmatprep.subr.mxu0 0.0
    %1110 = vmatpush1.msra.mxu0 0.0
    %1111 = vmatprep.subr.mxu0 0.0
    %1112 = vmatpush1.msra.mxu0 0.0
    %1113 = vmatprep.subr.mxu0 0.0
    %1114 = vmatpush1.msra.mxu0 0.0
    %1115 = vmatprep.subr.mxu0 0.0
    %1116 = vmatpush1.msra.mxu0 0.0
    %1117 = vmatprep.subr.mxu0 0.0
    %1118 = vmatpush1.msra.mxu0 0.0
    %1119 = vmatprep.subr.mxu0 0.0
    %1120 = vmatpush1.msra.mxu0 0.0
    %1121 = vmatprep.subr.mxu0 0.0
    %1122 = vmatpush1.msra.mxu0 0.0
    %1123 = vmatprep.subr.mxu0 0.0
    %1124 = vmatpush1.msra.mxu0 0.0
    %1125 = vmatprep.subr.mxu0 0.0
    %1126 = vmatpush1.msra.mxu0 0.0
    %1127 = vmatprep.mubr.f32.mxu0 0.0
    %1128 = vmatmul.mubr.f32.gmra.mrb[0].mxu0 %v1061
    %v1129 = vpop.f32.mrb[0].mxu0
    %v1130 = vadd.f32 0.0, %v1129
    %v1131 = vpop.f32.mrb[0].mxu0
    %1132 = vdwg.mxu0
    %v1133 = vrcp.pop %v977
    %v1134 = vrcp.pop %v980
    %v1135 = vmul.f32 %v1054, %v1133
    %v1136 = vmul.f32 %v1130, %v1134
    %1137 = vrot.lane.b32.xlu0 %v139, 116
    %v1138 = vpop.permute.xlu0 %1137
    %1139 = vrot.lane.b32.xlu0 %v139, 84
    %v1140 = vpop.permute.xlu0 %1139
    %v1141 = vsel %vm150, %v1138, 0
    %v1143 = vsel %vm150, %v1140, 0
    %1145 = vmatprep.subr.mxu0 0.0
    %1146 = vmatpush1.xpose.msra.mxu0 %v1143
    %1147 = vmatprep.subr.mxu0 0.0
    %1148 = vmatpush1.xpose.msra.mxu0 0.0
    %1149 = vmatprep.subr.mxu0 0.0
    %1150 = vmatpush1.xpose.msra.mxu0 0.0
    %1151 = vmatprep.subr.mxu0 0.0
    %1152 = vmatpush1.xpose.msra.mxu0 0.0
    %1153 = vmatprep.subr.mxu0 0.0
    %1154 = vmatpush1.xpose.msra.mxu0 0.0
    %1155 = vmatprep.subr.mxu0 0.0
    %1156 = vmatpush1.xpose.msra.mxu0 0.0
    %1157 = vmatprep.subr.mxu0 0.0
    %1158 = vmatpush1.xpose.msra.mxu0 0.0
    %1159 = vmatprep.subr.mxu0 0.0
    %1160 = vmatpush1.xpose.msra.mxu0 0.0
    %1161 = vmatprep.subr.mxu0 0.0
    %1162 = vmatpush1.xpose.msra.mxu0 0.0
    %1163 = vmatprep.subr.mxu0 0.0
    %1164 = vmatpush1.xpose.msra.mxu0 0.0
    %1165 = vmatprep.subr.mxu0 0.0
    %1166 = vmatpush1.xpose.msra.mxu0 0.0
    %1167 = vmatprep.subr.mxu0 0.0
    %1168 = vmatpush1.xpose.msra.mxu0 0.0
    %1169 = vmatprep.subr.mxu0 0.0
    %1170 = vmatpush1.xpose.msra.mxu0 0.0
    %1171 = vmatprep.subr.mxu0 0.0
    %1172 = vmatpush1.xpose.msra.mxu0 0.0
    %1173 = vmatprep.subr.mxu0 0.0
    %1174 = vmatpush1.xpose.msra.mxu0 0.0
    %1175 = vmatprep.subr.mxu0 0.0
    %1176 = vmatpush1.xpose.msra.mxu0 0.0
    %1177 = vmatprep.subr.mxu0 0.0
    %1178 = vmatpush1.xpose.msra.mxu0 0.0
    %1179 = vmatprep.subr.mxu0 0.0
    %1180 = vmatpush1.xpose.msra.mxu0 0.0
    %1181 = vmatprep.subr.mxu0 0.0
    %1182 = vmatpush1.xpose.msra.mxu0 0.0
    %1183 = vmatprep.subr.mxu0 0.0
    %1184 = vmatpush1.xpose.msra.mxu0 0.0
    %1185 = vmatprep.subr.mxu0 0.0
    %1186 = vmatpush1.xpose.msra.mxu0 0.0
    %1187 = vmatprep.subr.mxu0 0.0
    %1188 = vmatpush1.xpose.msra.mxu0 0.0
    %1189 = vmatprep.subr.mxu0 0.0
    %1190 = vmatpush1.xpose.msra.mxu0 0.0
    %1191 = vmatprep.subr.mxu0 0.0
    %1192 = vmatpush1.xpose.msra.mxu0 0.0
    %1193 = vmatprep.subr.mxu0 0.0
    %1194 = vmatpush1.xpose.msra.mxu0 0.0
    %1195 = vmatprep.subr.mxu0 0.0
    %1196 = vmatpush1.xpose.msra.mxu0 0.0
    %1197 = vmatprep.subr.mxu0 0.0
    %1198 = vmatpush1.xpose.msra.mxu0 0.0
    %1199 = vmatprep.subr.mxu0 0.0
    %1200 = vmatpush1.xpose.msra.mxu0 0.0
    %1201 = vmatprep.subr.mxu0 0.0
    %1202 = vmatpush1.xpose.msra.mxu0 0.0
    %1203 = vmatprep.subr.mxu0 0.0
    %1204 = vmatpush1.xpose.msra.mxu0 0.0
    %1205 = vmatprep.subr.mxu0 0.0
    %1206 = vmatpush1.xpose.msra.mxu0 0.0
    %1207 = vmatprep.subr.mxu0 0.0
    %1208 = vmatpush1.xpose.msra.mxu0 0.0
    %1209 = vmatprep.mubr.f32.mxu0 0.0
    %1210 = vmatmul.mubr.f32.gmra.mrb[0].mxu0 %v1141
    %v1211 = vpop.f32.mrb[0].mxu0
    %v1212 = vadd.f32 0.0, %v1211
    %v1213 = vpop.f32.mrb[0].mxu0
    %1214 = vdwg.mxu0
    %1215 = vrot.lane.b32.xlu0 %v144, 116
    %v1216 = vpop.permute.xlu0 %1215
    %1217 = vrot.lane.b32.xlu0 %v144, 84
    %v1218 = vpop.permute.xlu0 %1217
    %v1219 = vsel %vm150, %v1216, 0
    %v1221 = vsel %vm150, %v1218, 0
    %1223 = vmatprep.subr.mxu0 0.0
    %1224 = vmatpush1.xpose.msra.mxu0 %v1221
    %1225 = vmatprep.subr.mxu0 0.0
    %1226 = vmatpush1.xpose.msra.mxu0 0.0
    %1227 = vmatprep.subr.mxu0 0.0
    %1228 = vmatpush1.xpose.msra.mxu0 0.0
    %1229 = vmatprep.subr.mxu0 0.0
    %1230 = vmatpush1.xpose.msra.mxu0 0.0
    %1231 = vmatprep.subr.mxu0 0.0
    %1232 = vmatpush1.xpose.msra.mxu0 0.0
    %1233 = vmatprep.subr.mxu0 0.0
    %1234 = vmatpush1.xpose.msra.mxu0 0.0
    %1235 = vmatprep.subr.mxu0 0.0
    %1236 = vmatpush1.xpose.msra.mxu0 0.0
    %1237 = vmatprep.subr.mxu0 0.0
    %1238 = vmatpush1.xpose.msra.mxu0 0.0
    %1239 = vmatprep.subr.mxu0 0.0
    %1240 = vmatpush1.xpose.msra.mxu0 0.0
    %1241 = vmatprep.subr.mxu0 0.0
    %1242 = vmatpush1.xpose.msra.mxu0 0.0
    %1243 = vmatprep.subr.mxu0 0.0
    %1244 = vmatpush1.xpose.msra.mxu0 0.0
    %1245 = vmatprep.subr.mxu0 0.0
    %1246 = vmatpush1.xpose.msra.mxu0 0.0
    %1247 = vmatprep.subr.mxu0 0.0
    %1248 = vmatpush1.xpose.msra.mxu0 0.0
    %1249 = vmatprep.subr.mxu0 0.0
    %1250 = vmatpush1.xpose.msra.mxu0 0.0
    %1251 = vmatprep.subr.mxu0 0.0
    %1252 = vmatpush1.xpose.msra.mxu0 0.0
    %1253 = vmatprep.subr.mxu0 0.0
    %1254 = vmatpush1.xpose.msra.mxu0 0.0
    %1255 = vmatprep.subr.mxu0 0.0
    %1256 = vmatpush1.xpose.msra.mxu0 0.0
    %1257 = vmatprep.subr.mxu0 0.0
    %1258 = vmatpush1.xpose.msra.mxu0 0.0
    %1259 = vmatprep.subr.mxu0 0.0
    %1260 = vmatpush1.xpose.msra.mxu0 0.0
    %1261 = vmatprep.subr.mxu0 0.0
    %1262 = vmatpush1.xpose.msra.mxu0 0.0
    %1263 = vmatprep.subr.mxu0 0.0
    %1264 = vmatpush1.xpose.msra.mxu0 0.0
    %1265 = vmatprep.subr.mxu0 0.0
    %1266 = vmatpush1.xpose.msra.mxu0 0.0
    %1267 = vmatprep.subr.mxu0 0.0
    %1268 = vmatpush1.xpose.msra.mxu0 0.0
    %1269 = vmatprep.subr.mxu0 0.0
    %1270 = vmatpush1.xpose.msra.mxu0 0.0
    %1271 = vmatprep.subr.mxu0 0.0
    %1272 = vmatpush1.xpose.msra.mxu0 0.0
    %1273 = vmatprep.subr.mxu0 0.0
    %1274 = vmatpush1.xpose.msra.mxu0 0.0
    %1275 = vmatprep.subr.mxu0 0.0
    %1276 = vmatpush1.xpose.msra.mxu0 0.0
    %1277 = vmatprep.subr.mxu0 0.0
    %1278 = vmatpush1.xpose.msra.mxu0 0.0
    %1279 = vmatprep.subr.mxu0 0.0
    %1280 = vmatpush1.xpose.msra.mxu0 0.0
    %1281 = vmatprep.subr.mxu0 0.0
    %1282 = vmatpush1.xpose.msra.mxu0 0.0
    %1283 = vmatprep.subr.mxu0 0.0
    %1284 = vmatpush1.xpose.msra.mxu0 0.0
    %1285 = vmatprep.subr.mxu0 0.0
    %1286 = vmatpush1.xpose.msra.mxu0 0.0
    %1287 = vmatprep.mubr.f32.mxu0 0.0
    %1288 = vmatmul.mubr.f32.gmra.mrb[0].mxu0 %v1219
    %v1289 = vpop.f32.mrb[0].mxu0
    %v1290 = vadd.f32 0.0, %v1289
    %v1291 = vpop.f32.mrb[0].mxu0
    %1292 = vdwg.mxu0
    %v1293 = vsel %vm302, %v1212, -inf
    %1294 = vmax.xlane.f32.xlu0 %v1293
    %v1295 = vpop.xlane.xlu0 %1294
    %v1296 = vsel %vm302, %v1290, -inf
    %1297 = vmax.xlane.f32.xlu0 %v1296
    %v1298 = vpop.xlane.xlu0 %1297
    %v1299 = vsub.f32 %v1212, %v1295
    %v1300 = vsub.f32 %v1290, %v1298
    %v1301 = vmul.f32 %v1299, 1.442695
    %v1302 = vpow.pop %v1301
    %v1303 = vmul.f32 %v1300, 1.442695
    %v1304 = vpow.pop %v1303
    %v1305 = vsel %vm302, %v1302, 0.0
    %1306 = vadd.xlane.f32.xlu0 %v1305
    %v1307 = vpop.xlane.xlu0 %1306
    %v1308 = vsel %vm302, %v1304, 0.0
    %1309 = vadd.xlane.f32.xlu0 %v1308
    %v1310 = vpop.xlane.xlu0 %1309
    %1311 = vrot.lane.b32.xlu0 %v139, 52
    %v1312 = vpop.permute.xlu0 %1311
    %v1315 = vsel %vm302, %v1302, 0
    %1317 = vmatprep.subr.mxu0 0.0
    %1318 = vmatpush1.msra.mxu0 %v1312
    %1319 = vmatprep.subr.mxu0 0.0
    %1320 = vmatpush1.msra.mxu0 0.0
    %1321 = vmatprep.subr.mxu0 0.0
    %1322 = vmatpush1.msra.mxu0 0.0
    %1323 = vmatprep.subr.mxu0 0.0
    %1324 = vmatpush1.msra.mxu0 0.0
    %1325 = vmatprep.subr.mxu0 0.0
    %1326 = vmatpush1.msra.mxu0 0.0
    %1327 = vmatprep.subr.mxu0 0.0
    %1328 = vmatpush1.msra.mxu0 0.0
    %1329 = vmatprep.subr.mxu0 0.0
    %1330 = vmatpush1.msra.mxu0 0.0
    %1331 = vmatprep.subr.mxu0 0.0
    %1332 = vmatpush1.msra.mxu0 0.0
    %1333 = vmatprep.subr.mxu0 0.0
    %1334 = vmatpush1.msra.mxu0 0.0
    %1335 = vmatprep.subr.mxu0 0.0
    %1336 = vmatpush1.msra.mxu0 0.0
    %1337 = vmatprep.subr.mxu0 0.0
    %1338 = vmatpush1.msra.mxu0 0.0
    %1339 = vmatprep.subr.mxu0 0.0
    %1340 = vmatpush1.msra.mxu0 0.0
    %1341 = vmatprep.subr.mxu0 0.0
    %1342 = vmatpush1.msra.mxu0 0.0
    %1343 = vmatprep.subr.mxu0 0.0
    %1344 = vmatpush1.msra.mxu0 0.0
    %1345 = vmatprep.subr.mxu0 0.0
    %1346 = vmatpush1.msra.mxu0 0.0
    %1347 = vmatprep.subr.mxu0 0.0
    %1348 = vmatpush1.msra.mxu0 0.0
    %1349 = vmatprep.subr.mxu0 0.0
    %1350 = vmatpush1.msra.mxu0 0.0
    %1351 = vmatprep.subr.mxu0 0.0
    %1352 = vmatpush1.msra.mxu0 0.0
    %1353 = vmatprep.subr.mxu0 0.0
    %1354 = vmatpush1.msra.mxu0 0.0
    %1355 = vmatprep.subr.mxu0 0.0
    %1356 = vmatpush1.msra.mxu0 0.0
    %1357 = vmatprep.subr.mxu0 0.0
    %1358 = vmatpush1.msra.mxu0 0.0
    %1359 = vmatprep.subr.mxu0 0.0
    %1360 = vmatpush1.msra.mxu0 0.0
    %1361 = vmatprep.subr.mxu0 0.0
    %1362 = vmatpush1.msra.mxu0 0.0
    %1363 = vmatprep.subr.mxu0 0.0
    %1364 = vmatpush1.msra.mxu0 0.0
    %1365 = vmatprep.subr.mxu0 0.0
    %1366 = vmatpush1.msra.mxu0 0.0
    %1367 = vmatprep.subr.mxu0 0.0
    %1368 = vmatpush1.msra.mxu0 0.0
    %1369 = vmatprep.subr.mxu0 0.0
    %1370 = vmatpush1.msra.mxu0 0.0
    %1371 = vmatprep.subr.mxu0 0.0
    %1372 = vmatpush1.msra.mxu0 0.0
    %1373 = vmatprep.subr.mxu0 0.0
    %1374 = vmatpush1.msra.mxu0 0.0
    %1375 = vmatprep.subr.mxu0 0.0
    %1376 = vmatpush1.msra.mxu0 0.0
    %1377 = vmatprep.subr.mxu0 0.0
    %1378 = vmatpush1.msra.mxu0 0.0
    %1379 = vmatprep.subr.mxu0 0.0
    %1380 = vmatpush1.msra.mxu0 0.0
    %1381 = vmatprep.mubr.f32.mxu0 0.0
    %1382 = vmatmul.mubr.f32.gmra.mrb[0].mxu0 %v1315
    %v1383 = vpop.f32.mrb[0].mxu0
    %v1384 = vadd.f32 0.0, %v1383
    %v1385 = vpop.f32.mrb[0].mxu0
    %1386 = vdwg.mxu0
    %1387 = vrot.lane.b32.xlu0 %v144, 52
    %v1388 = vpop.permute.xlu0 %1387
    %v1391 = vsel %vm302, %v1304, 0
    %1393 = vmatprep.subr.mxu0 0.0
    %1394 = vmatpush1.msra.mxu0 %v1388
    %1395 = vmatprep.subr.mxu0 0.0
    %1396 = vmatpush1.msra.mxu0 0.0
    %1397 = vmatprep.subr.mxu0 0.0
    %1398 = vmatpush1.msra.mxu0 0.0
    %1399 = vmatprep.subr.mxu0 0.0
    %1400 = vmatpush1.msra.mxu0 0.0
    %1401 = vmatprep.subr.mxu0 0.0
    %1402 = vmatpush1.msra.mxu0 0.0
    %1403 = vmatprep.subr.mxu0 0.0
    %1404 = vmatpush1.msra.mxu0 0.0
    %1405 = vmatprep.subr.mxu0 0.0
    %1406 = vmatpush1.msra.mxu0 0.0
    %1407 = vmatprep.subr.mxu0 0.0
    %1408 = vmatpush1.msra.mxu0 0.0
    %1409 = vmatprep.subr.mxu0 0.0
    %1410 = vmatpush1.msra.mxu0 0.0
    %1411 = vmatprep.subr.mxu0 0.0
    %1412 = vmatpush1.msra.mxu0 0.0
    %1413 = vmatprep.subr.mxu0 0.0
    %1414 = vmatpush1.msra.mxu0 0.0
    %1415 = vmatprep.subr.mxu0 0.0
    %1416 = vmatpush1.msra.mxu0 0.0
    %1417 = vmatprep.subr.mxu0 0.0
    %1418 = vmatpush1.msra.mxu0 0.0
    %1419 = vmatprep.subr.mxu0 0.0
    %1420 = vmatpush1.msra.mxu0 0.0
    %1421 = vmatprep.subr.mxu0 0.0
    %1422 = vmatpush1.msra.mxu0 0.0
    %1423 = vmatprep.subr.mxu0 0.0
    %1424 = vmatpush1.msra.mxu0 0.0
    %1425 = vmatprep.subr.mxu0 0.0
    %1426 = vmatpush1.msra.mxu0 0.0
    %1427 = vmatprep.subr.mxu0 0.0
    %1428 = vmatpush1.msra.mxu0 0.0
    %1429 = vmatprep.subr.mxu0 0.0
    %1430 = vmatpush1.msra.mxu0 0.0
    %1431 = vmatprep.subr.mxu0 0.0
    %1432 = vmatpush1.msra.mxu0 0.0
    %1433 = vmatprep.subr.mxu0 0.0
    %1434 = vmatpush1.msra.mxu0 0.0
    %1435 = vmatprep.subr.mxu0 0.0
    %1436 = vmatpush1.msra.mxu0 0.0
    %1437 = vmatprep.subr.mxu0 0.0
    %1438 = vmatpush1.msra.mxu0 0.0
    %1439 = vmatprep.subr.mxu0 0.0
    %1440 = vmatpush1.msra.mxu0 0.0
    %1441 = vmatprep.subr.mxu0 0.0
    %1442 = vmatpush1.msra.mxu0 0.0
    %1443 = vmatprep.subr.mxu0 0.0
    %1444 = vmatpush1.msra.mxu0 0.0
    %1445 = vmatprep.subr.mxu0 0.0
    %1446 = vmatpush1.msra.mxu0 0.0
    %1447 = vmatprep.subr.mxu0 0.0
    %1448 = vmatpush1.msra.mxu0 0.0
    %1449 = vmatprep.subr.mxu0 0.0
    %1450 = vmatpush1.msra.mxu0 0.0
    %1451 = vmatprep.subr.mxu0 0.0
    %1452 = vmatpush1.msra.mxu0 0.0
    %1453 = vmatprep.subr.mxu0 0.0
    %1454 = vmatpush1.msra.mxu0 0.0
    %1455 = vmatprep.subr.mxu0 0.0
    %1456 = vmatpush1.msra.mxu0 0.0
    %1457 = vmatprep.mubr.f32.mxu0 0.0
    %1458 = vmatmul.mubr.f32.gmra.mrb[0].mxu0 %v1391
    %v1459 = vpop.f32.mrb[0].mxu0
    %v1460 = vadd.f32 0.0, %v1459
    %v1461 = vpop.f32.mrb[0].mxu0
    %1462 = vdwg.mxu0
    %v1463 = vrcp.pop %v1307
    %v1464 = vrcp.pop %v1310
    %v1465 = vmul.f32 %v1384, %v1463
    %v1466 = vmul.f32 %v1460, %v1464
    %1467 = vrot.lane.b32.xlu0 %v139, 112
    %v1468 = vpop.permute.xlu0 %1467
    %1469 = vrot.lane.b32.xlu0 %v139, 80
    %v1470 = vpop.permute.xlu0 %1469
    %v1471 = vsel %vm150, %v1468, 0
    %v1473 = vsel %vm150, %v1470, 0
    %1475 = vmatprep.subr.mxu0 0.0
    %1476 = vmatpush1.xpose.msra.mxu0 %v1473
    %1477 = vmatprep.subr.mxu0 0.0
    %1478 = vmatpush1.xpose.msra.mxu0 0.0
    %1479 = vmatprep.subr.mxu0 0.0
    %1480 = vmatpush1.xpose.msra.mxu0 0.0
    %1481 = vmatprep.subr.mxu0 0.0
    %1482 = vmatpush1.xpose.msra.mxu0 0.0
    %1483 = vmatprep.subr.mxu0 0.0
    %1484 = vmatpush1.xpose.msra.mxu0 0.0
    %1485 = vmatprep.subr.mxu0 0.0
    %1486 = vmatpush1.xpose.msra.mxu0 0.0
    %1487 = vmatprep.subr.mxu0 0.0
    %1488 = vmatpush1.xpose.msra.mxu0 0.0
    %1489 = vmatprep.subr.mxu0 0.0
    %1490 = vmatpush1.xpose.msra.mxu0 0.0
    %1491 = vmatprep.subr.mxu0 0.0
    %1492 = vmatpush1.xpose.msra.mxu0 0.0
    %1493 = vmatprep.subr.mxu0 0.0
    %1494 = vmatpush1.xpose.msra.mxu0 0.0
    %1495 = vmatprep.subr.mxu0 0.0
    %1496 = vmatpush1.xpose.msra.mxu0 0.0
    %1497 = vmatprep.subr.mxu0 0.0
    %1498 = vmatpush1.xpose.msra.mxu0 0.0
    %1499 = vmatprep.subr.mxu0 0.0
    %1500 = vmatpush1.xpose.msra.mxu0 0.0
    %1501 = vmatprep.subr.mxu0 0.0
    %1502 = vmatpush1.xpose.msra.mxu0 0.0
    %1503 = vmatprep.subr.mxu0 0.0
    %1504 = vmatpush1.xpose.msra.mxu0 0.0
    %1505 = vmatprep.subr.mxu0 0.0
    %1506 = vmatpush1.xpose.msra.mxu0 0.0
    %1507 = vmatprep.subr.mxu0 0.0
    %1508 = vmatpush1.xpose.msra.mxu0 0.0
    %1509 = vmatprep.subr.mxu0 0.0
    %1510 = vmatpush1.xpose.msra.mxu0 0.0
    %1511 = vmatprep.subr.mxu0 0.0
    %1512 = vmatpush1.xpose.msra.mxu0 0.0
    %1513 = vmatprep.subr.mxu0 0.0
    %1514 = vmatpush1.xpose.msra.mxu0 0.0
    %1515 = vmatprep.subr.mxu0 0.0
    %1516 = vmatpush1.xpose.msra.mxu0 0.0
    %1517 = vmatprep.subr.mxu0 0.0
    %1518 = vmatpush1.xpose.msra.mxu0 0.0
    %1519 = vmatprep.subr.mxu0 0.0
    %1520 = vmatpush1.xpose.msra.mxu0 0.0
    %1521 = vmatprep.subr.mxu0 0.0
    %1522 = vmatpush1.xpose.msra.mxu0 0.0
    %1523 = vmatprep.subr.mxu0 0.0
    %1524 = vmatpush1.xpose.msra.mxu0 0.0
    %1525 = vmatprep.subr.mxu0 0.0
    %1526 = vmatpush1.xpose.msra.mxu0 0.0
    %1527 = vmatprep.subr.mxu0 0.0
    %1528 = vmatpush1.xpose.msra.mxu0 0.0
    %1529 = vmatprep.subr.mxu0 0.0
    %1530 = vmatpush1.xpose.msra.mxu0 0.0
    %1531 = vmatprep.subr.mxu0 0.0
    %1532 = vmatpush1.xpose.msra.mxu0 0.0
    %1533 = vmatprep.subr.mxu0 0.0
    %1534 = vmatpush1.xpose.msra.mxu0 0.0
    %1535 = vmatprep.subr.mxu0 0.0
    %1536 = vmatpush1.xpose.msra.mxu0 0.0
    %1537 = vmatprep.subr.mxu0 0.0
    %1538 = vmatpush1.xpose.msra.mxu0 0.0
    %1539 = vmatprep.mubr.f32.mxu0 0.0
    %1540 = vmatmul.mubr.f32.gmra.mrb[0].mxu0 %v1471
    %v1541 = vpop.f32.mrb[0].mxu0
    %v1542 = vadd.f32 0.0, %v1541
    %v1543 = vpop.f32.mrb[0].mxu0
    %1544 = vdwg.mxu0
    %1545 = vrot.lane.b32.xlu0 %v144, 112
    %v1546 = vpop.permute.xlu0 %1545
    %1547 = vrot.lane.b32.xlu0 %v144, 80
    %v1548 = vpop.permute.xlu0 %1547
    %v1549 = vsel %vm150, %v1546, 0
    %v1551 = vsel %vm150, %v1548, 0
    %1553 = vmatprep.subr.mxu0 0.0
    %1554 = vmatpush1.xpose.msra.mxu0 %v1551
    %1555 = vmatprep.subr.mxu0 0.0
    %1556 = vmatpush1.xpose.msra.mxu0 0.0
    %1557 = vmatprep.subr.mxu0 0.0
    %1558 = vmatpush1.xpose.msra.mxu0 0.0
    %1559 = vmatprep.subr.mxu0 0.0
    %1560 = vmatpush1.xpose.msra.mxu0 0.0
    %1561 = vmatprep.subr.mxu0 0.0
    %1562 = vmatpush1.xpose.msra.mxu0 0.0
    %1563 = vmatprep.subr.mxu0 0.0
    %1564 = vmatpush1.xpose.msra.mxu0 0.0
    %1565 = vmatprep.subr.mxu0 0.0
    %1566 = vmatpush1.xpose.msra.mxu0 0.0
    %1567 = vmatprep.subr.mxu0 0.0
    %1568 = vmatpush1.xpose.msra.mxu0 0.0
    %1569 = vmatprep.subr.mxu0 0.0
    %1570 = vmatpush1.xpose.msra.mxu0 0.0
    %1571 = vmatprep.subr.mxu0 0.0
    %1572 = vmatpush1.xpose.msra.mxu0 0.0
    %1573 = vmatprep.subr.mxu0 0.0
    %1574 = vmatpush1.xpose.msra.mxu0 0.0
    %1575 = vmatprep.subr.mxu0 0.0
    %1576 = vmatpush1.xpose.msra.mxu0 0.0
    %1577 = vmatprep.subr.mxu0 0.0
    %1578 = vmatpush1.xpose.msra.mxu0 0.0
    %1579 = vmatprep.subr.mxu0 0.0
    %1580 = vmatpush1.xpose.msra.mxu0 0.0
    %1581 = vmatprep.subr.mxu0 0.0
    %1582 = vmatpush1.xpose.msra.mxu0 0.0
    %1583 = vmatprep.subr.mxu0 0.0
    %1584 = vmatpush1.xpose.msra.mxu0 0.0
    %1585 = vmatprep.subr.mxu0 0.0
    %1586 = vmatpush1.xpose.msra.mxu0 0.0
    %1587 = vmatprep.subr.mxu0 0.0
    %1588 = vmatpush1.xpose.msra.mxu0 0.0
    %1589 = vmatprep.subr.mxu0 0.0
    %1590 = vmatpush1.xpose.msra.mxu0 0.0
    %1591 = vmatprep.subr.mxu0 0.0
    %1592 = vmatpush1.xpose.msra.mxu0 0.0
    %1593 = vmatprep.subr.mxu0 0.0
    %1594 = vmatpush1.xpose.msra.mxu0 0.0
    %1595 = vmatprep.subr.mxu0 0.0
    %1596 = vmatpush1.xpose.msra.mxu0 0.0
    %1597 = vmatprep.subr.mxu0 0.0
    %1598 = vmatpush1.xpose.msra.mxu0 0.0
    %1599 = vmatprep.subr.mxu0 0.0
    %1600 = vmatpush1.xpose.msra.mxu0 0.0
    %1601 = vmatprep.subr.mxu0 0.0
    %1602 = vmatpush1.xpose.msra.mxu0 0.0
    %1603 = vmatprep.subr.mxu0 0.0
    %1604 = vmatpush1.xpose.msra.mxu0 0.0
    %1605 = vmatprep.subr.mxu0 0.0
    %1606 = vmatpush1.xpose.msra.mxu0 0.0
    %1607 = vmatprep.subr.mxu0 0.0
    %1608 = vmatpush1.xpose.msra.mxu0 0.0
    %1609 = vmatprep.subr.mxu0 0.0
    %1610 = vmatpush1.xpose.msra.mxu0 0.0
    %1611 = vmatprep.subr.mxu0 0.0
    %1612 = vmatpush1.xpose.msra.mxu0 0.0
    %1613 = vmatprep.subr.mxu0 0.0
    %1614 = vmatpush1.xpose.msra.mxu0 0.0
    %1615 = vmatprep.subr.mxu0 0.0
    %1616 = vmatpush1.xpose.msra.mxu0 0.0
    %1617 = vmatprep.mubr.f32.mxu0 0.0
    %1618 = vmatmul.mubr.f32.gmra.mrb[0].mxu0 %v1549
    %v1619 = vpop.f32.mrb[0].mxu0
    %v1620 = vadd.f32 0.0, %v1619
    %v1621 = vpop.f32.mrb[0].mxu0
    %1622 = vdwg.mxu0
    %v1623 = vsel %vm302, %v1542, -inf
    %1624 = vmax.xlane.f32.xlu0 %v1623
    %v1625 = vpop.xlane.xlu0 %1624
    %v1626 = vsel %vm302, %v1620, -inf
    %1627 = vmax.xlane.f32.xlu0 %v1626
    %v1628 = vpop.xlane.xlu0 %1627
    %v1629 = vsub.f32 %v1542, %v1625
    %v1630 = vsub.f32 %v1620, %v1628
    %v1631 = vmul.f32 %v1629, 1.442695
    %v1632 = vpow.pop %v1631
    %v1633 = vmul.f32 %v1630, 1.442695
    %v1634 = vpow.pop %v1633
    %v1635 = vsel %vm302, %v1632, 0.0
    %1636 = vadd.xlane.f32.xlu0 %v1635
    %v1637 = vpop.xlane.xlu0 %1636
    %v1638 = vsel %vm302, %v1634, 0.0
    %1639 = vadd.xlane.f32.xlu0 %v1638
    %v1640 = vpop.xlane.xlu0 %1639
    %1641 = vrot.lane.b32.xlu0 %v139, 48
    %v1642 = vpop.permute.xlu0 %1641
    %v1645 = vsel %vm302, %v1632, 0
    %1647 = vmatprep.subr.mxu0 0.0
    %1648 = vmatpush1.msra.mxu0 %v1642
    %1649 = vmatprep.subr.mxu0 0.0
    %1650 = vmatpush1.msra.mxu0 0.0
    %1651 = vmatprep.subr.mxu0 0.0
    %1652 = vmatpush1.msra.mxu0 0.0
    %1653 = vmatprep.subr.mxu0 0.0
    %1654 = vmatpush1.msra.mxu0 0.0
    %1655 = vmatprep.subr.mxu0 0.0
    %1656 = vmatpush1.msra.mxu0 0.0
    %1657 = vmatprep.subr.mxu0 0.0
    %1658 = vmatpush1.msra.mxu0 0.0
    %1659 = vmatprep.subr.mxu0 0.0
    %1660 = vmatpush1.msra.mxu0 0.0
    %1661 = vmatprep.subr.mxu0 0.0
    %1662 = vmatpush1.msra.mxu0 0.0
    %1663 = vmatprep.subr.mxu0 0.0
    %1664 = vmatpush1.msra.mxu0 0.0
    %1665 = vmatprep.subr.mxu0 0.0
    %1666 = vmatpush1.msra.mxu0 0.0
    %1667 = vmatprep.subr.mxu0 0.0
    %1668 = vmatpush1.msra.mxu0 0.0
    %1669 = vmatprep.subr.mxu0 0.0
    %1670 = vmatpush1.msra.mxu0 0.0
    %1671 = vmatprep.subr.mxu0 0.0
    %1672 = vmatpush1.msra.mxu0 0.0
    %1673 = vmatprep.subr.mxu0 0.0
    %1674 = vmatpush1.msra.mxu0 0.0
    %1675 = vmatprep.subr.mxu0 0.0
    %1676 = vmatpush1.msra.mxu0 0.0
    %1677 = vmatprep.subr.mxu0 0.0
    %1678 = vmatpush1.msra.mxu0 0.0
    %1679 = vmatprep.subr.mxu0 0.0
    %1680 = vmatpush1.msra.mxu0 0.0
    %1681 = vmatprep.subr.mxu0 0.0
    %1682 = vmatpush1.msra.mxu0 0.0
    %1683 = vmatprep.subr.mxu0 0.0
    %1684 = vmatpush1.msra.mxu0 0.0
    %1685 = vmatprep.subr.mxu0 0.0
    %1686 = vmatpush1.msra.mxu0 0.0
    %1687 = vmatprep.subr.mxu0 0.0
    %1688 = vmatpush1.msra.mxu0 0.0
    %1689 = vmatprep.subr.mxu0 0.0
    %1690 = vmatpush1.msra.mxu0 0.0
    %1691 = vmatprep.subr.mxu0 0.0
    %1692 = vmatpush1.msra.mxu0 0.0
    %1693 = vmatprep.subr.mxu0 0.0
    %1694 = vmatpush1.msra.mxu0 0.0
    %1695 = vmatprep.subr.mxu0 0.0
    %1696 = vmatpush1.msra.mxu0 0.0
    %1697 = vmatprep.subr.mxu0 0.0
    %1698 = vmatpush1.msra.mxu0 0.0
    %1699 = vmatprep.subr.mxu0 0.0
    %1700 = vmatpush1.msra.mxu0 0.0
    %1701 = vmatprep.subr.mxu0 0.0
    %1702 = vmatpush1.msra.mxu0 0.0
    %1703 = vmatprep.subr.mxu0 0.0
    %1704 = vmatpush1.msra.mxu0 0.0
    %1705 = vmatprep.subr.mxu0 0.0
    %1706 = vmatpush1.msra.mxu0 0.0
    %1707 = vmatprep.subr.mxu0 0.0
    %1708 = vmatpush1.msra.mxu0 0.0
    %1709 = vmatprep.subr.mxu0 0.0
    %1710 = vmatpush1.msra.mxu0 0.0
    %1711 = vmatprep.mubr.f32.mxu0 0.0
    %1712 = vmatmul.mubr.f32.gmra.mrb[0].mxu0 %v1645
    %v1713 = vpop.f32.mrb[0].mxu0
    %v1714 = vadd.f32 0.0, %v1713
    %v1715 = vpop.f32.mrb[0].mxu0
    %1716 = vdwg.mxu0
    %1717 = vrot.lane.b32.xlu0 %v144, 48
    %v1718 = vpop.permute.xlu0 %1717
    %v1721 = vsel %vm302, %v1634, 0
    %1723 = vmatprep.subr.mxu0 0.0
    %1724 = vmatpush1.msra.mxu0 %v1718
    %1725 = vmatprep.subr.mxu0 0.0
    %1726 = vmatpush1.msra.mxu0 0.0
    %1727 = vmatprep.subr.mxu0 0.0
    %1728 = vmatpush1.msra.mxu0 0.0
    %1729 = vmatprep.subr.mxu0 0.0
    %1730 = vmatpush1.msra.mxu0 0.0
    %1731 = vmatprep.subr.mxu0 0.0
    %1732 = vmatpush1.msra.mxu0 0.0
    %1733 = vmatprep.subr.mxu0 0.0
    %1734 = vmatpush1.msra.mxu0 0.0
    %1735 = vmatprep.subr.mxu0 0.0
    %1736 = vmatpush1.msra.mxu0 0.0
    %1737 = vmatprep.subr.mxu0 0.0
    %1738 = vmatpush1.msra.mxu0 0.0
    %1739 = vmatprep.subr.mxu0 0.0
    %1740 = vmatpush1.msra.mxu0 0.0
    %1741 = vmatprep.subr.mxu0 0.0
    %1742 = vmatpush1.msra.mxu0 0.0
    %1743 = vmatprep.subr.mxu0 0.0
    %1744 = vmatpush1.msra.mxu0 0.0
    %1745 = vmatprep.subr.mxu0 0.0
    %1746 = vmatpush1.msra.mxu0 0.0
    %1747 = vmatprep.subr.mxu0 0.0
    %1748 = vmatpush1.msra.mxu0 0.0
    %1749 = vmatprep.subr.mxu0 0.0
    %1750 = vmatpush1.msra.mxu0 0.0
    %1751 = vmatprep.subr.mxu0 0.0
    %1752 = vmatpush1.msra.mxu0 0.0
    %1753 = vmatprep.subr.mxu0 0.0
    %1754 = vmatpush1.msra.mxu0 0.0
    %1755 = vmatprep.subr.mxu0 0.0
    %1756 = vmatpush1.msra.mxu0 0.0
    %1757 = vmatprep.subr.mxu0 0.0
    %1758 = vmatpush1.msra.mxu0 0.0
    %1759 = vmatprep.subr.mxu0 0.0
    %1760 = vmatpush1.msra.mxu0 0.0
    %1761 = vmatprep.subr.mxu0 0.0
    %1762 = vmatpush1.msra.mxu0 0.0
    %1763 = vmatprep.subr.mxu0 0.0
    %1764 = vmatpush1.msra.mxu0 0.0
    %1765 = vmatprep.subr.mxu0 0.0
    %1766 = vmatpush1.msra.mxu0 0.0
    %1767 = vmatprep.subr.mxu0 0.0
    %1768 = vmatpush1.msra.mxu0 0.0
    %1769 = vmatprep.subr.mxu0 0.0
    %1770 = vmatpush1.msra.mxu0 0.0
    %1771 = vmatprep.subr.mxu0 0.0
    %1772 = vmatpush1.msra.mxu0 0.0
    %1773 = vmatprep.subr.mxu0 0.0
    %1774 = vmatpush1.msra.mxu0 0.0
    %1775 = vmatprep.subr.mxu0 0.0
    %1776 = vmatpush1.msra.mxu0 0.0
    %1777 = vmatprep.subr.mxu0 0.0
    %1778 = vmatpush1.msra.mxu0 0.0
    %1779 = vmatprep.subr.mxu0 0.0
    %1780 = vmatpush1.msra.mxu0 0.0
    %1781 = vmatprep.subr.mxu0 0.0
    %1782 = vmatpush1.msra.mxu0 0.0
    %1783 = vmatprep.subr.mxu0 0.0
    %1784 = vmatpush1.msra.mxu0 0.0
    %1785 = vmatprep.subr.mxu0 0.0
    %1786 = vmatpush1.msra.mxu0 0.0
    %1787 = vmatprep.mubr.f32.mxu0 0.0
    %1788 = vmatmul.mubr.f32.gmra.mrb[0].mxu0 %v1721
    %v1789 = vpop.f32.mrb[0].mxu0
    %v1790 = vadd.f32 0.0, %v1789
    %v1791 = vpop.f32.mrb[0].mxu0
    %1792 = vdwg.mxu0
    %v1793 = vrcp.pop %v1637
    %v1794 = vrcp.pop %v1640
    %v1795 = vmul.f32 %v1714, %v1793
    %v1796 = vmul.f32 %v1790, %v1794
    %1797 = vrot.lane.b32.xlu0 %v139, 108
    %v1798 = vpop.permute.xlu0 %1797
    %1799 = vrot.lane.b32.xlu0 %v139, 76
    %v1800 = vpop.permute.xlu0 %1799
    %v1801 = vsel %vm150, %v1798, 0
    %v1803 = vsel %vm150, %v1800, 0
    %1805 = vmatprep.subr.mxu0 0.0
    %1806 = vmatpush1.xpose.msra.mxu0 %v1803
    %1807 = vmatprep.subr.mxu0 0.0
    %1808 = vmatpush1.xpose.msra.mxu0 0.0
    %1809 = vmatprep.subr.mxu0 0.0
    %1810 = vmatpush1.xpose.msra.mxu0 0.0
    %1811 = vmatprep.subr.mxu0 0.0
    %1812 = vmatpush1.xpose.msra.mxu0 0.0
    %1813 = vmatprep.subr.mxu0 0.0
    %1814 = vmatpush1.xpose.msra.mxu0 0.0
    %1815 = vmatprep.subr.mxu0 0.0
    %1816 = vmatpush1.xpose.msra.mxu0 0.0
    %1817 = vmatprep.subr.mxu0 0.0
    %1818 = vmatpush1.xpose.msra.mxu0 0.0
    %1819 = vmatprep.subr.mxu0 0.0
    %1820 = vmatpush1.xpose.msra.mxu0 0.0
    %1821 = vmatprep.subr.mxu0 0.0
    %1822 = vmatpush1.xpose.msra.mxu0 0.0
    %1823 = vmatprep.subr.mxu0 0.0
    %1824 = vmatpush1.xpose.msra.mxu0 0.0
    %1825 = vmatprep.subr.mxu0 0.0
    %1826 = vmatpush1.xpose.msra.mxu0 0.0
    %1827 = vmatprep.subr.mxu0 0.0
    %1828 = vmatpush1.xpose.msra.mxu0 0.0
    %1829 = vmatprep.subr.mxu0 0.0
    %1830 = vmatpush1.xpose.msra.mxu0 0.0
    %1831 = vmatprep.subr.mxu0 0.0
    %1832 = vmatpush1.xpose.msra.mxu0 0.0
    %1833 = vmatprep.subr.mxu0 0.0
    %1834 = vmatpush1.xpose.msra.mxu0 0.0
    %1835 = vmatprep.subr.mxu0 0.0
    %1836 = vmatpush1.xpose.msra.mxu0 0.0
    %1837 = vmatprep.subr.mxu0 0.0
    %1838 = vmatpush1.xpose.msra.mxu0 0.0
    %1839 = vmatprep.subr.mxu0 0.0
    %1840 = vmatpush1.xpose.msra.mxu0 0.0
    %1841 = vmatprep.subr.mxu0 0.0
    %1842 = vmatpush1.xpose.msra.mxu0 0.0
    %1843 = vmatprep.subr.mxu0 0.0
    %1844 = vmatpush1.xpose.msra.mxu0 0.0
    %1845 = vmatprep.subr.mxu0 0.0
    %1846 = vmatpush1.xpose.msra.mxu0 0.0
    %1847 = vmatprep.subr.mxu0 0.0
    %1848 = vmatpush1.xpose.msra.mxu0 0.0
    %1849 = vmatprep.subr.mxu0 0.0
    %1850 = vmatpush1.xpose.msra.mxu0 0.0
    %1851 = vmatprep.subr.mxu0 0.0
    %1852 = vmatpush1.xpose.msra.mxu0 0.0
    %1853 = vmatprep.subr.mxu0 0.0
    %1854 = vmatpush1.xpose.msra.mxu0 0.0
    %1855 = vmatprep.subr.mxu0 0.0
    %1856 = vmatpush1.xpose.msra.mxu0 0.0
    %1857 = vmatprep.subr.mxu0 0.0
    %1858 = vmatpush1.xpose.msra.mxu0 0.0
    %1859 = vmatprep.subr.mxu0 0.0
    %1860 = vmatpush1.xpose.msra.mxu0 0.0
    %1861 = vmatprep.subr.mxu0 0.0
    %1862 = vmatpush1.xpose.msra.mxu0 0.0
    %1863 = vmatprep.subr.mxu0 0.0
    %1864 = vmatpush1.xpose.msra.mxu0 0.0
    %1865 = vmatprep.subr.mxu0 0.0
    %1866 = vmatpush1.xpose.msra.mxu0 0.0
    %1867 = vmatprep.subr.mxu0 0.0
    %1868 = vmatpush1.xpose.msra.mxu0 0.0
    %1869 = vmatprep.mubr.f32.mxu0 0.0
    %1870 = vmatmul.mubr.f32.gmra.mrb[0].mxu0 %v1801
    %v1871 = vpop.f32.mrb[0].mxu0
    %v1872 = vadd.f32 0.0, %v1871
    %v1873 = vpop.f32.mrb[0].mxu0
    %1874 = vdwg.mxu0
    %1875 = vrot.lane.b32.xlu0 %v144, 108
    %v1876 = vpop.permute.xlu0 %1875
    %1877 = vrot.lane.b32.xlu0 %v144, 76
    %v1878 = vpop.permute.xlu0 %1877
    %v1879 = vsel %vm150, %v1876, 0
    %v1881 = vsel %vm150, %v1878, 0
    %1883 = vmatprep.subr.mxu0 0.0
    %1884 = vmatpush1.xpose.msra.mxu0 %v1881
    %1885 = vmatprep.subr.mxu0 0.0
    %1886 = vmatpush1.xpose.msra.mxu0 0.0
    %1887 = vmatprep.subr.mxu0 0.0
    %1888 = vmatpush1.xpose.msra.mxu0 0.0
    %1889 = vmatprep.subr.mxu0 0.0
    %1890 = vmatpush1.xpose.msra.mxu0 0.0
    %1891 = vmatprep.subr.mxu0 0.0
    %1892 = vmatpush1.xpose.msra.mxu0 0.0
    %1893 = vmatprep.subr.mxu0 0.0
    %1894 = vmatpush1.xpose.msra.mxu0 0.0
    %1895 = vmatprep.subr.mxu0 0.0
    %1896 = vmatpush1.xpose.msra.mxu0 0.0
    %1897 = vmatprep.subr.mxu0 0.0
    %1898 = vmatpush1.xpose.msra.mxu0 0.0
    %1899 = vmatprep.subr.mxu0 0.0
    %1900 = vmatpush1.xpose.msra.mxu0 0.0
    %1901 = vmatprep.subr.mxu0 0.0
    %1902 = vmatpush1.xpose.msra.mxu0 0.0
    %1903 = vmatprep.subr.mxu0 0.0
    %1904 = vmatpush1.xpose.msra.mxu0 0.0
    %1905 = vmatprep.subr.mxu0 0.0
    %1906 = vmatpush1.xpose.msra.mxu0 0.0
    %1907 = vmatprep.subr.mxu0 0.0
    %1908 = vmatpush1.xpose.msra.mxu0 0.0
    %1909 = vmatprep.subr.mxu0 0.0
    %1910 = vmatpush1.xpose.msra.mxu0 0.0
    %1911 = vmatprep.subr.mxu0 0.0
    %1912 = vmatpush1.xpose.msra.mxu0 0.0
    %1913 = vmatprep.subr.mxu0 0.0
    %1914 = vmatpush1.xpose.msra.mxu0 0.0
    %1915 = vmatprep.subr.mxu0 0.0
    %1916 = vmatpush1.xpose.msra.mxu0 0.0
    %1917 = vmatprep.subr.mxu0 0.0
    %1918 = vmatpush1.xpose.msra.mxu0 0.0
    %1919 = vmatprep.subr.mxu0 0.0
    %1920 = vmatpush1.xpose.msra.mxu0 0.0
    %1921 = vmatprep.subr.mxu0 0.0
    %1922 = vmatpush1.xpose.msra.mxu0 0.0
    %1923 = vmatprep.subr.mxu0 0.0
    %1924 = vmatpush1.xpose.msra.mxu0 0.0
    %1925 = vmatprep.subr.mxu0 0.0
    %1926 = vmatpush1.xpose.msra.mxu0 0.0
    %1927 = vmatprep.subr.mxu0 0.0
    %1928 = vmatpush1.xpose.msra.mxu0 0.0
    %1929 = vmatprep.subr.mxu0 0.0
    %1930 = vmatpush1.xpose.msra.mxu0 0.0
    %1931 = vmatprep.subr.mxu0 0.0
    %1932 = vmatpush1.xpose.msra.mxu0 0.0
    %1933 = vmatprep.subr.mxu0 0.0
    %1934 = vmatpush1.xpose.msra.mxu0 0.0
    %1935 = vmatprep.subr.mxu0 0.0
    %1936 = vmatpush1.xpose.msra.mxu0 0.0
    %1937 = vmatprep.subr.mxu0 0.0
    %1938 = vmatpush1.xpose.msra.mxu0 0.0
    %1939 = vmatprep.subr.mxu0 0.0
    %1940 = vmatpush1.xpose.msra.mxu0 0.0
    %1941 = vmatprep.subr.mxu0 0.0
    %1942 = vmatpush1.xpose.msra.mxu0 0.0
    %1943 = vmatprep.subr.mxu0 0.0
    %1944 = vmatpush1.xpose.msra.mxu0 0.0
    %1945 = vmatprep.subr.mxu0 0.0
    %1946 = vmatpush1.xpose.msra.mxu0 0.0
    %1947 = vmatprep.mubr.f32.mxu0 0.0
    %1948 = vmatmul.mubr.f32.gmra.mrb[0].mxu0 %v1879
    %v1949 = vpop.f32.mrb[0].mxu0
    %v1950 = vadd.f32 0.0, %v1949
    %v1951 = vpop.f32.mrb[0].mxu0
    %1952 = vdwg.mxu0
    %v1953 = vsel %vm302, %v1872, -inf
    %1954 = vmax.xlane.f32.xlu0 %v1953
    %v1955 = vpop.xlane.xlu0 %1954
    %v1956 = vsel %vm302, %v1950, -inf
    %1957 = vmax.xlane.f32.xlu0 %v1956
    %v1958 = vpop.xlane.xlu0 %1957
    %v1959 = vsub.f32 %v1872, %v1955
    %v1960 = vsub.f32 %v1950, %v1958
    %v1961 = vmul.f32 %v1959, 1.442695
    %v1962 = vpow.pop %v1961
    %v1963 = vmul.f32 %v1960, 1.442695
    %v1964 = vpow.pop %v1963
    %v1965 = vsel %vm302, %v1962, 0.0
    %1966 = vadd.xlane.f32.xlu0 %v1965
    %v1967 = vpop.xlane.xlu0 %1966
    %v1968 = vsel %vm302, %v1964, 0.0
    %1969 = vadd.xlane.f32.xlu0 %v1968
    %v1970 = vpop.xlane.xlu0 %1969
    %1971 = vrot.lane.b32.xlu0 %v139, 44
    %v1972 = vpop.permute.xlu0 %1971
    %v1975 = vsel %vm302, %v1962, 0
    %1977 = vmatprep.subr.mxu0 0.0
    %1978 = vmatpush1.msra.mxu0 %v1972
    %1979 = vmatprep.subr.mxu0 0.0
    %1980 = vmatpush1.msra.mxu0 0.0
    %1981 = vmatprep.subr.mxu0 0.0
    %1982 = vmatpush1.msra.mxu0 0.0
    %1983 = vmatprep.subr.mxu0 0.0
    %1984 = vmatpush1.msra.mxu0 0.0
    %1985 = vmatprep.subr.mxu0 0.0
    %1986 = vmatpush1.msra.mxu0 0.0
    %1987 = vmatprep.subr.mxu0 0.0
    %1988 = vmatpush1.msra.mxu0 0.0
    %1989 = vmatprep.subr.mxu0 0.0
    %1990 = vmatpush1.msra.mxu0 0.0
    %1991 = vmatprep.subr.mxu0 0.0
    %1992 = vmatpush1.msra.mxu0 0.0
    %1993 = vmatprep.subr.mxu0 0.0
    %1994 = vmatpush1.msra.mxu0 0.0
    %1995 = vmatprep.subr.mxu0 0.0
    %1996 = vmatpush1.msra.mxu0 0.0
    %1997 = vmatprep.subr.mxu0 0.0
    %1998 = vmatpush1.msra.mxu0 0.0
    %1999 = vmatprep.subr.mxu0 0.0
    %2000 = vmatpush1.msra.mxu0 0.0
    %2001 = vmatprep.subr.mxu0 0.0
    %2002 = vmatpush1.msra.mxu0 0.0
    %2003 = vmatprep.subr.mxu0 0.0
    %2004 = vmatpush1.msra.mxu0 0.0
    %2005 = vmatprep.subr.mxu0 0.0
    %2006 = vmatpush1.msra.mxu0 0.0
    %2007 = vmatprep.subr.mxu0 0.0
    %2008 = vmatpush1.msra.mxu0 0.0
    %2009 = vmatprep.subr.mxu0 0.0
    %2010 = vmatpush1.msra.mxu0 0.0
    %2011 = vmatprep.subr.mxu0 0.0
    %2012 = vmatpush1.msra.mxu0 0.0
    %2013 = vmatprep.subr.mxu0 0.0
    %2014 = vmatpush1.msra.mxu0 0.0
    %2015 = vmatprep.subr.mxu0 0.0
    %2016 = vmatpush1.msra.mxu0 0.0
    %2017 = vmatprep.subr.mxu0 0.0
    %2018 = vmatpush1.msra.mxu0 0.0
    %2019 = vmatprep.subr.mxu0 0.0
    %2020 = vmatpush1.msra.mxu0 0.0
    %2021 = vmatprep.subr.mxu0 0.0
    %2022 = vmatpush1.msra.mxu0 0.0
    %2023 = vmatprep.subr.mxu0 0.0
    %2024 = vmatpush1.msra.mxu0 0.0
    %2025 = vmatprep.subr.mxu0 0.0
    %2026 = vmatpush1.msra.mxu0 0.0
    %2027 = vmatprep.subr.mxu0 0.0
    %2028 = vmatpush1.msra.mxu0 0.0
    %2029 = vmatprep.subr.mxu0 0.0
    %2030 = vmatpush1.msra.mxu0 0.0
    %2031 = vmatprep.subr.mxu0 0.0
    %2032 = vmatpush1.msra.mxu0 0.0
    %2033 = vmatprep.subr.mxu0 0.0
    %2034 = vmatpush1.msra.mxu0 0.0
    %2035 = vmatprep.subr.mxu0 0.0
    %2036 = vmatpush1.msra.mxu0 0.0
    %2037 = vmatprep.subr.mxu0 0.0
    %2038 = vmatpush1.msra.mxu0 0.0
    %2039 = vmatprep.subr.mxu0 0.0
    %2040 = vmatpush1.msra.mxu0 0.0
    %2041 = vmatprep.mubr.f32.mxu0 0.0
    %2042 = vmatmul.mubr.f32.gmra.mrb[0].mxu0 %v1975
    %v2043 = vpop.f32.mrb[0].mxu0
    %v2044 = vadd.f32 0.0, %v2043
    %v2045 = vpop.f32.mrb[0].mxu0
    %2046 = vdwg.mxu0
    %2047 = vrot.lane.b32.xlu0 %v144, 44
    %v2048 = vpop.permute.xlu0 %2047
    %v2051 = vsel %vm302, %v1964, 0
    %2053 = vmatprep.subr.mxu0 0.0
    %2054 = vmatpush1.msra.mxu0 %v2048
    %2055 = vmatprep.subr.mxu0 0.0
    %2056 = vmatpush1.msra.mxu0 0.0
    %2057 = vmatprep.subr.mxu0 0.0
    %2058 = vmatpush1.msra.mxu0 0.0
    %2059 = vmatprep.subr.mxu0 0.0
    %2060 = vmatpush1.msra.mxu0 0.0
    %2061 = vmatprep.subr.mxu0 0.0
    %2062 = vmatpush1.msra.mxu0 0.0
    %2063 = vmatprep.subr.mxu0 0.0
    %2064 = vmatpush1.msra.mxu0 0.0
    %2065 = vmatprep.subr.mxu0 0.0
    %2066 = vmatpush1.msra.mxu0 0.0
    %2067 = vmatprep.subr.mxu0 0.0
    %2068 = vmatpush1.msra.mxu0 0.0
    %2069 = vmatprep.subr.mxu0 0.0
    %2070 = vmatpush1.msra.mxu0 0.0
    %2071 = vmatprep.subr.mxu0 0.0
    %2072 = vmatpush1.msra.mxu0 0.0
    %2073 = vmatprep.subr.mxu0 0.0
    %2074 = vmatpush1.msra.mxu0 0.0
    %2075 = vmatprep.subr.mxu0 0.0
    %2076 = vmatpush1.msra.mxu0 0.0
    %2077 = vmatprep.subr.mxu0 0.0
    %2078 = vmatpush1.msra.mxu0 0.0
    %2079 = vmatprep.subr.mxu0 0.0
    %2080 = vmatpush1.msra.mxu0 0.0
    %2081 = vmatprep.subr.mxu0 0.0
    %2082 = vmatpush1.msra.mxu0 0.0
    %2083 = vmatprep.subr.mxu0 0.0
    %2084 = vmatpush1.msra.mxu0 0.0
    %2085 = vmatprep.subr.mxu0 0.0
    %2086 = vmatpush1.msra.mxu0 0.0
    %2087 = vmatprep.subr.mxu0 0.0
    %2088 = vmatpush1.msra.mxu0 0.0
    %2089 = vmatprep.subr.mxu0 0.0
    %2090 = vmatpush1.msra.mxu0 0.0
    %2091 = vmatprep.subr.mxu0 0.0
    %2092 = vmatpush1.msra.mxu0 0.0
    %2093 = vmatprep.subr.mxu0 0.0
    %2094 = vmatpush1.msra.mxu0 0.0
    %2095 = vmatprep.subr.mxu0 0.0
    %2096 = vmatpush1.msra.mxu0 0.0
    %2097 = vmatprep.subr.mxu0 0.0
    %2098 = vmatpush1.msra.mxu0 0.0
    %2099 = vmatprep.subr.mxu0 0.0
    %2100 = vmatpush1.msra.mxu0 0.0
    %2101 = vmatprep.subr.mxu0 0.0
    %2102 = vmatpush1.msra.mxu0 0.0
    %2103 = vmatprep.subr.mxu0 0.0
    %2104 = vmatpush1.msra.mxu0 0.0
    %2105 = vmatprep.subr.mxu0 0.0
    %2106 = vmatpush1.msra.mxu0 0.0
    %2107 = vmatprep.subr.mxu0 0.0
    %2108 = vmatpush1.msra.mxu0 0.0
    %2109 = vmatprep.subr.mxu0 0.0
    %2110 = vmatpush1.msra.mxu0 0.0
    %2111 = vmatprep.subr.mxu0 0.0
    %2112 = vmatpush1.msra.mxu0 0.0
    %2113 = vmatprep.subr.mxu0 0.0
    %2114 = vmatpush1.msra.mxu0 0.0
    %2115 = vmatprep.subr.mxu0 0.0
    %2116 = vmatpush1.msra.mxu0 0.0
    %2117 = vmatprep.mubr.f32.mxu0 0.0
    %2118 = vmatmul.mubr.f32.gmra.mrb[0].mxu0 %v2051
    %v2119 = vpop.f32.mrb[0].mxu0
    %v2120 = vadd.f32 0.0, %v2119
    %v2121 = vpop.f32.mrb[0].mxu0
    %2122 = vdwg.mxu0
    %v2123 = vrcp.pop %v1967
    %v2124 = vrcp.pop %v1970
    %v2125 = vmul.f32 %v2044, %v2123
    %v2126 = vmul.f32 %v2120, %v2124
    %2127 = vrot.lane.b32.xlu0 %v139, 104
    %v2128 = vpop.permute.xlu0 %2127
    %2129 = vrot.lane.b32.xlu0 %v139, 72
    %v2130 = vpop.permute.xlu0 %2129
    %v2131 = vsel %vm150, %v2128, 0
    %v2133 = vsel %vm150, %v2130, 0
    %2135 = vmatprep.subr.mxu0 0.0
    %2136 = vmatpush1.xpose.msra.mxu0 %v2133
    %2137 = vmatprep.subr.mxu0 0.0
    %2138 = vmatpush1.xpose.msra.mxu0 0.0
    %2139 = vmatprep.subr.mxu0 0.0
    %2140 = vmatpush1.xpose.msra.mxu0 0.0
    %2141 = vmatprep.subr.mxu0 0.0
    %2142 = vmatpush1.xpose.msra.mxu0 0.0
    %2143 = vmatprep.subr.mxu0 0.0
    %2144 = vmatpush1.xpose.msra.mxu0 0.0
    %2145 = vmatprep.subr.mxu0 0.0
    %2146 = vmatpush1.xpose.msra.mxu0 0.0
    %2147 = vmatprep.subr.mxu0 0.0
    %2148 = vmatpush1.xpose.msra.mxu0 0.0
    %2149 = vmatprep.subr.mxu0 0.0
    %2150 = vmatpush1.xpose.msra.mxu0 0.0
    %2151 = vmatprep.subr.mxu0 0.0
    %2152 = vmatpush1.xpose.msra.mxu0 0.0
    %2153 = vmatprep.subr.mxu0 0.0
    %2154 = vmatpush1.xpose.msra.mxu0 0.0
    %2155 = vmatprep.subr.mxu0 0.0
    %2156 = vmatpush1.xpose.msra.mxu0 0.0
    %2157 = vmatprep.subr.mxu0 0.0
    %2158 = vmatpush1.xpose.msra.mxu0 0.0
    %2159 = vmatprep.subr.mxu0 0.0
    %2160 = vmatpush1.xpose.msra.mxu0 0.0
    %2161 = vmatprep.subr.mxu0 0.0
    %2162 = vmatpush1.xpose.msra.mxu0 0.0
    %2163 = vmatprep.subr.mxu0 0.0
    %2164 = vmatpush1.xpose.msra.mxu0 0.0
    %2165 = vmatprep.subr.mxu0 0.0
    %2166 = vmatpush1.xpose.msra.mxu0 0.0
    %2167 = vmatprep.subr.mxu0 0.0
    %2168 = vmatpush1.xpose.msra.mxu0 0.0
    %2169 = vmatprep.subr.mxu0 0.0
    %2170 = vmatpush1.xpose.msra.mxu0 0.0
    %2171 = vmatprep.subr.mxu0 0.0
    %2172 = vmatpush1.xpose.msra.mxu0 0.0
    %2173 = vmatprep.subr.mxu0 0.0
    %2174 = vmatpush1.xpose.msra.mxu0 0.0
    %2175 = vmatprep.subr.mxu0 0.0
    %2176 = vmatpush1.xpose.msra.mxu0 0.0
    %2177 = vmatprep.subr.mxu0 0.0
    %2178 = vmatpush1.xpose.msra.mxu0 0.0
    %2179 = vmatprep.subr.mxu0 0.0
    %2180 = vmatpush1.xpose.msra.mxu0 0.0
    %2181 = vmatprep.subr.mxu0 0.0
    %2182 = vmatpush1.xpose.msra.mxu0 0.0
    %2183 = vmatprep.subr.mxu0 0.0
    %2184 = vmatpush1.xpose.msra.mxu0 0.0
    %2185 = vmatprep.subr.mxu0 0.0
    %2186 = vmatpush1.xpose.msra.mxu0 0.0
    %2187 = vmatprep.subr.mxu0 0.0
    %2188 = vmatpush1.xpose.msra.mxu0 0.0
    %2189 = vmatprep.subr.mxu0 0.0
    %2190 = vmatpush1.xpose.msra.mxu0 0.0
    %2191 = vmatprep.subr.mxu0 0.0
    %2192 = vmatpush1.xpose.msra.mxu0 0.0
    %2193 = vmatprep.subr.mxu0 0.0
    %2194 = vmatpush1.xpose.msra.mxu0 0.0
    %2195 = vmatprep.subr.mxu0 0.0
    %2196 = vmatpush1.xpose.msra.mxu0 0.0
    %2197 = vmatprep.subr.mxu0 0.0
    %2198 = vmatpush1.xpose.msra.mxu0 0.0
    %2199 = vmatprep.mubr.f32.mxu0 0.0
    %2200 = vmatmul.mubr.f32.gmra.mrb[0].mxu0 %v2131
    %v2201 = vpop.f32.mrb[0].mxu0
    %v2202 = vadd.f32 0.0, %v2201
    %v2203 = vpop.f32.mrb[0].mxu0
    %2204 = vdwg.mxu0
    %2205 = vrot.lane.b32.xlu0 %v144, 104
    %v2206 = vpop.permute.xlu0 %2205
    %2207 = vrot.lane.b32.xlu0 %v144, 72
    %v2208 = vpop.permute.xlu0 %2207
    %v2209 = vsel %vm150, %v2206, 0
    %v2211 = vsel %vm150, %v2208, 0
    %2213 = vmatprep.subr.mxu0 0.0
    %2214 = vmatpush1.xpose.msra.mxu0 %v2211
    %2215 = vmatprep.subr.mxu0 0.0
    %2216 = vmatpush1.xpose.msra.mxu0 0.0
    %2217 = vmatprep.subr.mxu0 0.0
    %2218 = vmatpush1.xpose.msra.mxu0 0.0
    %2219 = vmatprep.subr.mxu0 0.0
    %2220 = vmatpush1.xpose.msra.mxu0 0.0
    %2221 = vmatprep.subr.mxu0 0.0
    %2222 = vmatpush1.xpose.msra.mxu0 0.0
    %2223 = vmatprep.subr.mxu0 0.0
    %2224 = vmatpush1.xpose.msra.mxu0 0.0
    %2225 = vmatprep.subr.mxu0 0.0
    %2226 = vmatpush1.xpose.msra.mxu0 0.0
    %2227 = vmatprep.subr.mxu0 0.0
    %2228 = vmatpush1.xpose.msra.mxu0 0.0
    %2229 = vmatprep.subr.mxu0 0.0
    %2230 = vmatpush1.xpose.msra.mxu0 0.0
    %2231 = vmatprep.subr.mxu0 0.0
    %2232 = vmatpush1.xpose.msra.mxu0 0.0
    %2233 = vmatprep.subr.mxu0 0.0
    %2234 = vmatpush1.xpose.msra.mxu0 0.0
    %2235 = vmatprep.subr.mxu0 0.0
    %2236 = vmatpush1.xpose.msra.mxu0 0.0
    %2237 = vmatprep.subr.mxu0 0.0
    %2238 = vmatpush1.xpose.msra.mxu0 0.0
    %2239 = vmatprep.subr.mxu0 0.0
    %2240 = vmatpush1.xpose.msra.mxu0 0.0
    %2241 = vmatprep.subr.mxu0 0.0
    %2242 = vmatpush1.xpose.msra.mxu0 0.0
    %2243 = vmatprep.subr.mxu0 0.0
    %2244 = vmatpush1.xpose.msra.mxu0 0.0
    %2245 = vmatprep.subr.mxu0 0.0
    %2246 = vmatpush1.xpose.msra.mxu0 0.0
    %2247 = vmatprep.subr.mxu0 0.0
    %2248 = vmatpush1.xpose.msra.mxu0 0.0
    %2249 = vmatprep.subr.mxu0 0.0
    %2250 = vmatpush1.xpose.msra.mxu0 0.0
    %2251 = vmatprep.subr.mxu0 0.0
    %2252 = vmatpush1.xpose.msra.mxu0 0.0
    %2253 = vmatprep.subr.mxu0 0.0
    %2254 = vmatpush1.xpose.msra.mxu0 0.0
    %2255 = vmatprep.subr.mxu0 0.0
    %2256 = vmatpush1.xpose.msra.mxu0 0.0
    %2257 = vmatprep.subr.mxu0 0.0
    %2258 = vmatpush1.xpose.msra.mxu0 0.0
    %2259 = vmatprep.subr.mxu0 0.0
    %2260 = vmatpush1.xpose.msra.mxu0 0.0
    %2261 = vmatprep.subr.mxu0 0.0
    %2262 = vmatpush1.xpose.msra.mxu0 0.0
    %2263 = vmatprep.subr.mxu0 0.0
    %2264 = vmatpush1.xpose.msra.mxu0 0.0
    %2265 = vmatprep.subr.mxu0 0.0
    %2266 = vmatpush1.xpose.msra.mxu0 0.0
    %2267 = vmatprep.subr.mxu0 0.0
    %2268 = vmatpush1.xpose.msra.mxu0 0.0
    %2269 = vmatprep.subr.mxu0 0.0
    %2270 = vmatpush1.xpose.msra.mxu0 0.0
    %2271 = vmatprep.subr.mxu0 0.0
    %2272 = vmatpush1.xpose.msra.mxu0 0.0
    %2273 = vmatprep.subr.mxu0 0.0
    %2274 = vmatpush1.xpose.msra.mxu0 0.0
    %2275 = vmatprep.subr.mxu0 0.0
    %2276 = vmatpush1.xpose.msra.mxu0 0.0
    %2277 = vmatprep.mubr.f32.mxu0 0.0
    %2278 = vmatmul.mubr.f32.gmra.mrb[0].mxu0 %v2209
    %v2279 = vpop.f32.mrb[0].mxu0
    %v2280 = vadd.f32 0.0, %v2279
    %v2281 = vpop.f32.mrb[0].mxu0
    %2282 = vdwg.mxu0
    %v2283 = vsel %vm302, %v2202, -inf
    %2284 = vmax.xlane.f32.xlu0 %v2283
    %v2285 = vpop.xlane.xlu0 %2284
    %v2286 = vsel %vm302, %v2280, -inf
    %2287 = vmax.xlane.f32.xlu0 %v2286
    %v2288 = vpop.xlane.xlu0 %2287
    %v2289 = vsub.f32 %v2202, %v2285
    %v2290 = vsub.f32 %v2280, %v2288
    %v2291 = vmul.f32 %v2289, 1.442695
    %v2292 = vpow.pop %v2291
    %v2293 = vmul.f32 %v2290, 1.442695
    %v2294 = vpow.pop %v2293
    %v2295 = vsel %vm302, %v2292, 0.0
    %2296 = vadd.xlane.f32.xlu0 %v2295
    %v2297 = vpop.xlane.xlu0 %2296
    %v2298 = vsel %vm302, %v2294, 0.0
    %2299 = vadd.xlane.f32.xlu0 %v2298
    %v2300 = vpop.xlane.xlu0 %2299
    %2301 = vrot.lane.b32.xlu0 %v139, 40
    %v2302 = vpop.permute.xlu0 %2301
    %v2305 = vsel %vm302, %v2292, 0
    %2307 = vmatprep.subr.mxu0 0.0
    %2308 = vmatpush1.msra.mxu0 %v2302
    %2309 = vmatprep.subr.mxu0 0.0
    %2310 = vmatpush1.msra.mxu0 0.0
    %2311 = vmatprep.subr.mxu0 0.0
    %2312 = vmatpush1.msra.mxu0 0.0
    %2313 = vmatprep.subr.mxu0 0.0
    %2314 = vmatpush1.msra.mxu0 0.0
    %2315 = vmatprep.subr.mxu0 0.0
    %2316 = vmatpush1.msra.mxu0 0.0
    %2317 = vmatprep.subr.mxu0 0.0
    %2318 = vmatpush1.msra.mxu0 0.0
    %2319 = vmatprep.subr.mxu0 0.0
    %2320 = vmatpush1.msra.mxu0 0.0
    %2321 = vmatprep.subr.mxu0 0.0
    %2322 = vmatpush1.msra.mxu0 0.0
    %2323 = vmatprep.subr.mxu0 0.0
    %2324 = vmatpush1.msra.mxu0 0.0
    %2325 = vmatprep.subr.mxu0 0.0
    %2326 = vmatpush1.msra.mxu0 0.0
    %2327 = vmatprep.subr.mxu0 0.0
    %2328 = vmatpush1.msra.mxu0 0.0
    %2329 = vmatprep.subr.mxu0 0.0
    %2330 = vmatpush1.msra.mxu0 0.0
    %2331 = vmatprep.subr.mxu0 0.0
    %2332 = vmatpush1.msra.mxu0 0.0
    %2333 = vmatprep.subr.mxu0 0.0
    %2334 = vmatpush1.msra.mxu0 0.0
    %2335 = vmatprep.subr.mxu0 0.0
    %2336 = vmatpush1.msra.mxu0 0.0
    %2337 = vmatprep.subr.mxu0 0.0
    %2338 = vmatpush1.msra.mxu0 0.0
    %2339 = vmatprep.subr.mxu0 0.0
    %2340 = vmatpush1.msra.mxu0 0.0
    %2341 = vmatprep.subr.mxu0 0.0
    %2342 = vmatpush1.msra.mxu0 0.0
    %2343 = vmatprep.subr.mxu0 0.0
    %2344 = vmatpush1.msra.mxu0 0.0
    %2345 = vmatprep.subr.mxu0 0.0
    %2346 = vmatpush1.msra.mxu0 0.0
    %2347 = vmatprep.subr.mxu0 0.0
    %2348 = vmatpush1.msra.mxu0 0.0
    %2349 = vmatprep.subr.mxu0 0.0
    %2350 = vmatpush1.msra.mxu0 0.0
    %2351 = vmatprep.subr.mxu0 0.0
    %2352 = vmatpush1.msra.mxu0 0.0
    %2353 = vmatprep.subr.mxu0 0.0
    %2354 = vmatpush1.msra.mxu0 0.0
    %2355 = vmatprep.subr.mxu0 0.0
    %2356 = vmatpush1.msra.mxu0 0.0
    %2357 = vmatprep.subr.mxu0 0.0
    %2358 = vmatpush1.msra.mxu0 0.0
    %2359 = vmatprep.subr.mxu0 0.0
    %2360 = vmatpush1.msra.mxu0 0.0
    %2361 = vmatprep.subr.mxu0 0.0
    %2362 = vmatpush1.msra.mxu0 0.0
    %2363 = vmatprep.subr.mxu0 0.0
    %2364 = vmatpush1.msra.mxu0 0.0
    %2365 = vmatprep.subr.mxu0 0.0
    %2366 = vmatpush1.msra.mxu0 0.0
    %2367 = vmatprep.subr.mxu0 0.0
    %2368 = vmatpush1.msra.mxu0 0.0
    %2369 = vmatprep.subr.mxu0 0.0
    %2370 = vmatpush1.msra.mxu0 0.0
    %2371 = vmatprep.mubr.f32.mxu0 0.0
    %2372 = vmatmul.mubr.f32.gmra.mrb[0].mxu0 %v2305
    %v2373 = vpop.f32.mrb[0].mxu0
    %v2374 = vadd.f32 0.0, %v2373
    %v2375 = vpop.f32.mrb[0].mxu0
    %2376 = vdwg.mxu0
    %2377 = vrot.lane.b32.xlu0 %v144, 40
    %v2378 = vpop.permute.xlu0 %2377
    %v2381 = vsel %vm302, %v2294, 0
    %2383 = vmatprep.subr.mxu0 0.0
    %2384 = vmatpush1.msra.mxu0 %v2378
    %2385 = vmatprep.subr.mxu0 0.0
    %2386 = vmatpush1.msra.mxu0 0.0
    %2387 = vmatprep.subr.mxu0 0.0
    %2388 = vmatpush1.msra.mxu0 0.0
    %2389 = vmatprep.subr.mxu0 0.0
    %2390 = vmatpush1.msra.mxu0 0.0
    %2391 = vmatprep.subr.mxu0 0.0
    %2392 = vmatpush1.msra.mxu0 0.0
    %2393 = vmatprep.subr.mxu0 0.0
    %2394 = vmatpush1.msra.mxu0 0.0
    %2395 = vmatprep.subr.mxu0 0.0
    %2396 = vmatpush1.msra.mxu0 0.0
    %2397 = vmatprep.subr.mxu0 0.0
    %2398 = vmatpush1.msra.mxu0 0.0
    %2399 = vmatprep.subr.mxu0 0.0
    %2400 = vmatpush1.msra.mxu0 0.0
    %2401 = vmatprep.subr.mxu0 0.0
    %2402 = vmatpush1.msra.mxu0 0.0
    %2403 = vmatprep.subr.mxu0 0.0
    %2404 = vmatpush1.msra.mxu0 0.0
    %2405 = vmatprep.subr.mxu0 0.0
    %2406 = vmatpush1.msra.mxu0 0.0
    %2407 = vmatprep.subr.mxu0 0.0
    %2408 = vmatpush1.msra.mxu0 0.0
    %2409 = vmatprep.subr.mxu0 0.0
    %2410 = vmatpush1.msra.mxu0 0.0
    %2411 = vmatprep.subr.mxu0 0.0
    %2412 = vmatpush1.msra.mxu0 0.0
    %2413 = vmatprep.subr.mxu0 0.0
    %2414 = vmatpush1.msra.mxu0 0.0
    %2415 = vmatprep.subr.mxu0 0.0
    %2416 = vmatpush1.msra.mxu0 0.0
    %2417 = vmatprep.subr.mxu0 0.0
    %2418 = vmatpush1.msra.mxu0 0.0
    %2419 = vmatprep.subr.mxu0 0.0
    %2420 = vmatpush1.msra.mxu0 0.0
    %2421 = vmatprep.subr.mxu0 0.0
    %2422 = vmatpush1.msra.mxu0 0.0
    %2423 = vmatprep.subr.mxu0 0.0
    %2424 = vmatpush1.msra.mxu0 0.0
    %2425 = vmatprep.subr.mxu0 0.0
    %2426 = vmatpush1.msra.mxu0 0.0
    %2427 = vmatprep.subr.mxu0 0.0
    %2428 = vmatpush1.msra.mxu0 0.0
    %2429 = vmatprep.subr.mxu0 0.0
    %2430 = vmatpush1.msra.mxu0 0.0
    %2431 = vmatprep.subr.mxu0 0.0
    %2432 = vmatpush1.msra.mxu0 0.0
    %2433 = vmatprep.subr.mxu0 0.0
    %2434 = vmatpush1.msra.mxu0 0.0
    %2435 = vmatprep.subr.mxu0 0.0
    %2436 = vmatpush1.msra.mxu0 0.0
    %2437 = vmatprep.subr.mxu0 0.0
    %2438 = vmatpush1.msra.mxu0 0.0
    %2439 = vmatprep.subr.mxu0 0.0
    %2440 = vmatpush1.msra.mxu0 0.0
    %2441 = vmatprep.subr.mxu0 0.0
    %2442 = vmatpush1.msra.mxu0 0.0
    %2443 = vmatprep.subr.mxu0 0.0
    %2444 = vmatpush1.msra.mxu0 0.0
    %2445 = vmatprep.subr.mxu0 0.0
    %2446 = vmatpush1.msra.mxu0 0.0
    %2447 = vmatprep.mubr.f32.mxu0 0.0
    %2448 = vmatmul.mubr.f32.gmra.mrb[0].mxu0 %v2381
    %v2449 = vpop.f32.mrb[0].mxu0
    %v2450 = vadd.f32 0.0, %v2449
    %v2451 = vpop.f32.mrb[0].mxu0
    %2452 = vdwg.mxu0
    %v2453 = vrcp.pop %v2297
    %v2454 = vrcp.pop %v2300
    %v2455 = vmul.f32 %v2374, %v2453
    %v2456 = vmul.f32 %v2450, %v2454
    %2457 = vrot.lane.b32.xlu0 %v139, 100
    %v2458 = vpop.permute.xlu0 %2457
    %2459 = vrot.lane.b32.xlu0 %v139, 68
    %v2460 = vpop.permute.xlu0 %2459
    %v2461 = vsel %vm150, %v2458, 0
    %v2463 = vsel %vm150, %v2460, 0
    %2465 = vmatprep.subr.mxu0 0.0
    %2466 = vmatpush1.xpose.msra.mxu0 %v2463
    %2467 = vmatprep.subr.mxu0 0.0
    %2468 = vmatpush1.xpose.msra.mxu0 0.0
    %2469 = vmatprep.subr.mxu0 0.0
    %2470 = vmatpush1.xpose.msra.mxu0 0.0
    %2471 = vmatprep.subr.mxu0 0.0
    %2472 = vmatpush1.xpose.msra.mxu0 0.0
    %2473 = vmatprep.subr.mxu0 0.0
    %2474 = vmatpush1.xpose.msra.mxu0 0.0
    %2475 = vmatprep.subr.mxu0 0.0
    %2476 = vmatpush1.xpose.msra.mxu0 0.0
    %2477 = vmatprep.subr.mxu0 0.0
    %2478 = vmatpush1.xpose.msra.mxu0 0.0
    %2479 = vmatprep.subr.mxu0 0.0
    %2480 = vmatpush1.xpose.msra.mxu0 0.0
    %2481 = vmatprep.subr.mxu0 0.0
    %2482 = vmatpush1.xpose.msra.mxu0 0.0
    %2483 = vmatprep.subr.mxu0 0.0
    %2484 = vmatpush1.xpose.msra.mxu0 0.0
    %2485 = vmatprep.subr.mxu0 0.0
    %2486 = vmatpush1.xpose.msra.mxu0 0.0
    %2487 = vmatprep.subr.mxu0 0.0
    %2488 = vmatpush1.xpose.msra.mxu0 0.0
    %2489 = vmatprep.subr.mxu0 0.0
    %2490 = vmatpush1.xpose.msra.mxu0 0.0
    %2491 = vmatprep.subr.mxu0 0.0
    %2492 = vmatpush1.xpose.msra.mxu0 0.0
    %2493 = vmatprep.subr.mxu0 0.0
    %2494 = vmatpush1.xpose.msra.mxu0 0.0
    %2495 = vmatprep.subr.mxu0 0.0
    %2496 = vmatpush1.xpose.msra.mxu0 0.0
    %2497 = vmatprep.subr.mxu0 0.0
    %2498 = vmatpush1.xpose.msra.mxu0 0.0
    %2499 = vmatprep.subr.mxu0 0.0
    %2500 = vmatpush1.xpose.msra.mxu0 0.0
    %2501 = vmatprep.subr.mxu0 0.0
    %2502 = vmatpush1.xpose.msra.mxu0 0.0
    %2503 = vmatprep.subr.mxu0 0.0
    %2504 = vmatpush1.xpose.msra.mxu0 0.0
    %2505 = vmatprep.subr.mxu0 0.0
    %2506 = vmatpush1.xpose.msra.mxu0 0.0
    %2507 = vmatprep.subr.mxu0 0.0
    %2508 = vmatpush1.xpose.msra.mxu0 0.0
    %2509 = vmatprep.subr.mxu0 0.0
    %2510 = vmatpush1.xpose.msra.mxu0 0.0
    %2511 = vmatprep.subr.mxu0 0.0
    %2512 = vmatpush1.xpose.msra.mxu0 0.0
    %2513 = vmatprep.subr.mxu0 0.0
    %2514 = vmatpush1.xpose.msra.mxu0 0.0
    %2515 = vmatprep.subr.mxu0 0.0
    %2516 = vmatpush1.xpose.msra.mxu0 0.0
    %2517 = vmatprep.subr.mxu0 0.0
    %2518 = vmatpush1.xpose.msra.mxu0 0.0
    %2519 = vmatprep.subr.mxu0 0.0
    %2520 = vmatpush1.xpose.msra.mxu0 0.0
    %2521 = vmatprep.subr.mxu0 0.0
    %2522 = vmatpush1.xpose.msra.mxu0 0.0
    %2523 = vmatprep.subr.mxu0 0.0
    %2524 = vmatpush1.xpose.msra.mxu0 0.0
    %2525 = vmatprep.subr.mxu0 0.0
    %2526 = vmatpush1.xpose.msra.mxu0 0.0
    %2527 = vmatprep.subr.mxu0 0.0
    %2528 = vmatpush1.xpose.msra.mxu0 0.0
    %2529 = vmatprep.mubr.f32.mxu0 0.0
    %2530 = vmatmul.mubr.f32.gmra.mrb[0].mxu0 %v2461
    %v2531 = vpop.f32.mrb[0].mxu0
    %v2532 = vadd.f32 0.0, %v2531
    %v2533 = vpop.f32.mrb[0].mxu0
    %2534 = vdwg.mxu0
    %2535 = vrot.lane.b32.xlu0 %v144, 100
    %v2536 = vpop.permute.xlu0 %2535
    %2537 = vrot.lane.b32.xlu0 %v144, 68
    %v2538 = vpop.permute.xlu0 %2537
    %v2539 = vsel %vm150, %v2536, 0
    %v2541 = vsel %vm150, %v2538, 0
    %2543 = vmatprep.subr.mxu0 0.0
    %2544 = vmatpush1.xpose.msra.mxu0 %v2541
    %2545 = vmatprep.subr.mxu0 0.0
    %2546 = vmatpush1.xpose.msra.mxu0 0.0
    %2547 = vmatprep.subr.mxu0 0.0
    %2548 = vmatpush1.xpose.msra.mxu0 0.0
    %2549 = vmatprep.subr.mxu0 0.0
    %2550 = vmatpush1.xpose.msra.mxu0 0.0
    %2551 = vmatprep.subr.mxu0 0.0
    %2552 = vmatpush1.xpose.msra.mxu0 0.0
    %2553 = vmatprep.subr.mxu0 0.0
    %2554 = vmatpush1.xpose.msra.mxu0 0.0
    %2555 = vmatprep.subr.mxu0 0.0
    %2556 = vmatpush1.xpose.msra.mxu0 0.0
    %2557 = vmatprep.subr.mxu0 0.0
    %2558 = vmatpush1.xpose.msra.mxu0 0.0
    %2559 = vmatprep.subr.mxu0 0.0
    %2560 = vmatpush1.xpose.msra.mxu0 0.0
    %2561 = vmatprep.subr.mxu0 0.0
    %2562 = vmatpush1.xpose.msra.mxu0 0.0
    %2563 = vmatprep.subr.mxu0 0.0
    %2564 = vmatpush1.xpose.msra.mxu0 0.0
    %2565 = vmatprep.subr.mxu0 0.0
    %2566 = vmatpush1.xpose.msra.mxu0 0.0
    %2567 = vmatprep.subr.mxu0 0.0
    %2568 = vmatpush1.xpose.msra.mxu0 0.0
    %2569 = vmatprep.subr.mxu0 0.0
    %2570 = vmatpush1.xpose.msra.mxu0 0.0
    %2571 = vmatprep.subr.mxu0 0.0
    %2572 = vmatpush1.xpose.msra.mxu0 0.0
    %2573 = vmatprep.subr.mxu0 0.0
    %2574 = vmatpush1.xpose.msra.mxu0 0.0
    %2575 = vmatprep.subr.mxu0 0.0
    %2576 = vmatpush1.xpose.msra.mxu0 0.0
    %2577 = vmatprep.subr.mxu0 0.0
    %2578 = vmatpush1.xpose.msra.mxu0 0.0
    %2579 = vmatprep.subr.mxu0 0.0
    %2580 = vmatpush1.xpose.msra.mxu0 0.0
    %2581 = vmatprep.subr.mxu0 0.0
    %2582 = vmatpush1.xpose.msra.mxu0 0.0
    %2583 = vmatprep.subr.mxu0 0.0
    %2584 = vmatpush1.xpose.msra.mxu0 0.0
    %2585 = vmatprep.subr.mxu0 0.0
    %2586 = vmatpush1.xpose.msra.mxu0 0.0
    %2587 = vmatprep.subr.mxu0 0.0
    %2588 = vmatpush1.xpose.msra.mxu0 0.0
    %2589 = vmatprep.subr.mxu0 0.0
    %2590 = vmatpush1.xpose.msra.mxu0 0.0
    %2591 = vmatprep.subr.mxu0 0.0
    %2592 = vmatpush1.xpose.msra.mxu0 0.0
    %2593 = vmatprep.subr.mxu0 0.0
    %2594 = vmatpush1.xpose.msra.mxu0 0.0
    %2595 = vmatprep.subr.mxu0 0.0
    %2596 = vmatpush1.xpose.msra.mxu0 0.0
    %2597 = vmatprep.subr.mxu0 0.0
    %2598 = vmatpush1.xpose.msra.mxu0 0.0
    %2599 = vmatprep.subr.mxu0 0.0
    %2600 = vmatpush1.xpose.msra.mxu0 0.0
    %2601 = vmatprep.subr.mxu0 0.0
    %2602 = vmatpush1.xpose.msra.mxu0 0.0
    %2603 = vmatprep.subr.mxu0 0.0
    %2604 = vmatpush1.xpose.msra.mxu0 0.0
    %2605 = vmatprep.subr.mxu0 0.0
    %2606 = vmatpush1.xpose.msra.mxu0 0.0
    %2607 = vmatprep.mubr.f32.mxu0 0.0
    %2608 = vmatmul.mubr.f32.gmra.mrb[0].mxu0 %v2539
    %v2609 = vpop.f32.mrb[0].mxu0
    %v2610 = vadd.f32 0.0, %v2609
    %v2611 = vpop.f32.mrb[0].mxu0
    %2612 = vdwg.mxu0
    %v2613 = vsel %vm302, %v2532, -inf
    %2614 = vmax.xlane.f32.xlu0 %v2613
    %v2615 = vpop.xlane.xlu0 %2614
    %v2616 = vsel %vm302, %v2610, -inf
    %2617 = vmax.xlane.f32.xlu0 %v2616
    %v2618 = vpop.xlane.xlu0 %2617
    %v2619 = vsub.f32 %v2532, %v2615
    %v2620 = vsub.f32 %v2610, %v2618
    %v2621 = vmul.f32 %v2619, 1.442695
    %v2622 = vpow.pop %v2621
    %v2623 = vmul.f32 %v2620, 1.442695
    %v2624 = vpow.pop %v2623
    %v2625 = vsel %vm302, %v2622, 0.0
    %2626 = vadd.xlane.f32.xlu0 %v2625
    %v2627 = vpop.xlane.xlu0 %2626
    %v2628 = vsel %vm302, %v2624, 0.0
    %2629 = vadd.xlane.f32.xlu0 %v2628
    %v2630 = vpop.xlane.xlu0 %2629
    %2631 = vrot.lane.b32.xlu0 %v139, 36
    %v2632 = vpop.permute.xlu0 %2631
    %v2635 = vsel %vm302, %v2622, 0
    %2637 = vmatprep.subr.mxu0 0.0
    %2638 = vmatpush1.msra.mxu0 %v2632
    %2639 = vmatprep.subr.mxu0 0.0
    %2640 = vmatpush1.msra.mxu0 0.0
    %2641 = vmatprep.subr.mxu0 0.0
    %2642 = vmatpush1.msra.mxu0 0.0
    %2643 = vmatprep.subr.mxu0 0.0
    %2644 = vmatpush1.msra.mxu0 0.0
    %2645 = vmatprep.subr.mxu0 0.0
    %2646 = vmatpush1.msra.mxu0 0.0
    %2647 = vmatprep.subr.mxu0 0.0
    %2648 = vmatpush1.msra.mxu0 0.0
    %2649 = vmatprep.subr.mxu0 0.0
    %2650 = vmatpush1.msra.mxu0 0.0
    %2651 = vmatprep.subr.mxu0 0.0
    %2652 = vmatpush1.msra.mxu0 0.0
    %2653 = vmatprep.subr.mxu0 0.0
    %2654 = vmatpush1.msra.mxu0 0.0
    %2655 = vmatprep.subr.mxu0 0.0
    %2656 = vmatpush1.msra.mxu0 0.0
    %2657 = vmatprep.subr.mxu0 0.0
    %2658 = vmatpush1.msra.mxu0 0.0
    %2659 = vmatprep.subr.mxu0 0.0
    %2660 = vmatpush1.msra.mxu0 0.0
    %2661 = vmatprep.subr.mxu0 0.0
    %2662 = vmatpush1.msra.mxu0 0.0
    %2663 = vmatprep.subr.mxu0 0.0
    %2664 = vmatpush1.msra.mxu0 0.0
    %2665 = vmatprep.subr.mxu0 0.0
    %2666 = vmatpush1.msra.mxu0 0.0
    %2667 = vmatprep.subr.mxu0 0.0
    %2668 = vmatpush1.msra.mxu0 0.0
    %2669 = vmatprep.subr.mxu0 0.0
    %2670 = vmatpush1.msra.mxu0 0.0
    %2671 = vmatprep.subr.mxu0 0.0
    %2672 = vmatpush1.msra.mxu0 0.0
    %2673 = vmatprep.subr.mxu0 0.0
    %2674 = vmatpush1.msra.mxu0 0.0
    %2675 = vmatprep.subr.mxu0 0.0
    %2676 = vmatpush1.msra.mxu0 0.0
    %2677 = vmatprep.subr.mxu0 0.0
    %2678 = vmatpush1.msra.mxu0 0.0
    %2679 = vmatprep.subr.mxu0 0.0
    %2680 = vmatpush1.msra.mxu0 0.0
    %2681 = vmatprep.subr.mxu0 0.0
    %2682 = vmatpush1.msra.mxu0 0.0
    %2683 = vmatprep.subr.mxu0 0.0
    %2684 = vmatpush1.msra.mxu0 0.0
    %2685 = vmatprep.subr.mxu0 0.0
    %2686 = vmatpush1.msra.mxu0 0.0
    %2687 = vmatprep.subr.mxu0 0.0
    %2688 = vmatpush1.msra.mxu0 0.0
    %2689 = vmatprep.subr.mxu0 0.0
    %2690 = vmatpush1.msra.mxu0 0.0
    %2691 = vmatprep.subr.mxu0 0.0
    %2692 = vmatpush1.msra.mxu0 0.0
    %2693 = vmatprep.subr.mxu0 0.0
    %2694 = vmatpush1.msra.mxu0 0.0
    %2695 = vmatprep.subr.mxu0 0.0
    %2696 = vmatpush1.msra.mxu0 0.0
    %2697 = vmatprep.subr.mxu0 0.0
    %2698 = vmatpush1.msra.mxu0 0.0
    %2699 = vmatprep.subr.mxu0 0.0
    %2700 = vmatpush1.msra.mxu0 0.0
    %2701 = vmatprep.mubr.f32.mxu0 0.0
    %2702 = vmatmul.mubr.f32.gmra.mrb[0].mxu0 %v2635
    %v2703 = vpop.f32.mrb[0].mxu0
    %v2704 = vadd.f32 0.0, %v2703
    %v2705 = vpop.f32.mrb[0].mxu0
    %2706 = vdwg.mxu0
    %2707 = vrot.lane.b32.xlu0 %v144, 36
    %v2708 = vpop.permute.xlu0 %2707
    %v2711 = vsel %vm302, %v2624, 0
    %2713 = vmatprep.subr.mxu0 0.0
    %2714 = vmatpush1.msra.mxu0 %v2708
    %2715 = vmatprep.subr.mxu0 0.0
    %2716 = vmatpush1.msra.mxu0 0.0
    %2717 = vmatprep.subr.mxu0 0.0
    %2718 = vmatpush1.msra.mxu0 0.0
    %2719 = vmatprep.subr.mxu0 0.0
    %2720 = vmatpush1.msra.mxu0 0.0
    %2721 = vmatprep.subr.mxu0 0.0
    %2722 = vmatpush1.msra.mxu0 0.0
    %2723 = vmatprep.subr.mxu0 0.0
    %2724 = vmatpush1.msra.mxu0 0.0
    %2725 = vmatprep.subr.mxu0 0.0
    %2726 = vmatpush1.msra.mxu0 0.0
    %2727 = vmatprep.subr.mxu0 0.0
    %2728 = vmatpush1.msra.mxu0 0.0
    %2729 = vmatprep.subr.mxu0 0.0
    %2730 = vmatpush1.msra.mxu0 0.0
    %2731 = vmatprep.subr.mxu0 0.0
    %2732 = vmatpush1.msra.mxu0 0.0
    %2733 = vmatprep.subr.mxu0 0.0
    %2734 = vmatpush1.msra.mxu0 0.0
    %2735 = vmatprep.subr.mxu0 0.0
    %2736 = vmatpush1.msra.mxu0 0.0
    %2737 = vmatprep.subr.mxu0 0.0
    %2738 = vmatpush1.msra.mxu0 0.0
    %2739 = vmatprep.subr.mxu0 0.0
    %2740 = vmatpush1.msra.mxu0 0.0
    %2741 = vmatprep.subr.mxu0 0.0
    %2742 = vmatpush1.msra.mxu0 0.0
    %2743 = vmatprep.subr.mxu0 0.0
    %2744 = vmatpush1.msra.mxu0 0.0
    %2745 = vmatprep.subr.mxu0 0.0
    %2746 = vmatpush1.msra.mxu0 0.0
    %2747 = vmatprep.subr.mxu0 0.0
    %2748 = vmatpush1.msra.mxu0 0.0
    %2749 = vmatprep.subr.mxu0 0.0
    %2750 = vmatpush1.msra.mxu0 0.0
    %2751 = vmatprep.subr.mxu0 0.0
    %2752 = vmatpush1.msra.mxu0 0.0
    %2753 = vmatprep.subr.mxu0 0.0
    %2754 = vmatpush1.msra.mxu0 0.0
    %2755 = vmatprep.subr.mxu0 0.0
    %2756 = vmatpush1.msra.mxu0 0.0
    %2757 = vmatprep.subr.mxu0 0.0
    %2758 = vmatpush1.msra.mxu0 0.0
    %2759 = vmatprep.subr.mxu0 0.0
    %2760 = vmatpush1.msra.mxu0 0.0
    %2761 = vmatprep.subr.mxu0 0.0
    %2762 = vmatpush1.msra.mxu0 0.0
    %2763 = vmatprep.subr.mxu0 0.0
    %2764 = vmatpush1.msra.mxu0 0.0
    %2765 = vmatprep.subr.mxu0 0.0
    %2766 = vmatpush1.msra.mxu0 0.0
    %2767 = vmatprep.subr.mxu0 0.0
    %2768 = vmatpush1.msra.mxu0 0.0
    %2769 = vmatprep.subr.mxu0 0.0
    %2770 = vmatpush1.msra.mxu0 0.0
    %2771 = vmatprep.subr.mxu0 0.0
    %2772 = vmatpush1.msra.mxu0 0.0
    %2773 = vmatprep.subr.mxu0 0.0
    %2774 = vmatpush1.msra.mxu0 0.0
    %2775 = vmatprep.subr.mxu0 0.0
    %2776 = vmatpush1.msra.mxu0 0.0
    %2777 = vmatprep.mubr.f32.mxu0 0.0
    %2778 = vmatmul.mubr.f32.gmra.mrb[0].mxu0 %v2711
    %v2779 = vpop.f32.mrb[0].mxu0
    %v2780 = vadd.f32 0.0, %v2779
    %v2781 = vpop.f32.mrb[0].mxu0
    %2782 = vdwg.mxu0
    %v2783 = vrcp.pop %v2627
    %v2784 = vrcp.pop %v2630
    %v2785 = vmul.f32 %v2704, %v2783
    %v2786 = vmul.f32 %v2780, %v2784
    %2789 = vrot.lane.b32.xlu0 %v805, 4
    %v2790 = vpop.permute.xlu0 %2789
    %2791 = vrot.lane.b32.xlu0 %v806, 4
    %v2792 = vpop.permute.xlu0 %2791
    %2797 = vrot.lane.b32.xlu0 %v1135, 8
    %v2798 = vpop.permute.xlu0 %2797
    %2799 = vrot.lane.b32.xlu0 %v1136, 8
    %v2800 = vpop.permute.xlu0 %2799
    %2805 = vrot.lane.b32.xlu0 %v1465, 12
    %v2806 = vpop.permute.xlu0 %2805
    %2807 = vrot.lane.b32.xlu0 %v1466, 12
    %v2808 = vpop.permute.xlu0 %2807
    %2813 = vrot.lane.b32.xlu0 %v1795, 16
    %v2814 = vpop.permute.xlu0 %2813
    %2815 = vrot.lane.b32.xlu0 %v1796, 16
    %v2816 = vpop.permute.xlu0 %2815
    %2821 = vrot.lane.b32.xlu0 %v2125, 20
    %v2822 = vpop.permute.xlu0 %2821
    %2823 = vrot.lane.b32.xlu0 %v2126, 20
    %v2824 = vpop.permute.xlu0 %2823
    %2829 = vrot.lane.b32.xlu0 %v2455, 24
    %v2830 = vpop.permute.xlu0 %2829
    %2831 = vrot.lane.b32.xlu0 %v2456, 24
    %v2832 = vpop.permute.xlu0 %2831
    %2837 = vrot.lane.b32.xlu0 %v2785, 28
    %v2838 = vpop.permute.xlu0 %2837
    %2839 = vrot.lane.b32.xlu0 %v2786, 28
    %v2840 = vpop.permute.xlu0 %2839
    %v2843 = vsel %vm150, %v475, %v2790
    %v2844 = vsel %vm150, %v476, %v2792
    %v2845 = vsel %vm302, %v2843, %v2798
    %v2846 = vsel %vm302, %v2844, %v2800
    %vm2847 = vcmask 97280
    %v2848 = vsel %vm2847, %v2845, %v2806
    %v2849 = vsel %vm2847, %v2846, %v2808
    %vm2850 = vcmask 130048
    %v2851 = vsel %vm2850, %v2848, %v2814
    %v2852 = vsel %vm2850, %v2849, %v2816
    %vm2853 = vcmask 162816
    %v2854 = vsel %vm2853, %v2851, %v2822
    %v2855 = vsel %vm2853, %v2852, %v2824
    %vm2856 = vcmask 195584
    %v2857 = vsel %vm2856, %v2854, %v2830
    %v2858 = vsel %vm2856, %v2855, %v2832
    %vm2859 = vcmask 228352
    %v2860 = vsel %vm2859, %v2857, %v2838
    %v2861 = vsel %vm2859, %v2858, %v2840
    %v2862 = vld [vmem:[#allocation7] sm:$0xff]
    %v2863 = vld [vmem:[#allocation7 + $0x8] sm:$0xff]
    %v2864 = vld [vmem:[#allocation7 + $0x10] sm:$0xff]
    %v2865 = vld [vmem:[#allocation7 + $0x18] sm:$0xff]
    %v2866 = vld [vmem:[%s3] sm:$0x1]
    %v2868 = vlaneseq
    %v2869 = vshrl.u32 %v2868, 7
    %v2870 = vsub.s32 0, %v2869
    %v2871 = vrot.slane %v2866, %v2870
    %v2874 = vsel %vm65, %v2860, 0
    %v2877 = vsel %vm65, %v2861, 0
    %2879 = vmatprep.subr.mxu0 0.0
    %2880 = vmatpush1.msra.mxu0 %v2862
    %2881 = vmatprep.subr.mxu0 0.0
    %2882 = vmatpush1.msra.mxu0 %v2863
    %2883 = vmatprep.subr.mxu0 0.0
    %2884 = vmatpush1.msra.mxu0 %v2864
    %2885 = vmatprep.subr.mxu0 0.0
    %2886 = vmatpush1.msra.mxu0 %v2865
    %2887 = vmatprep.subr.mxu0 0.0
    %2888 = vmatpush1.msra.mxu0 0.0
    %2889 = vmatprep.subr.mxu0 0.0
    %2890 = vmatpush1.msra.mxu0 0.0
    %2891 = vmatprep.subr.mxu0 0.0
    %2892 = vmatpush1.msra.mxu0 0.0
    %2893 = vmatprep.subr.mxu0 0.0
    %2894 = vmatpush1.msra.mxu0 0.0
    %2895 = vmatprep.subr.mxu0 0.0
    %2896 = vmatpush1.msra.mxu0 0.0
    %2897 = vmatprep.subr.mxu0 0.0
    %2898 = vmatpush1.msra.mxu0 0.0
    %2899 = vmatprep.subr.mxu0 0.0
    %2900 = vmatpush1.msra.mxu0 0.0
    %2901 = vmatprep.subr.mxu0 0.0
    %2902 = vmatpush1.msra.mxu0 0.0
    %2903 = vmatprep.subr.mxu0 0.0
    %2904 = vmatpush1.msra.mxu0 0.0
    %2905 = vmatprep.subr.mxu0 0.0
    %2906 = vmatpush1.msra.mxu0 0.0
    %2907 = vmatprep.subr.mxu0 0.0
    %2908 = vmatpush1.msra.mxu0 0.0
    %2909 = vmatprep.subr.mxu0 0.0
    %2910 = vmatpush1.msra.mxu0 0.0
    %2911 = vmatprep.subr.mxu0 0.0
    %2912 = vmatpush1.msra.mxu0 0.0
    %2913 = vmatprep.subr.mxu0 0.0
    %2914 = vmatpush1.msra.mxu0 0.0
    %2915 = vmatprep.subr.mxu0 0.0
    %2916 = vmatpush1.msra.mxu0 0.0
    %2917 = vmatprep.subr.mxu0 0.0
    %2918 = vmatpush1.msra.mxu0 0.0
    %2919 = vmatprep.subr.mxu0 0.0
    %2920 = vmatpush1.msra.mxu0 0.0
    %2921 = vmatprep.subr.mxu0 0.0
    %2922 = vmatpush1.msra.mxu0 0.0
    %2923 = vmatprep.subr.mxu0 0.0
    %2924 = vmatpush1.msra.mxu0 0.0
    %2925 = vmatprep.subr.mxu0 0.0
    %2926 = vmatpush1.msra.mxu0 0.0
    %2927 = vmatprep.subr.mxu0 0.0
    %2928 = vmatpush1.msra.mxu0 0.0
    %2929 = vmatprep.subr.mxu0 0.0
    %2930 = vmatpush1.msra.mxu0 0.0
    %2931 = vmatprep.subr.mxu0 0.0
    %2932 = vmatpush1.msra.mxu0 0.0
    %2933 = vmatprep.subr.mxu0 0.0
    %2934 = vmatpush1.msra.mxu0 0.0
    %2935 = vmatprep.subr.mxu0 0.0
    %2936 = vmatpush1.msra.mxu0 0.0
    %2937 = vmatprep.subr.mxu0 0.0
    %2938 = vmatpush1.msra.mxu0 0.0
    %2939 = vmatprep.subr.mxu0 0.0
    %2940 = vmatpush1.msra.mxu0 0.0
    %2941 = vmatprep.subr.mxu0 0.0
    %2942 = vmatpush1.msra.mxu0 0.0
    %2943 = vmatprep.mubr.f32.mxu0 0.0
    %2944 = vmatmul.mubr.f32.gmra.mrb[0].mxu0 %v2874
    %v2945 = vpop.f32.mrb[0].mxu0
    %v2946 = vadd.f32 %v2871, %v2945
    %v2947 = vpop.f32.mrb[0].mxu0
    %2948 = vmatprep.mubr.f32.mxu0 0.0
    %2949 = vmatmul.mubr.f32.gmra.mrb[0].mxu0 %v2877
    %v2950 = vpop.f32.mrb[0].mxu0
    %v2951 = vadd.f32 %v2871, %v2950
    %v2952 = vpop.f32.mrb[0].mxu0
    %2953 = vdwg.mxu0
    %2954 = vst.msk [vmem:[#allocation8] sm:$0xff] %vm65, %v2946
    %2955 = vst.msk [vmem:[#allocation8 + $0x8] sm:$0xff] %vm65, %v2951
    // Predicated region
    $region30: #{tpu_custom_call.1} parent=1 // pred_check
      _
    $region31: #{tpu_custom_call.1} parent=1 // pred_check_branch
      %2957 = sbr.rel (0) target = $region33
    $region32: #{tpu_custom_call.1} parent=1 // pred_region
      %s2959 = ssub.s32 256, 256
      %2960 = vsyncadd [#allocation4], %s2959
      %s2961 = sshll.u32 [#allocation8], 4
      %s2962 = int_to_ptr.vmem [resolvable:$true] %s2961
      %2967 = dma.vmem_to_hbm [thread:$0]  %s2962, 256, %s4, [#allocation4], 128, 128, 8
    $region33: #{tpu_custom_call.1} parent=1 // pred_fallthru
      _
    // Predicated region
    $region34: #{tpu_custom_call.1} parent=1 // pred_check
      _
    $region35: #{tpu_custom_call.1} parent=1 // pred_check_branch
      %2969 = sbr.rel (0) target = $region37
    $region36: #{tpu_custom_call.1} parent=1 // pred_region
      %2970 = dma.done [#allocation4], 256
    $region37: #{tpu_custom_call.1} parent=1 // pred_fallthru
      _
    %2971 = vsyncpa [#allocation3], 1
    %2972 = vsyncpa [#allocation6], 1
    %2973 = vsyncpa [#allocation4], 1

</llo_original>
